<compile_context>
chip_gen: v5e
topology: v5e:2x2
jax: 0.10.0
libtpu: 0.0.40
codegen_flags: <defaults>
</compile_context>

<pallas_src>
import functools

import jax
import jax.numpy as jnp
import numpy as np
from jax import lax
from jax.experimental import pallas as pl
from jax.experimental.pallas import tpu as pltpu

MID = 512            # DynamicConv2d(in_channels, 512, ...)
RED = 16             # ChannelAttention(512, 16)
LANE = 128


def _round_up(x, m):
    return ((x + m - 1) // m) * m


def _hw_tiling(hw, kpad):
    """Pick the HW tile (multiple of 128, <=1024) and the padded HW extent."""
    cap = 8 * LANE  # 1024

    def working_set(tile):
        # double-buffered patches/weights/y + f32 matmul intermediate
        return (2 * (MID * kpad * 2 + kpad * tile * 2 + MID * tile * 2 + MID * 4)
                + MID * tile * 4)

    # Keep kernel A's working set well under v7x's 64 MiB physical VMEM.
    while cap > LANE and working_set(cap) > (40 << 20):
        cap //= 2
    if hw >= cap:
        return _round_up(hw, cap), cap
    hw_pad = _round_up(hw, LANE)
    return hw_pad, hw_pad


def _vmem_limit(kpad, tile_hw, out_ch):
    # Scoped-VMEM limit derived from the actual tile sizes (not a flat constant).
    a = (2 * (MID * kpad * 2 + kpad * tile_hw * 2 + MID * tile_hw * 2 + MID * 4)
         + MID * tile_hw * 4)
    b = (2 * (out_ch * MID * 2 + MID * tile_hw * 2 + tile_hw * 4
              + out_ch * tile_hw * 4 + out_ch * 4)
         + out_ch * tile_hw * 4)
    lim = int(1.5 * max(a, b)) + (8 << 20)
    return int(min(max(lim, 20 << 20), 56 << 20))


# ---------------------------------------------------------------------------
# Pallas kernels
# ---------------------------------------------------------------------------
def _dynconv_kernel(w_ref, p_ref, y_ref, pooled_ref):
    # w_ref:      [1, 512, Kpad]     bf16  per-batch combined expert weights^T (resident)
    # p_ref:      [1, Kpad, TILE_HW] bf16  transposed im2col patches (HW on lanes)
    # y_ref:      [1, 512, TILE_HW]  bf16  conv output tile, stored transposed
    # pooled_ref: [1, 1, 512]        f32   per-tile spatial-sum partial
    y = jnp.dot(w_ref[0], p_ref[0], preferred_element_type=jnp.float32)
    pooled_ref[...] = jnp.sum(y, axis=1).reshape(1, 1, MID)
    y_ref[0] = y.astype(y_ref.dtype)


def _pred_kernel(has_mask, mask_tail, hw_real, tile_hw, *refs):
    # Channel attention is already folded into w_ref (wp_att = pred_w^T * att[b]).
    # mfeat is a per-pixel scalar and the 1x1 pred conv has no bias, so it can be
    # applied after the matmul: sigmoid((wp_att . y^T) * mfeat).
    if has_mask:
        w_ref, y_ref, mfeat_ref, dens_ref, cnt_ref = refs
    else:
        w_ref, y_ref, dens_ref, cnt_ref = refs

    z = jnp.dot(w_ref[0], y_ref[0], preferred_element_type=jnp.float32)  # [OUT, TILE]
    if has_mask:
        z = z * mfeat_ref[0]                                             # [1, TILE] bcast
    d = jax.nn.sigmoid(z)
    if mask_tail:  # HW was padded up to the tile size: zero the padded pixels
        col = lax.broadcasted_iota(jnp.int32, d.shape, 1) + pl.program_id(1) * tile_hw
        d = jnp.where(col < hw_real, d, 0.0)
    dens_ref[0] = d
    cnt_ref[...] = jnp.sum(d, axis=1).reshape(1, 1, -1)


# ---------------------------------------------------------------------------
# Parameters (deterministic synthetic init, shapes follow the PyTorch module)
# ---------------------------------------------------------------------------
def init_params(key, in_channels, out_channels, kernel_list, num_experts,
                embedding_dim):
    ks = jax.random.split(key, 4 + len(kernel_list))
    p = {}
    p["expert_weights"] = [
        0.05 * jax.random.normal(
            ks[i], (num_experts, MID, in_channels, k, k), jnp.float32)
        for i, k in enumerate(kernel_list)
    ]
    base = len(kernel_list)
    p["router_w"] = 0.5 * jax.random.normal(ks[base + 0],
                                            (in_channels, num_experts), jnp.float32)
    p["router_b"] = 0.05 * jax.random.normal(jax.random.fold_in(key, 14),
                                             (num_experts,), jnp.float32)
    hid = MID // RED
    p["att_w1"] = 0.1 * jax.random.normal(ks[base + 1], (MID, hid), jnp.float32)
    p["att_b1"] = 0.05 * jax.random.normal(jax.random.fold_in(key, 11), (hid,), jnp.float32)
    p["att_w2"] = 0.1 * jax.random.normal(ks[base + 2], (hid, MID), jnp.float32)
    p["att_b2"] = 0.05 * jax.random.normal(jax.random.fold_in(key, 12), (MID,), jnp.float32)
    p["mask_w"] = 0.2 * jax.random.normal(ks[base + 3], (embedding_dim, 1), jnp.float32)
    p["mask_b"] = 0.05 * jax.random.normal(jax.random.fold_in(key, 13), (1,), jnp.float32)
    kpred = jax.random.fold_in(key, 123)
    p["pred_w"] = 0.05 * jax.random.normal(kpred, (MID, out_channels), jnp.float32)
    return p


# ---------------------------------------------------------------------------
# Forward
# ---------------------------------------------------------------------------
def counting_decoder_forward(params, x, mask=None, kernel_list=(3, 5)):
    B, Cin, H, W = x.shape
    HW = H * W
    out_channels = params["pred_w"].shape[1]

    # --- DynamicConv2d router (tiny; XLA glue) ---
    pooled_x = jnp.mean(x, axis=(2, 3))
    routing = jax.nn.softmax(pooled_x @ params["router_w"] + params["router_b"], axis=1)

    # --- im2col patches (bf16, transposed layout [B, K, HW]) + combined weights^T ---
    # Built directly in the kernel layout: no f32 intermediate and no transposes.
    # TODO(synk): move the im2col itself into kernel A (haloed shifted slices of a
    # single [B, Cin, HW] copy of x) to cut input HBM traffic by ~sum(k^2)x; kept in
    # XLA glue here because unaligned dynamic lane slices are a Mosaic lowering risk.
    x_bf = x.astype(jnp.bfloat16)
    patch_blocks, weight_blocks = [], []
    for idx, k in enumerate(kernel_list):
        pad = k // 2
        xpad = jnp.pad(x_bf, ((0, 0), (0, 0), (pad, pad), (pad, pad)))
        cols = [xpad[:, :, i:i + H, j:j + W] for i in range(k) for j in range(k)]
        stacked = jnp.stack(cols, axis=2)                        # [B, Cin, k*k, H, W]
        patch_blocks.append(stacked.reshape(B, Cin * k * k, HW))  # K order (c, i, j)
        wc = jnp.einsum("be,eocij->bocij", routing, params["expert_weights"][idx])
        weight_blocks.append(wc.reshape(B, MID, Cin * k * k))
    ktot = Cin * sum(k * k for k in kernel_list)
    kpad = _round_up(ktot, 8)            # sublane-aligned; no need to pad K to 128
    hw_pad, tile_hw = _hw_tiling(HW, kpad)
    n_t = hw_pad // tile_hw

    if kpad > ktot:
        patch_blocks.append(jnp.zeros((B, kpad - ktot, HW), jnp.bfloat16))
        weight_blocks.append(jnp.zeros((B, MID, kpad - ktot), jnp.float32))
    patches_t = jnp.concatenate(patch_blocks, axis=1)            # [B, Kpad, HW] bf16
    if hw_pad > HW:
        patches_t = jnp.pad(patches_t, ((0, 0), (0, 0), (0, hw_pad - HW)))
    weights_t = jnp.concatenate(weight_blocks, axis=2).astype(jnp.bfloat16)  # [B, 512, Kpad]

    vmem_lim = _vmem_limit(kpad, tile_hw, out_channels)

    # --- Pallas kernel A: dynamic conv as per-batch HW-tiled matmul; y stored
    #     transposed (lane-dense HW) plus per-tile spatial-sum partials (no
    #     resident accumulator -> both grid axes "parallel" / megacore-safe). ---
    y_t, pooled_part = pl.pallas_call(
        _dynconv_kernel,
        out_shape=(jax.ShapeDtypeStruct((B, MID, hw_pad), jnp.bfloat16),
                   jax.ShapeDtypeStruct((B, n_t, MID), jnp.float32)),
        grid=(B, n_t),
        in_specs=[pl.BlockSpec((1, MID, kpad), lambda b, t: (b, 0, 0)),
                  pl.BlockSpec((1, kpad, tile_hw), lambda b, t: (b, 0, t))],
        out_specs=(pl.BlockSpec((1, MID, tile_hw), lambda b, t: (b, 0, t)),
                   pl.BlockSpec((1, 1, MID), lambda b, t: (b, t, 0))),
        compiler_params=pltpu.CompilerParams(
            dimension_semantics=("parallel", "parallel"),
            vmem_limit_bytes=vmem_lim),
    )(weights_t, patches_t)

    # --- ChannelAttention FCs: negligible FLOPs; keep as tiny XLA matmuls ---
    pooled_y = jnp.sum(pooled_part, axis=1) / float(HW)                 # [B, 512]
    h = jnp.maximum(pooled_y @ params["att_w1"] + params["att_b1"], 0.0)
    att = jax.nn.sigmoid(h @ params["att_w2"] + params["att_b2"])       # [B, 512]

    # Fold the attention vector into the 1x1 prediction weights (f32, then bf16).
    wp_att = (params["pred_w"].T[None, :, :] * att[:, None, :]).astype(jnp.bfloat16)

    has_mask = mask is not None
    operands = [wp_att, y_t]
    in_specs = [pl.BlockSpec((1, out_channels, MID), lambda b, t: (b, 0, 0)),
                pl.BlockSpec((1, MID, tile_hw), lambda b, t: (b, 0, t))]
    if has_mask:
        # mask_proj (1x1 conv Emb->1 + bias) precomputed as a lane-dense scalar field.
        mfeat = (jnp.einsum("bchw,c->bhw", mask, params["mask_w"][:, 0])
                 + params["mask_b"][0]).reshape(B, 1, HW).astype(jnp.float32)
        if hw_pad > HW:
            mfeat = jnp.pad(mfeat, ((0, 0), (0, 0), (0, hw_pad - HW)))
        operands.append(mfeat)
        in_specs.append(pl.BlockSpec((1, 1, tile_hw), lambda b, t: (b, 0, t)))

    # --- Pallas kernel B: 1x1 pred conv + mask gate + sigmoid; lane-dense density
    #     store and per-tile count partials (no re-read of dens from HBM). ---
    # TODO(synk): fuse kernels A and B (grid=(B,), y resident in VMEM scratch,
    # attention FCs in-kernel) on v6e/v7x when the per-batch y fits in VMEM.
    dens, cnt_part = pl.pallas_call(
        functools.partial(_pred_kernel, has_mask, hw_pad != HW, HW, tile_hw),
        out_shape=(jax.ShapeDtypeStruct((B, out_channels, hw_pad), jnp.float32),
                   jax.ShapeDtypeStruct((B, n_t, out_channels), jnp.float32)),
        grid=(B, n_t),
        in_specs=in_specs,
        out_specs=(pl.BlockSpec((1, out_channels, tile_hw), lambda b, t: (b, 0, t)),
                   pl.BlockSpec((1, 1, out_channels), lambda b, t: (b, t, 0))),
        compiler_params=pltpu.CompilerParams(
            dimension_semantics=("parallel", "parallel"),
            vmem_limit_bytes=vmem_lim),
    )(*operands)

    count_vector = jnp.sum(cnt_part, axis=1)                            # [B, OUT]
    dmap = dens if hw_pad == HW else dens[:, :, :HW]
    density_map = dmap.reshape(B, out_channels, H, W)
    return count_vector, density_map


# ---------------------------------------------------------------------------
# Pure-JAX reference (mirrors the PyTorch forward) for verification
# ---------------------------------------------------------------------------
def reference_forward(params, x, mask, kernel_list):
    B, Cin, H, W = x.shape
    pooled = jnp.mean(x, axis=(2, 3))
    routing = jax.nn.softmax(pooled @ params["router_w"] + params["router_b"], axis=1)
    y = jnp.zeros((B, MID, H, W), jnp.float32)
    for idx, k in enumerate(kernel_list):
        wc = jnp.einsum("be,eocij->bocij", routing, params["expert_weights"][idx])
        outs = []
        for b in range(B):
            o = lax.conv_general_dilated(
                x[b:b + 1], wc[b], window_strides=(1, 1),
                padding=[(k // 2, k // 2), (k // 2, k // 2)],
                dimension_numbers=("NCHW", "OIHW", "NCHW"),
                precision=lax.Precision.HIGHEST)
            outs.append(o)
        y = y + jnp.concatenate(outs, axis=0)
    pooled_y = jnp.mean(y, axis=(2, 3))
    h = jnp.maximum(pooled_y @ params["att_w1"] + params["att_b1"], 0.0)
    att = jax.nn.sigmoid(h @ params["att_w2"] + params["att_b2"])
    y = y * att[:, :, None, None]
    if mask is not None:
        mfeat = jnp.einsum("bchw,c->bhw", mask, params["mask_w"][:, 0]) + params["mask_b"][0]
        y = y * mfeat[:, None, :, :]
    z = jax.nn.sigmoid(jnp.einsum("bchw,co->bohw", y, params["pred_w"]))
    count = jnp.sum(z, axis=(2, 3))
    return count, z


# ---------------------------------------------------------------------------
if __name__ == "__main__":
    key = jax.random.PRNGKey(0)
    kernel_list = (3, 5)

    configs = [
        # B, Cin, H,  W,  OUT, experts, emb, use_mask
        dict(B=2, Cin=16, H=16, W=16, out=8, experts=4, emb=16, use_mask=True),
        dict(B=2, Cin=8,  H=32, W=32, out=4, experts=4, emb=8,  use_mask=False),
    ]

    for i, cfg in enumerate(configs):
        kx, km, kp = jax.random.split(jax.random.fold_in(key, i), 3)
        x = jax.random.normal(kx, (cfg["B"], cfg["Cin"], cfg["H"], cfg["W"]), jnp.float32)
        mask = (jax.random.normal(km, (cfg["B"], cfg["emb"], cfg["H"], cfg["W"]),
                                  jnp.float32)
                if cfg["use_mask"] else None)
        params = init_params(kp, cfg["Cin"], cfg["out"], kernel_list,
                             cfg["experts"], cfg["emb"])

        count, dens = counting_decoder_forward(params, x, mask, kernel_list)
        count = jax.block_until_ready(count)
        dens = jax.block_until_ready(dens)

        assert count.shape == (cfg["B"], cfg["out"])
        assert dens.shape == (cfg["B"], cfg["out"], cfg["H"], cfg["W"])

        ref_count, ref_dens = reference_forward(params, x, mask, kernel_list)
        np.testing.assert_allclose(np.asarray(count), np.asarray(ref_count),
                                   rtol=2e-2, atol=2e-2)
        np.testing.assert_allclose(np.asarray(dens), np.asarray(ref_dens),
                                   rtol=2e-2, atol=2e-2)

    print("KERNEL_OK")
</pallas_src>

<mosaic_0001>
module attributes {stable_mosaic.version = 11 : i64} {
  func.func @_dynconv_kernel(%arg0: i32, %arg1: i32, %arg2: memref<1x512x544xbf16, #tpu.memory_space<vmem>>, %arg3: memref<1x544x256xbf16, #tpu.memory_space<vmem>>, %arg4: memref<1x512x256xbf16, #tpu.memory_space<vmem>>, %arg5: memref<1x1x512xf32, #tpu.memory_space<vmem>>) attributes {dimension_semantics = [#tpu.dimension_semantics<parallel>, #tpu.dimension_semantics<parallel>], iteration_bounds = array<i64: 2, 1>, scalar_prefetch = 0 : i64, scratch_operands = 0 : i64, tpu.core_type = #tpu.core_type<tc>, window_params = [{transform_indices = @transform_0, window_bounds = array<i64: 1, 512, 544>}, {transform_indices = @transform_1, window_bounds = array<i64: 1, 544, 256>}, {transform_indices = @transform_2, window_bounds = array<i64: 1, 512, 256>}, {transform_indices = @transform_3, window_bounds = array<i64: 1, 1, 512>}]} {
    %c0 = arith.constant 0 : index
    %c0_0 = arith.constant 0 : index
    %c0_1 = arith.constant 0 : index
    %0 = vector.load %arg2[%c0, %c0_0, %c0_1] : memref<1x512x544xbf16, #tpu.memory_space<vmem>>, vector<1x512x544xbf16>
    %1 = vector.shape_cast %0 : vector<1x512x544xbf16> to vector<512x544xbf16>
    %c0_2 = arith.constant 0 : index
    %c0_3 = arith.constant 0 : index
    %c0_4 = arith.constant 0 : index
    %2 = vector.load %arg3[%c0_2, %c0_3, %c0_4] : memref<1x544x256xbf16, #tpu.memory_space<vmem>>, vector<1x544x256xbf16>
    %3 = vector.shape_cast %2 : vector<1x544x256xbf16> to vector<544x256xbf16>
    %cst = arith.constant dense<0.000000e+00> : vector<512x256xf32>
    %4 = tpu.matmul %1, %3, %cst {dimension_numbers = #tpu.dot_dimension_numbers<[1], [0], [0], [1], [0, 0, 1, 1], [], []>} : vector<512x544xbf16>, vector<544x256xbf16>, vector<512x256xf32> -> vector<512x256xf32>
    %cst_5 = arith.constant dense<0.000000e+00> : vector<512xf32>
    %5 = vector.multi_reduction <add>, %4, %cst_5 [1] : vector<512x256xf32> to vector<512xf32>
    %6 = vector.shape_cast %5 : vector<512xf32> to vector<1x1x512xf32>
    %c0_6 = arith.constant 0 : index
    %c0_7 = arith.constant 0 : index
    %c0_8 = arith.constant 0 : index
    %7 = vector.load %arg5[%c0_6, %c0_7, %c0_8] : memref<1x1x512xf32, #tpu.memory_space<vmem>>, vector<1x1x512xf32>
    tpu.vector_store %arg5[%c0_6, %c0_7, %c0_8], %6 {strides = array<i32>} : memref<1x1x512xf32, #tpu.memory_space<vmem>>, vector<1x1x512xf32>,
    %8 = arith.truncf %4 : vector<512x256xf32> to vector<512x256xbf16>
    %c0_9 = arith.constant 0 : index
    %c0_10 = arith.constant 0 : index
    %c0_11 = arith.constant 0 : index
    %9 = vector.load %arg4[%c0_9, %c0_10, %c0_11] : memref<1x512x256xbf16, #tpu.memory_space<vmem>>, vector<1x512x256xbf16>
    %10 = vector.shape_cast %9 : vector<1x512x256xbf16> to vector<512x256xbf16>
    %11 = vector.shape_cast %8 : vector<512x256xbf16> to vector<1x512x256xbf16>
    tpu.vector_store %arg4[%c0_9, %c0_10, %c0_11], %11 {strides = array<i32>} : memref<1x512x256xbf16, #tpu.memory_space<vmem>>, vector<1x512x256xbf16>,
    return
  }
  func.func @transform_0(%arg0: i32, %arg1: i32) -> (i32, i32, i32) {
    %c0_i32 = arith.constant 0 : i32
    %c0_i32_0 = arith.constant 0 : i32
    %c0_i32_1 = arith.constant 0 : i32
    return %arg0, %c0_i32, %c0_i32_0 : i32, i32, i32
  }
  func.func @transform_1(%arg0: i32, %arg1: i32) -> (i32, i32, i32) {
    %c0_i32 = arith.constant 0 : i32
    %c0_i32_0 = arith.constant 0 : i32
    return %arg0, %c0_i32, %arg1 : i32, i32, i32
  }
  func.func @transform_2(%arg0: i32, %arg1: i32) -> (i32, i32, i32) {
    %c0_i32 = arith.constant 0 : i32
    %c0_i32_0 = arith.constant 0 : i32
    return %arg0, %c0_i32, %arg1 : i32, i32, i32
  }
  func.func @transform_3(%arg0: i32, %arg1: i32) -> (i32, i32, i32) {
    %c0_i32 = arith.constant 0 : i32
    %c0_i32_0 = arith.constant 0 : i32
    return %arg0, %arg1, %c0_i32 : i32, i32, i32
  }
}

</mosaic_0001>

<llo_original>
// kernel: tpu_custom_call.1
$region0: #{tpu_custom_call.1}
  #allocation0 [shape = 'u32[]', space=smem, size = 0x4, offset = 0x4, fixed_abs, tag = 'smem constant byte address 0x4 - core index']
  #allocation1 [shape = 'u32[72,128]{1,0:T(1,128)}', space=vmem, size = 0x9000, scoped, tag = 'internal scratch']
  %s0 = inlined_call_operand.vmem [shape: bf16[2,512,544], index: 0, kind: input, shape index: {}]
  %s1 = inlined_call_operand.vmem [shape: bf16[2,544,256], index: 1, kind: input, shape index: {}]
  %s2 = inlined_call_operand.hbm [shape: bf16[2,512,256], index: 2, kind: output, shape index: {0}]
  %s3 = inlined_call_operand.hbm [shape: f32[2,1,512], index: 3, kind: output, shape index: {1}]
  %4 = xla_tuple %s2, %s3
  %s5 = sld [smem:[#allocation0]]
  $region49: #{tpu_custom_call.1} parent=0
    _
  %s7 = ssub.s32 1, %s5
  %s8 = scalar_select 0, %s7, %s5
  $region1: #{tpu_custom_call.1} parent=0
    #allocation2 [shape = 'u8[524288]{0}', space=vmem, size = 0x80000, scoped, tag = 'output window, operand 0']
    #allocation3 [shape = 's32[2]{0}', space=sflag, size = 0x8, scoped, tag = 'scoped memory for tpu_custom_call.1']
    #allocation4 [shape = 'u8[4096]{0}', space=vmem, size = 0x1000, scoped, tag = 'output window, operand 1']
    #allocation5 [shape = 's32[2]{0}', space=sflag, size = 0x8, scoped, tag = 'scoped memory for tpu_custom_call.1']
    %9 = vsyncpa [#allocation3], 0
    %s10 = scalar_lea.sflag [#allocation3], 1
    %11 = vsyncpa %s10, 0
    %12 = vsyncpa [#allocation5], 0
    %s13 = scalar_lea.sflag [#allocation5], 1
    %14 = vsyncpa %s13, 0
    loop: start=0, step=1, limit=4
    $region2: #{tpu_custom_call.1} parent=1 // loop_pre_header
      _
    $region3: #{tpu_custom_call.1} parent=1 // loop_header
      %s16 = sphi 0, %s20
      %p17 = scmp.ge.s32.totalorder %s16, 4
      %s23 = sphi 0, %s35
      %s24 = sphi 0, %s31
      %s25 = sphi 0, %s23
      %s26 = sphi 0, %s24
      %s27 = sphi 0, %s25
      %s28 = sphi 0, %s26
      %s38 = sphi 0, %s40
      %s41 = sphi 0, %s38
      %s42 = sphi 0, %s41
      %s58 = sphi 0, %s42
      %s66 = sphi 0, %s68
      %s69 = sphi 0, %s66
      %s70 = sphi 0, %s69
      %s86 = sphi 0, %s70
      %s94 = sphi 0, %s96
      %s97 = sphi 0, %s94
      %s98 = sphi 0, %s97
      %s114 = sphi 0, %s98
      %s122 = sphi 0, %s124
      %s125 = sphi 0, %s122
      %s126 = sphi 0, %s125
      %s142 = sphi 0, %s126
    $region4: #{tpu_custom_call.1} parent=1 // loop_header_branch
      %19 = sbr.rel (%p17) target = $region8
    $region5: #{tpu_custom_call.1} parent=1 // loop_body
      %s21 = ssub.s32 %s16, 1
      %s22 = ssub.s32 %s16, 2
      %s29 = sadd.s32 1, %s24
      %p30 = scmp.ge.s32.totalorder %s29, 1
      %s31 = scalar_select %p30, 0, %s29
      %s32 = sadd.s32 1, %s23
      %s33 = scalar_select %p30, %s32, %s23
      %p34 = scmp.ge.s32.totalorder %s33, 2
      %s35 = scalar_select %p34, 0, %s33
      %s36 = ssub.s32 %s23, %s35
      %p37 = scmp.eq.s32.totalorder %s36, 0
      %s39 = sadd.s32 %s38, 1
      %s40 = scalar_select %p37, %s38, %s39
      %p43 = pneg %p37
      %p44 = scmp.eq.s32.totalorder %s16, 1
      %p45 = por %p43, %p44
      %p46 = scmp.ne.s32.totalorder %s38, %s41
      %p47 = scmp.eq.s32.totalorder %s16, 0
      %p48 = por %p46, %p47
      %p49 = scmp.ne.s32.totalorder %s38, %s41
      %p50 = scmp.eq.s32.totalorder %s21, 1
      %p51 = por %p49, %p50
      %p52 = scmp.ne.s32.totalorder %s41, %s42
      %p53 = scmp.eq.s32.totalorder %s21, 0
      %p54 = por %p52, %p53
      %p55 = scmp.ne.s32.totalorder %s41, %s42
      %p56 = scmp.eq.s32.totalorder %s22, 1
      %p57 = por %p55, %p56
      %p59 = scmp.ne.s32.totalorder %s42, %s58
      %p60 = scmp.eq.s32.totalorder %s22, 0
      %p61 = por %p59, %p60
      %s62 = ssub.s32 %s23, %s35
      %s63 = ssub.s32 %s24, %s31
      %s64 = sor.u32 %s62, %s63
      %p65 = scmp.eq.s32.totalorder %s64, 0
      %s67 = sadd.s32 %s66, 1
      %s68 = scalar_select %p65, %s66, %s67
      %p71 = pneg %p65
      %p72 = scmp.eq.s32.totalorder %s16, 1
      %p73 = por %p71, %p72
      %p74 = scmp.ne.s32.totalorder %s66, %s69
      %p75 = scmp.eq.s32.totalorder %s16, 0
      %p76 = por %p74, %p75
      %p77 = scmp.ne.s32.totalorder %s66, %s69
      %p78 = scmp.eq.s32.totalorder %s21, 1
      %p79 = por %p77, %p78
      %p80 = scmp.ne.s32.totalorder %s69, %s70
      %p81 = scmp.eq.s32.totalorder %s21, 0
      %p82 = por %p80, %p81
      %p83 = scmp.ne.s32.totalorder %s69, %s70
      %p84 = scmp.eq.s32.totalorder %s22, 1
      %p85 = por %p83, %p84
      %p87 = scmp.ne.s32.totalorder %s70, %s86
      %p88 = scmp.eq.s32.totalorder %s22, 0
      %p89 = por %p87, %p88
      %s90 = ssub.s32 %s23, %s35
      %s91 = ssub.s32 %s24, %s31
      %s92 = sor.u32 %s90, %s91
      %p93 = scmp.eq.s32.totalorder %s92, 0
      %s95 = sadd.s32 %s94, 1
      %s96 = scalar_select %p93, %s94, %s95
      %p99 = pneg %p93
      %p100 = scmp.eq.s32.totalorder %s16, 1
      %p101 = por %p99, %p100
      %p102 = scmp.ne.s32.totalorder %s94, %s97
      %p103 = scmp.eq.s32.totalorder %s16, 0
      %p104 = por %p102, %p103
      %p105 = scmp.ne.s32.totalorder %s94, %s97
      %p106 = scmp.eq.s32.totalorder %s21, 1
      %p107 = por %p105, %p106
      %p108 = scmp.ne.s32.totalorder %s97, %s98
      %p109 = scmp.eq.s32.totalorder %s21, 0
      %p110 = por %p108, %p109
      %p111 = scmp.ne.s32.totalorder %s97, %s98
      %p112 = scmp.eq.s32.totalorder %s22, 1
      %p113 = por %p111, %p112
      %p115 = scmp.ne.s32.totalorder %s98, %s114
      %p116 = scmp.eq.s32.totalorder %s22, 0
      %p117 = por %p115, %p116
      %s118 = ssub.s32 %s23, %s35
      %s119 = ssub.s32 %s24, %s31
      %s120 = sor.u32 %s118, %s119
      %p121 = scmp.eq.s32.totalorder %s120, 0
      %s123 = sadd.s32 %s122, 1
      %s124 = scalar_select %p121, %s122, %s123
      %p127 = pneg %p121
      %p128 = scmp.eq.s32.totalorder %s16, 1
      %p129 = por %p127, %p128
      %p130 = scmp.ne.s32.totalorder %s122, %s125
      %p131 = scmp.eq.s32.totalorder %s16, 0
      %p132 = por %p130, %p131
      %p133 = scmp.ne.s32.totalorder %s122, %s125
      %p134 = scmp.eq.s32.totalorder %s21, 1
      %p135 = por %p133, %p134
      %p136 = scmp.ne.s32.totalorder %s125, %s126
      %p137 = scmp.eq.s32.totalorder %s21, 0
      %p138 = por %p136, %p137
      %p139 = scmp.ne.s32.totalorder %s125, %s126
      %p140 = scmp.eq.s32.totalorder %s22, 1
      %p141 = por %p139, %p140
      %p143 = scmp.ne.s32.totalorder %s126, %s142
      %p144 = scmp.eq.s32.totalorder %s22, 0
      %p145 = por %p143, %p144
      %p146 = scmp.le.s32.totalorder 1, %s16
      %p147 = scmp.lt.s32.totalorder %s16, 3
      %p148 = pnand %p146, %p147
      %p149 = pneg %p148
      // Predicated region
      $region9: #{tpu_custom_call.1} parent=5 // pred_check
        _
      $region10: #{tpu_custom_call.1} parent=5 // pred_check_branch
        %151 = sbr.rel (%p148) target = $region12
      $region11: #{tpu_custom_call.1} parent=5 // pred_region
        %s152 = ssub.s32 %s16, 1
      $region12: #{tpu_custom_call.1} parent=5 // pred_fallthru
        _
      %p153 = scmp.lt.s32.totalorder %s16, 2
      // Predicated region
      $region13: #{tpu_custom_call.1} parent=5 // pred_check
        %p154 = pneg %p153
      $region14: #{tpu_custom_call.1} parent=5 // pred_check_branch
        %156 = sbr.rel (%p154) target = $region16
      $region15: #{tpu_custom_call.1} parent=5 // pred_region
        // Predicated region
        $region17: #{tpu_custom_call.1} parent=15 // pred_check
          %p157 = pneg %p48
        $region18: #{tpu_custom_call.1} parent=15 // pred_check_branch
          %159 = sbr.rel (%p157) target = $region20
        $region19: #{tpu_custom_call.1} parent=15 // pred_region
          %p160 = scmp.lt.s32.totalorder %s23, 1
          %s161 = scalar_select %p160, %s23, 1
          %s162 = smul.addr %s161, 320
          %s163 = smul.addr %s162, 4
          %s164 = scalar_lea.vmem %s0, %s163
        $region20: #{tpu_custom_call.1} parent=15 // pred_fallthru
          _
        // Predicated region
        $region21: #{tpu_custom_call.1} parent=15 // pred_check
          %p165 = pneg %p76
        $region22: #{tpu_custom_call.1} parent=15 // pred_check_branch
          %167 = sbr.rel (%p165) target = $region24
        $region23: #{tpu_custom_call.1} parent=15 // pred_region
          %s168 = smul.u32 2, %s24
          %p169 = scmp.lt.s32.totalorder %s23, 1
          %s170 = scalar_select %p169, %s23, 1
          %p171 = scmp.lt.s32.totalorder %s168, 1
          %s172 = scalar_select %p171, %s168, 1
          %s173 = smul.addr %s170, 136
          %s174 = sadd.s32 %s172, %s173
          %s175 = smul.addr %s174, 4
          %s176 = scalar_lea.vmem %s1, %s175
          %s177 = smul.u32 2, %s24
        $region24: #{tpu_custom_call.1} parent=15 // pred_fallthru
          _
      $region16: #{tpu_custom_call.1} parent=5 // pred_fallthru
        _
      %p178 = scmp.le.s32.totalorder 1, %s16
      %p179 = scmp.lt.s32.totalorder %s16, 3
      %p180 = pnand %p178, %p179
      %p181 = pneg %p180
      // Predicated region
      $region25: #{tpu_custom_call.1} parent=5 // pred_check
        _
      $region26: #{tpu_custom_call.1} parent=5 // pred_check_branch
        %183 = sbr.rel (%p180) target = $region28
      $region27: #{tpu_custom_call.1} parent=5 // pred_region
        %s184 = ssub.s32 %s16, 1
        %p185 = scmp.lt.s32.totalorder %s25, 1
        %s186 = scalar_select %p185, %s25, 1
        %s187 = smul.addr %s186, 320
        %s188 = smul.addr %s187, 4
        %s189 = scalar_lea.vmem %s0, %s188
        %p190 = pneg %p54
        %p191 = pneg %p51
        %s192 = smul.u32 2, %s26
        %p193 = scmp.lt.s32.totalorder %s25, 1
        %s194 = scalar_select %p193, %s25, 1
        %p195 = scmp.lt.s32.totalorder %s192, 1
        %s196 = scalar_select %p195, %s192, 1
        %s197 = smul.addr %s194, 136
        %s198 = sadd.s32 %s196, %s197
        %s199 = smul.addr %s198, 4
        %s200 = scalar_lea.vmem %s1, %s199
        %p201 = pneg %p82
        %p202 = pneg %p79
        %p203 = pneg %p110
        %p204 = pneg %p107
        %s205 = sand.u32 %s97, 1
        %s206 = scalar_lea.sflag [#allocation3], %s205
        %s207 = sand.u32 %s97, 1
        %s208 = smul.addr %s207, 512
        %s209 = scalar_lea.vmem [#allocation2], %s208
        %p210 = pneg %p138
        %p211 = pneg %p135
        %s212 = sand.u32 %s125, 1
        %s213 = scalar_lea.sflag [#allocation5], %s212
        %s214 = sand.u32 %s125, 1
        %s215 = smul.addr %s214, 4
        %s216 = scalar_lea.vmem [#allocation4], %s215
        %p217 = scmp.lt.s32.totalorder %s25, 1
        %s218 = scalar_select %p217, %s25, 1
        %s219 = smul.addr %s218, 320
        %s220 = smul.addr %s219, 4
        %s221 = scalar_lea.vmem %s0, %s220
        %s222 = smul.u32 2, %s26
        %p223 = scmp.lt.s32.totalorder %s25, 1
        %s224 = scalar_select %p223, %s25, 1
        %p225 = scmp.lt.s32.totalorder %s222, 1
        %s226 = scalar_select %p225, %s222, 1
        %s227 = smul.addr %s224, 136
        %s228 = sadd.s32 %s226, %s227
        %s229 = smul.addr %s228, 4
        %s230 = scalar_lea.vmem %s1, %s229
        %s231 = smul.u32 2, %s26
        %s232 = smul.u32 2, %s26
        %v234 = vld [vmem:[%s221] sm:$0xff]
        %v235 = vld [vmem:[%s221 + $0x8] sm:$0xff]
        %v236 = vld [vmem:[%s221 + $0x10] sm:$0xf]
        %v237 = vld [vmem:[%s221 + $0x14] sm:$0xff]
        %v238 = vld [vmem:[%s221 + $0x1c] sm:$0xff]
        %v239 = vld [vmem:[%s221 + $0x24] sm:$0xf]
        %v240 = vld [vmem:[%s221 + $0x28] sm:$0xff]
        %v241 = vld [vmem:[%s221 + $0x30] sm:$0xff]
        %v242 = vld [vmem:[%s221 + $0x38] sm:$0xf]
        %v243 = vld [vmem:[%s221 + $0x3c] sm:$0xff]
        %v244 = vld [vmem:[%s221 + $0x44] sm:$0xff]
        %v245 = vld [vmem:[%s221 + $0x4c] sm:$0xf]
        %v246 = vld [vmem:[%s221 + $0x50] sm:$0xff]
        %v247 = vld [vmem:[%s221 + $0x58] sm:$0xff]
        %v248 = vld [vmem:[%s221 + $0x60] sm:$0xf]
        %v249 = vld [vmem:[%s221 + $0x64] sm:$0xff]
        %v250 = vld [vmem:[%s221 + $0x6c] sm:$0xff]
        %v251 = vld [vmem:[%s221 + $0x74] sm:$0xf]
        %v252 = vld [vmem:[%s221 + $0x78] sm:$0xff]
        %v253 = vld [vmem:[%s221 + $0x80] sm:$0xff]
        %v254 = vld [vmem:[%s221 + $0x88] sm:$0xf]
        %v255 = vld [vmem:[%s221 + $0x8c] sm:$0xff]
        %v256 = vld [vmem:[%s221 + $0x94] sm:$0xff]
        %v257 = vld [vmem:[%s221 + $0x9c] sm:$0xf]
        %v258 = vld [vmem:[%s221 + $0xa0] sm:$0xff]
        %v259 = vld [vmem:[%s221 + $0xa8] sm:$0xff]
        %v260 = vld [vmem:[%s221 + $0xb0] sm:$0xf]
        %v261 = vld [vmem:[%s221 + $0xb4] sm:$0xff]
        %v262 = vld [vmem:[%s221 + $0xbc] sm:$0xff]
        %v263 = vld [vmem:[%s221 + $0xc4] sm:$0xf]
        %v264 = vld [vmem:[%s221 + $0xc8] sm:$0xff]
        %v265 = vld [vmem:[%s221 + $0xd0] sm:$0xff]
        %v266 = vld [vmem:[%s221 + $0xd8] sm:$0xf]
        %v267 = vld [vmem:[%s221 + $0xdc] sm:$0xff]
        %v268 = vld [vmem:[%s221 + $0xe4] sm:$0xff]
        %v269 = vld [vmem:[%s221 + $0xec] sm:$0xf]
        %v270 = vld [vmem:[%s221 + $0xf0] sm:$0xff]
        %v271 = vld [vmem:[%s221 + $0xf8] sm:$0xff]
        %v272 = vld [vmem:[%s221 + $0x100] sm:$0xf]
        %v273 = vld [vmem:[%s221 + $0x104] sm:$0xff]
        %v274 = vld [vmem:[%s221 + $0x10c] sm:$0xff]
        %v275 = vld [vmem:[%s221 + $0x114] sm:$0xf]
        %v276 = vld [vmem:[%s221 + $0x118] sm:$0xff]
        %v277 = vld [vmem:[%s221 + $0x120] sm:$0xff]
        %v278 = vld [vmem:[%s221 + $0x128] sm:$0xf]
        %v279 = vld [vmem:[%s221 + $0x12c] sm:$0xff]
        %v280 = vld [vmem:[%s221 + $0x134] sm:$0xff]
        %v281 = vld [vmem:[%s221 + $0x13c] sm:$0xf]
        %v282 = vld [vmem:[%s221 + $0x140] sm:$0xff]
        %v283 = vld [vmem:[%s221 + $0x148] sm:$0xff]
        %v284 = vld [vmem:[%s221 + $0x150] sm:$0xf]
        %v285 = vld [vmem:[%s221 + $0x154] sm:$0xff]
        %v286 = vld [vmem:[%s221 + $0x15c] sm:$0xff]
        %v287 = vld [vmem:[%s221 + $0x164] sm:$0xf]
        %v288 = vld [vmem:[%s221 + $0x168] sm:$0xff]
        %v289 = vld [vmem:[%s221 + $0x170] sm:$0xff]
        %v290 = vld [vmem:[%s221 + $0x178] sm:$0xf]
        %v291 = vld [vmem:[%s221 + $0x17c] sm:$0xff]
        %v292 = vld [vmem:[%s221 + $0x184] sm:$0xff]
        %v293 = vld [vmem:[%s221 + $0x18c] sm:$0xf]
        %v294 = vld [vmem:[%s221 + $0x190] sm:$0xff]
        %v295 = vld [vmem:[%s221 + $0x198] sm:$0xff]
        %v296 = vld [vmem:[%s221 + $0x1a0] sm:$0xf]
        %v297 = vld [vmem:[%s221 + $0x1a4] sm:$0xff]
        %v298 = vld [vmem:[%s221 + $0x1ac] sm:$0xff]
        %v299 = vld [vmem:[%s221 + $0x1b4] sm:$0xf]
        %v300 = vld [vmem:[%s221 + $0x1b8] sm:$0xff]
        %v301 = vld [vmem:[%s221 + $0x1c0] sm:$0xff]
        %v302 = vld [vmem:[%s221 + $0x1c8] sm:$0xf]
        %v303 = vld [vmem:[%s221 + $0x1cc] sm:$0xff]
        %v304 = vld [vmem:[%s221 + $0x1d4] sm:$0xff]
        %v305 = vld [vmem:[%s221 + $0x1dc] sm:$0xf]
        %v306 = vld [vmem:[%s221 + $0x1e0] sm:$0xff]
        %v307 = vld [vmem:[%s221 + $0x1e8] sm:$0xff]
        %v308 = vld [vmem:[%s221 + $0x1f0] sm:$0xf]
        %v309 = vld [vmem:[%s221 + $0x1f4] sm:$0xff]
        %v310 = vld [vmem:[%s221 + $0x1fc] sm:$0xff]
        %v311 = vld [vmem:[%s221 + $0x204] sm:$0xf]
        %v312 = vld [vmem:[%s221 + $0x208] sm:$0xff]
        %v313 = vld [vmem:[%s221 + $0x210] sm:$0xff]
        %v314 = vld [vmem:[%s221 + $0x218] sm:$0xf]
        %v315 = vld [vmem:[%s221 + $0x21c] sm:$0xff]
        %v316 = vld [vmem:[%s221 + $0x224] sm:$0xff]
        %v317 = vld [vmem:[%s221 + $0x22c] sm:$0xf]
        %v318 = vld [vmem:[%s221 + $0x230] sm:$0xff]
        %v319 = vld [vmem:[%s221 + $0x238] sm:$0xff]
        %v320 = vld [vmem:[%s221 + $0x240] sm:$0xf]
        %v321 = vld [vmem:[%s221 + $0x244] sm:$0xff]
        %v322 = vld [vmem:[%s221 + $0x24c] sm:$0xff]
        %v323 = vld [vmem:[%s221 + $0x254] sm:$0xf]
        %v324 = vld [vmem:[%s221 + $0x258] sm:$0xff]
        %v325 = vld [vmem:[%s221 + $0x260] sm:$0xff]
        %v326 = vld [vmem:[%s221 + $0x268] sm:$0xf]
        %v327 = vld [vmem:[%s221 + $0x26c] sm:$0xff]
        %v328 = vld [vmem:[%s221 + $0x274] sm:$0xff]
        %v329 = vld [vmem:[%s221 + $0x27c] sm:$0xf]
        %v330 = vld [vmem:[%s221 + $0x280] sm:$0xff]
        %v331 = vld [vmem:[%s221 + $0x288] sm:$0xff]
        %v332 = vld [vmem:[%s221 + $0x290] sm:$0xf]
        %v333 = vld [vmem:[%s221 + $0x294] sm:$0xff]
        %v334 = vld [vmem:[%s221 + $0x29c] sm:$0xff]
        %v335 = vld [vmem:[%s221 + $0x2a4] sm:$0xf]
        %v336 = vld [vmem:[%s221 + $0x2a8] sm:$0xff]
        %v337 = vld [vmem:[%s221 + $0x2b0] sm:$0xff]
        %v338 = vld [vmem:[%s221 + $0x2b8] sm:$0xf]
        %v339 = vld [vmem:[%s221 + $0x2bc] sm:$0xff]
        %v340 = vld [vmem:[%s221 + $0x2c4] sm:$0xff]
        %v341 = vld [vmem:[%s221 + $0x2cc] sm:$0xf]
        %v342 = vld [vmem:[%s221 + $0x2d0] sm:$0xff]
        %v343 = vld [vmem:[%s221 + $0x2d8] sm:$0xff]
        %v344 = vld [vmem:[%s221 + $0x2e0] sm:$0xf]
        %v345 = vld [vmem:[%s221 + $0x2e4] sm:$0xff]
        %v346 = vld [vmem:[%s221 + $0x2ec] sm:$0xff]
        %v347 = vld [vmem:[%s221 + $0x2f4] sm:$0xf]
        %v348 = vld [vmem:[%s221 + $0x2f8] sm:$0xff]
        %v349 = vld [vmem:[%s221 + $0x300] sm:$0xff]
        %v350 = vld [vmem:[%s221 + $0x308] sm:$0xf]
        %v351 = vld [vmem:[%s221 + $0x30c] sm:$0xff]
        %v352 = vld [vmem:[%s221 + $0x314] sm:$0xff]
        %v353 = vld [vmem:[%s221 + $0x31c] sm:$0xf]
        %v354 = vld [vmem:[%s221 + $0x320] sm:$0xff]
        %v355 = vld [vmem:[%s221 + $0x328] sm:$0xff]
        %v356 = vld [vmem:[%s221 + $0x330] sm:$0xf]
        %v357 = vld [vmem:[%s221 + $0x334] sm:$0xff]
        %v358 = vld [vmem:[%s221 + $0x33c] sm:$0xff]
        %v359 = vld [vmem:[%s221 + $0x344] sm:$0xf]
        %v360 = vld [vmem:[%s221 + $0x348] sm:$0xff]
        %v361 = vld [vmem:[%s221 + $0x350] sm:$0xff]
        %v362 = vld [vmem:[%s221 + $0x358] sm:$0xf]
        %v363 = vld [vmem:[%s221 + $0x35c] sm:$0xff]
        %v364 = vld [vmem:[%s221 + $0x364] sm:$0xff]
        %v365 = vld [vmem:[%s221 + $0x36c] sm:$0xf]
        %v366 = vld [vmem:[%s221 + $0x370] sm:$0xff]
        %v367 = vld [vmem:[%s221 + $0x378] sm:$0xff]
        %v368 = vld [vmem:[%s221 + $0x380] sm:$0xf]
        %v369 = vld [vmem:[%s221 + $0x384] sm:$0xff]
        %v370 = vld [vmem:[%s221 + $0x38c] sm:$0xff]
        %v371 = vld [vmem:[%s221 + $0x394] sm:$0xf]
        %v372 = vld [vmem:[%s221 + $0x398] sm:$0xff]
        %v373 = vld [vmem:[%s221 + $0x3a0] sm:$0xff]
        %v374 = vld [vmem:[%s221 + $0x3a8] sm:$0xf]
        %v375 = vld [vmem:[%s221 + $0x3ac] sm:$0xff]
        %v376 = vld [vmem:[%s221 + $0x3b4] sm:$0xff]
        %v377 = vld [vmem:[%s221 + $0x3bc] sm:$0xf]
        %v378 = vld [vmem:[%s221 + $0x3c0] sm:$0xff]
        %v379 = vld [vmem:[%s221 + $0x3c8] sm:$0xff]
        %v380 = vld [vmem:[%s221 + $0x3d0] sm:$0xf]
        %v381 = vld [vmem:[%s221 + $0x3d4] sm:$0xff]
        %v382 = vld [vmem:[%s221 + $0x3dc] sm:$0xff]
        %v383 = vld [vmem:[%s221 + $0x3e4] sm:$0xf]
        %v384 = vld [vmem:[%s221 + $0x3e8] sm:$0xff]
        %v385 = vld [vmem:[%s221 + $0x3f0] sm:$0xff]
        %v386 = vld [vmem:[%s221 + $0x3f8] sm:$0xf]
        %v387 = vld [vmem:[%s221 + $0x3fc] sm:$0xff]
        %v388 = vld [vmem:[%s221 + $0x404] sm:$0xff]
        %v389 = vld [vmem:[%s221 + $0x40c] sm:$0xf]
        %v390 = vld [vmem:[%s221 + $0x410] sm:$0xff]
        %v391 = vld [vmem:[%s221 + $0x418] sm:$0xff]
        %v392 = vld [vmem:[%s221 + $0x420] sm:$0xf]
        %v393 = vld [vmem:[%s221 + $0x424] sm:$0xff]
        %v394 = vld [vmem:[%s221 + $0x42c] sm:$0xff]
        %v395 = vld [vmem:[%s221 + $0x434] sm:$0xf]
        %v396 = vld [vmem:[%s221 + $0x438] sm:$0xff]
        %v397 = vld [vmem:[%s221 + $0x440] sm:$0xff]
        %v398 = vld [vmem:[%s221 + $0x448] sm:$0xf]
        %v399 = vld [vmem:[%s221 + $0x44c] sm:$0xff]
        %v400 = vld [vmem:[%s221 + $0x454] sm:$0xff]
        %v401 = vld [vmem:[%s221 + $0x45c] sm:$0xf]
        %v402 = vld [vmem:[%s221 + $0x460] sm:$0xff]
        %v403 = vld [vmem:[%s221 + $0x468] sm:$0xff]
        %v404 = vld [vmem:[%s221 + $0x470] sm:$0xf]
        %v405 = vld [vmem:[%s221 + $0x474] sm:$0xff]
        %v406 = vld [vmem:[%s221 + $0x47c] sm:$0xff]
        %v407 = vld [vmem:[%s221 + $0x484] sm:$0xf]
        %v408 = vld [vmem:[%s221 + $0x488] sm:$0xff]
        %v409 = vld [vmem:[%s221 + $0x490] sm:$0xff]
        %v410 = vld [vmem:[%s221 + $0x498] sm:$0xf]
        %v411 = vld [vmem:[%s221 + $0x49c] sm:$0xff]
        %v412 = vld [vmem:[%s221 + $0x4a4] sm:$0xff]
        %v413 = vld [vmem:[%s221 + $0x4ac] sm:$0xf]
        %v414 = vld [vmem:[%s221 + $0x4b0] sm:$0xff]
        %v415 = vld [vmem:[%s221 + $0x4b8] sm:$0xff]
        %v416 = vld [vmem:[%s221 + $0x4c0] sm:$0xf]
        %v417 = vld [vmem:[%s221 + $0x4c4] sm:$0xff]
        %v418 = vld [vmem:[%s221 + $0x4cc] sm:$0xff]
        %v419 = vld [vmem:[%s221 + $0x4d4] sm:$0xf]
        %v420 = vld [vmem:[%s221 + $0x4d8] sm:$0xff]
        %v421 = vld [vmem:[%s221 + $0x4e0] sm:$0xff]
        %v422 = vld [vmem:[%s221 + $0x4e8] sm:$0xf]
        %v423 = vld [vmem:[%s221 + $0x4ec] sm:$0xff]
        %v424 = vld [vmem:[%s221 + $0x4f4] sm:$0xff]
        %v425 = vld [vmem:[%s221 + $0x4fc] sm:$0xf]
        %v426 = vld [vmem:[%s230] sm:$0xff]
        %v427 = vld [vmem:[%s230 + $0x8] sm:$0xff]
        %v428 = vld [vmem:[%s230 + $0x10] sm:$0xff]
        %v429 = vld [vmem:[%s230 + $0x18] sm:$0xff]
        %v430 = vld [vmem:[%s230 + $0x20] sm:$0xff]
        %v431 = vld [vmem:[%s230 + $0x28] sm:$0xff]
        %v432 = vld [vmem:[%s230 + $0x30] sm:$0xff]
        %v433 = vld [vmem:[%s230 + $0x38] sm:$0xff]
        %v434 = vld [vmem:[%s230 + $0x40] sm:$0xff]
        %v435 = vld [vmem:[%s230 + $0x48] sm:$0xff]
        %v436 = vld [vmem:[%s230 + $0x50] sm:$0xff]
        %v437 = vld [vmem:[%s230 + $0x58] sm:$0xff]
        %v438 = vld [vmem:[%s230 + $0x60] sm:$0xff]
        %v439 = vld [vmem:[%s230 + $0x68] sm:$0xff]
        %v440 = vld [vmem:[%s230 + $0x70] sm:$0xff]
        %v441 = vld [vmem:[%s230 + $0x78] sm:$0xff]
        %v442 = vld [vmem:[%s230 + $0x80] sm:$0xff]
        %v443 = vld [vmem:[%s230 + $0x88] sm:$0xff]
        %v444 = vld [vmem:[%s230 + $0x90] sm:$0xff]
        %v445 = vld [vmem:[%s230 + $0x98] sm:$0xff]
        %v446 = vld [vmem:[%s230 + $0xa0] sm:$0xff]
        %v447 = vld [vmem:[%s230 + $0xa8] sm:$0xff]
        %v448 = vld [vmem:[%s230 + $0xb0] sm:$0xff]
        %v449 = vld [vmem:[%s230 + $0xb8] sm:$0xff]
        %v450 = vld [vmem:[%s230 + $0xc0] sm:$0xff]
        %v451 = vld [vmem:[%s230 + $0xc8] sm:$0xff]
        %v452 = vld [vmem:[%s230 + $0xd0] sm:$0xff]
        %v453 = vld [vmem:[%s230 + $0xd8] sm:$0xff]
        %v454 = vld [vmem:[%s230 + $0xe0] sm:$0xff]
        %v455 = vld [vmem:[%s230 + $0xe8] sm:$0xff]
        %v456 = vld [vmem:[%s230 + $0xf0] sm:$0xff]
        %v457 = vld [vmem:[%s230 + $0xf8] sm:$0xff]
        %v458 = vld [vmem:[%s230 + $0x100] sm:$0xff]
        %v459 = vld [vmem:[%s230 + $0x108] sm:$0xff]
        %v460 = vld [vmem:[%s230 + $0x110] sm:$0xff]
        %v461 = vld [vmem:[%s230 + $0x118] sm:$0xff]
        %v462 = vld [vmem:[%s230 + $0x120] sm:$0xff]
        %v463 = vld [vmem:[%s230 + $0x128] sm:$0xff]
        %v464 = vld [vmem:[%s230 + $0x130] sm:$0xff]
        %v465 = vld [vmem:[%s230 + $0x138] sm:$0xff]
        %v466 = vld [vmem:[%s230 + $0x140] sm:$0xff]
        %v467 = vld [vmem:[%s230 + $0x148] sm:$0xff]
        %v468 = vld [vmem:[%s230 + $0x150] sm:$0xff]
        %v469 = vld [vmem:[%s230 + $0x158] sm:$0xff]
        %v470 = vld [vmem:[%s230 + $0x160] sm:$0xff]
        %v471 = vld [vmem:[%s230 + $0x168] sm:$0xff]
        %v472 = vld [vmem:[%s230 + $0x170] sm:$0xff]
        %v473 = vld [vmem:[%s230 + $0x178] sm:$0xff]
        %v474 = vld [vmem:[%s230 + $0x180] sm:$0xff]
        %v475 = vld [vmem:[%s230 + $0x188] sm:$0xff]
        %v476 = vld [vmem:[%s230 + $0x190] sm:$0xff]
        %v477 = vld [vmem:[%s230 + $0x198] sm:$0xff]
        %v478 = vld [vmem:[%s230 + $0x1a0] sm:$0xff]
        %v479 = vld [vmem:[%s230 + $0x1a8] sm:$0xff]
        %v480 = vld [vmem:[%s230 + $0x1b0] sm:$0xff]
        %v481 = vld [vmem:[%s230 + $0x1b8] sm:$0xff]
        %v482 = vld [vmem:[%s230 + $0x1c0] sm:$0xff]
        %v483 = vld [vmem:[%s230 + $0x1c8] sm:$0xff]
        %v484 = vld [vmem:[%s230 + $0x1d0] sm:$0xff]
        %v485 = vld [vmem:[%s230 + $0x1d8] sm:$0xff]
        %v486 = vld [vmem:[%s230 + $0x1e0] sm:$0xff]
        %v487 = vld [vmem:[%s230 + $0x1e8] sm:$0xff]
        %v488 = vld [vmem:[%s230 + $0x1f0] sm:$0xff]
        %v489 = vld [vmem:[%s230 + $0x1f8] sm:$0xff]
        %v490 = vld [vmem:[%s230 + $0x200] sm:$0xff]
        %v491 = vld [vmem:[%s230 + $0x208] sm:$0xff]
        %v492 = vld [vmem:[%s230 + $0x210] sm:$0xff]
        %v493 = vld [vmem:[%s230 + $0x218] sm:$0xff]
        %v686 = vunpack.c.l.b16 %v234
        %v687 = vunpack.c.h.b16 %v234
        %v688 = vunpack.c.l.b16 %v235
        %v689 = vunpack.c.h.b16 %v235
        %v690 = vunpack.c.l.b16 %v236
        %v691 = vunpack.c.l.b16 %v237
        %v692 = vunpack.c.h.b16 %v237
        %v693 = vunpack.c.l.b16 %v238
        %v694 = vunpack.c.h.b16 %v238
        %v695 = vunpack.c.l.b16 %v239
        %v696 = vunpack.c.l.b16 %v240
        %v697 = vunpack.c.h.b16 %v240
        %v698 = vunpack.c.l.b16 %v241
        %v699 = vunpack.c.h.b16 %v241
        %v700 = vunpack.c.l.b16 %v242
        %v701 = vunpack.c.l.b16 %v243
        %v702 = vunpack.c.h.b16 %v243
        %v703 = vunpack.c.l.b16 %v244
        %v704 = vunpack.c.h.b16 %v244
        %v705 = vunpack.c.l.b16 %v245
        %v706 = vunpack.c.l.b16 %v246
        %v707 = vunpack.c.h.b16 %v246
        %v708 = vunpack.c.l.b16 %v247
        %v709 = vunpack.c.h.b16 %v247
        %v710 = vunpack.c.l.b16 %v248
        %v711 = vunpack.c.l.b16 %v249
        %v712 = vunpack.c.h.b16 %v249
        %v713 = vunpack.c.l.b16 %v250
        %v714 = vunpack.c.h.b16 %v250
        %v715 = vunpack.c.l.b16 %v251
        %v716 = vunpack.c.l.b16 %v252
        %v717 = vunpack.c.h.b16 %v252
        %v718 = vunpack.c.l.b16 %v253
        %v719 = vunpack.c.h.b16 %v253
        %v720 = vunpack.c.l.b16 %v254
        %v721 = vunpack.c.l.b16 %v255
        %v722 = vunpack.c.h.b16 %v255
        %v723 = vunpack.c.l.b16 %v256
        %v724 = vunpack.c.h.b16 %v256
        %v725 = vunpack.c.l.b16 %v257
        %v726 = vunpack.c.l.b16 %v258
        %v727 = vunpack.c.h.b16 %v258
        %v728 = vunpack.c.l.b16 %v259
        %v729 = vunpack.c.h.b16 %v259
        %v730 = vunpack.c.l.b16 %v260
        %v731 = vunpack.c.l.b16 %v261
        %v732 = vunpack.c.h.b16 %v261
        %v733 = vunpack.c.l.b16 %v262
        %v734 = vunpack.c.h.b16 %v262
        %v735 = vunpack.c.l.b16 %v263
        %v736 = vunpack.c.l.b16 %v264
        %v737 = vunpack.c.h.b16 %v264
        %v738 = vunpack.c.l.b16 %v265
        %v739 = vunpack.c.h.b16 %v265
        %v740 = vunpack.c.l.b16 %v266
        %v741 = vunpack.c.l.b16 %v267
        %v742 = vunpack.c.h.b16 %v267
        %v743 = vunpack.c.l.b16 %v268
        %v744 = vunpack.c.h.b16 %v268
        %v745 = vunpack.c.l.b16 %v269
        %v746 = vunpack.c.l.b16 %v270
        %v747 = vunpack.c.h.b16 %v270
        %v748 = vunpack.c.l.b16 %v271
        %v749 = vunpack.c.h.b16 %v271
        %v750 = vunpack.c.l.b16 %v272
        %v751 = vunpack.c.l.b16 %v273
        %v752 = vunpack.c.h.b16 %v273
        %v753 = vunpack.c.l.b16 %v274
        %v754 = vunpack.c.h.b16 %v274
        %v755 = vunpack.c.l.b16 %v275
        %v756 = vunpack.c.l.b16 %v276
        %v757 = vunpack.c.h.b16 %v276
        %v758 = vunpack.c.l.b16 %v277
        %v759 = vunpack.c.h.b16 %v277
        %v760 = vunpack.c.l.b16 %v278
        %v761 = vunpack.c.l.b16 %v279
        %v762 = vunpack.c.h.b16 %v279
        %v763 = vunpack.c.l.b16 %v280
        %v764 = vunpack.c.h.b16 %v280
        %v765 = vunpack.c.l.b16 %v281
        %v766 = vunpack.c.l.b16 %v282
        %v767 = vunpack.c.h.b16 %v282
        %v768 = vunpack.c.l.b16 %v283
        %v769 = vunpack.c.h.b16 %v283
        %v770 = vunpack.c.l.b16 %v284
        %v771 = vunpack.c.l.b16 %v285
        %v772 = vunpack.c.h.b16 %v285
        %v773 = vunpack.c.l.b16 %v286
        %v774 = vunpack.c.h.b16 %v286
        %v775 = vunpack.c.l.b16 %v287
        %v776 = vunpack.c.l.b16 %v288
        %v777 = vunpack.c.h.b16 %v288
        %v778 = vunpack.c.l.b16 %v289
        %v779 = vunpack.c.h.b16 %v289
        %v780 = vunpack.c.l.b16 %v290
        %v781 = vunpack.c.l.b16 %v291
        %v782 = vunpack.c.h.b16 %v291
        %v783 = vunpack.c.l.b16 %v292
        %v784 = vunpack.c.h.b16 %v292
        %v785 = vunpack.c.l.b16 %v293
        %v786 = vunpack.c.l.b16 %v294
        %v787 = vunpack.c.h.b16 %v294
        %v788 = vunpack.c.l.b16 %v295
        %v789 = vunpack.c.h.b16 %v295
        %v790 = vunpack.c.l.b16 %v296
        %v791 = vunpack.c.l.b16 %v297
        %v792 = vunpack.c.h.b16 %v297
        %v793 = vunpack.c.l.b16 %v298
        %v794 = vunpack.c.h.b16 %v298
        %v795 = vunpack.c.l.b16 %v299
        %v796 = vunpack.c.l.b16 %v300
        %v797 = vunpack.c.h.b16 %v300
        %v798 = vunpack.c.l.b16 %v301
        %v799 = vunpack.c.h.b16 %v301
        %v800 = vunpack.c.l.b16 %v302
        %v801 = vunpack.c.l.b16 %v303
        %v802 = vunpack.c.h.b16 %v303
        %v803 = vunpack.c.l.b16 %v304
        %v804 = vunpack.c.h.b16 %v304
        %v805 = vunpack.c.l.b16 %v305
        %v806 = vunpack.c.l.b16 %v306
        %v807 = vunpack.c.h.b16 %v306
        %v808 = vunpack.c.l.b16 %v307
        %v809 = vunpack.c.h.b16 %v307
        %v810 = vunpack.c.l.b16 %v308
        %v811 = vunpack.c.l.b16 %v309
        %v812 = vunpack.c.h.b16 %v309
        %v813 = vunpack.c.l.b16 %v310
        %v814 = vunpack.c.h.b16 %v310
        %v815 = vunpack.c.l.b16 %v311
        %v816 = vunpack.c.l.b16 %v312
        %v817 = vunpack.c.h.b16 %v312
        %v818 = vunpack.c.l.b16 %v313
        %v819 = vunpack.c.h.b16 %v313
        %v820 = vunpack.c.l.b16 %v314
        %v821 = vunpack.c.l.b16 %v315
        %v822 = vunpack.c.h.b16 %v315
        %v823 = vunpack.c.l.b16 %v316
        %v824 = vunpack.c.h.b16 %v316
        %v825 = vunpack.c.l.b16 %v317
        %v826 = vunpack.c.l.b16 %v318
        %v827 = vunpack.c.h.b16 %v318
        %v828 = vunpack.c.l.b16 %v319
        %v829 = vunpack.c.h.b16 %v319
        %v830 = vunpack.c.l.b16 %v320
        %v831 = vunpack.c.l.b16 %v321
        %v832 = vunpack.c.h.b16 %v321
        %v833 = vunpack.c.l.b16 %v322
        %v834 = vunpack.c.h.b16 %v322
        %v835 = vunpack.c.l.b16 %v323
        %v836 = vunpack.c.l.b16 %v324
        %v837 = vunpack.c.h.b16 %v324
        %v838 = vunpack.c.l.b16 %v325
        %v839 = vunpack.c.h.b16 %v325
        %v840 = vunpack.c.l.b16 %v326
        %v841 = vunpack.c.l.b16 %v327
        %v842 = vunpack.c.h.b16 %v327
        %v843 = vunpack.c.l.b16 %v328
        %v844 = vunpack.c.h.b16 %v328
        %v845 = vunpack.c.l.b16 %v329
        %v846 = vunpack.c.l.b16 %v330
        %v847 = vunpack.c.h.b16 %v330
        %v848 = vunpack.c.l.b16 %v331
        %v849 = vunpack.c.h.b16 %v331
        %v850 = vunpack.c.l.b16 %v332
        %v851 = vunpack.c.l.b16 %v333
        %v852 = vunpack.c.h.b16 %v333
        %v853 = vunpack.c.l.b16 %v334
        %v854 = vunpack.c.h.b16 %v334
        %v855 = vunpack.c.l.b16 %v335
        %v856 = vunpack.c.l.b16 %v336
        %v857 = vunpack.c.h.b16 %v336
        %v858 = vunpack.c.l.b16 %v337
        %v859 = vunpack.c.h.b16 %v337
        %v860 = vunpack.c.l.b16 %v338
        %v861 = vunpack.c.l.b16 %v339
        %v862 = vunpack.c.h.b16 %v339
        %v863 = vunpack.c.l.b16 %v340
        %v864 = vunpack.c.h.b16 %v340
        %v865 = vunpack.c.l.b16 %v341
        %v866 = vunpack.c.l.b16 %v342
        %v867 = vunpack.c.h.b16 %v342
        %v868 = vunpack.c.l.b16 %v343
        %v869 = vunpack.c.h.b16 %v343
        %v870 = vunpack.c.l.b16 %v344
        %v871 = vunpack.c.l.b16 %v345
        %v872 = vunpack.c.h.b16 %v345
        %v873 = vunpack.c.l.b16 %v346
        %v874 = vunpack.c.h.b16 %v346
        %v875 = vunpack.c.l.b16 %v347
        %v876 = vunpack.c.l.b16 %v348
        %v877 = vunpack.c.h.b16 %v348
        %v878 = vunpack.c.l.b16 %v349
        %v879 = vunpack.c.h.b16 %v349
        %v880 = vunpack.c.l.b16 %v350
        %v881 = vunpack.c.l.b16 %v351
        %v882 = vunpack.c.h.b16 %v351
        %v883 = vunpack.c.l.b16 %v352
        %v884 = vunpack.c.h.b16 %v352
        %v885 = vunpack.c.l.b16 %v353
        %v886 = vunpack.c.l.b16 %v354
        %v887 = vunpack.c.h.b16 %v354
        %v888 = vunpack.c.l.b16 %v355
        %v889 = vunpack.c.h.b16 %v355
        %v890 = vunpack.c.l.b16 %v356
        %v891 = vunpack.c.l.b16 %v357
        %v892 = vunpack.c.h.b16 %v357
        %v893 = vunpack.c.l.b16 %v358
        %v894 = vunpack.c.h.b16 %v358
        %v895 = vunpack.c.l.b16 %v359
        %v896 = vunpack.c.l.b16 %v360
        %v897 = vunpack.c.h.b16 %v360
        %v898 = vunpack.c.l.b16 %v361
        %v899 = vunpack.c.h.b16 %v361
        %v900 = vunpack.c.l.b16 %v362
        %v901 = vunpack.c.l.b16 %v363
        %v902 = vunpack.c.h.b16 %v363
        %v903 = vunpack.c.l.b16 %v364
        %v904 = vunpack.c.h.b16 %v364
        %v905 = vunpack.c.l.b16 %v365
        %v906 = vunpack.c.l.b16 %v366
        %v907 = vunpack.c.h.b16 %v366
        %v908 = vunpack.c.l.b16 %v367
        %v909 = vunpack.c.h.b16 %v367
        %v910 = vunpack.c.l.b16 %v368
        %v911 = vunpack.c.l.b16 %v369
        %v912 = vunpack.c.h.b16 %v369
        %v913 = vunpack.c.l.b16 %v370
        %v914 = vunpack.c.h.b16 %v370
        %v915 = vunpack.c.l.b16 %v371
        %v916 = vunpack.c.l.b16 %v372
        %v917 = vunpack.c.h.b16 %v372
        %v918 = vunpack.c.l.b16 %v373
        %v919 = vunpack.c.h.b16 %v373
        %v920 = vunpack.c.l.b16 %v374
        %v921 = vunpack.c.l.b16 %v375
        %v922 = vunpack.c.h.b16 %v375
        %v923 = vunpack.c.l.b16 %v376
        %v924 = vunpack.c.h.b16 %v376
        %v925 = vunpack.c.l.b16 %v377
        %v926 = vunpack.c.l.b16 %v378
        %v927 = vunpack.c.h.b16 %v378
        %v928 = vunpack.c.l.b16 %v379
        %v929 = vunpack.c.h.b16 %v379
        %v930 = vunpack.c.l.b16 %v380
        %v931 = vunpack.c.l.b16 %v381
        %v932 = vunpack.c.h.b16 %v381
        %v933 = vunpack.c.l.b16 %v382
        %v934 = vunpack.c.h.b16 %v382
        %v935 = vunpack.c.l.b16 %v383
        %v936 = vunpack.c.l.b16 %v384
        %v937 = vunpack.c.h.b16 %v384
        %v938 = vunpack.c.l.b16 %v385
        %v939 = vunpack.c.h.b16 %v385
        %v940 = vunpack.c.l.b16 %v386
        %v941 = vunpack.c.l.b16 %v387
        %v942 = vunpack.c.h.b16 %v387
        %v943 = vunpack.c.l.b16 %v388
        %v944 = vunpack.c.h.b16 %v388
        %v945 = vunpack.c.l.b16 %v389
        %v946 = vunpack.c.l.b16 %v390
        %v947 = vunpack.c.h.b16 %v390
        %v948 = vunpack.c.l.b16 %v391
        %v949 = vunpack.c.h.b16 %v391
        %v950 = vunpack.c.l.b16 %v392
        %v951 = vunpack.c.l.b16 %v393
        %v952 = vunpack.c.h.b16 %v393
        %v953 = vunpack.c.l.b16 %v394
        %v954 = vunpack.c.h.b16 %v394
        %v955 = vunpack.c.l.b16 %v395
        %v956 = vunpack.c.l.b16 %v396
        %v957 = vunpack.c.h.b16 %v396
        %v958 = vunpack.c.l.b16 %v397
        %v959 = vunpack.c.h.b16 %v397
        %v960 = vunpack.c.l.b16 %v398
        %v961 = vunpack.c.l.b16 %v399
        %v962 = vunpack.c.h.b16 %v399
        %v963 = vunpack.c.l.b16 %v400
        %v964 = vunpack.c.h.b16 %v400
        %v965 = vunpack.c.l.b16 %v401
        %v966 = vunpack.c.l.b16 %v402
        %v967 = vunpack.c.h.b16 %v402
        %v968 = vunpack.c.l.b16 %v403
        %v969 = vunpack.c.h.b16 %v403
        %v970 = vunpack.c.l.b16 %v404
        %v971 = vunpack.c.l.b16 %v405
        %v972 = vunpack.c.h.b16 %v405
        %v973 = vunpack.c.l.b16 %v406
        %v974 = vunpack.c.h.b16 %v406
        %v975 = vunpack.c.l.b16 %v407
        %v976 = vunpack.c.l.b16 %v408
        %v977 = vunpack.c.h.b16 %v408
        %v978 = vunpack.c.l.b16 %v409
        %v979 = vunpack.c.h.b16 %v409
        %v980 = vunpack.c.l.b16 %v410
        %v981 = vunpack.c.l.b16 %v411
        %v982 = vunpack.c.h.b16 %v411
        %v983 = vunpack.c.l.b16 %v412
        %v984 = vunpack.c.h.b16 %v412
        %v985 = vunpack.c.l.b16 %v413
        %v986 = vunpack.c.l.b16 %v414
        %v987 = vunpack.c.h.b16 %v414
        %v988 = vunpack.c.l.b16 %v415
        %v989 = vunpack.c.h.b16 %v415
        %v990 = vunpack.c.l.b16 %v416
        %v991 = vunpack.c.l.b16 %v417
        %v992 = vunpack.c.h.b16 %v417
        %v993 = vunpack.c.l.b16 %v418
        %v994 = vunpack.c.h.b16 %v418
        %v995 = vunpack.c.l.b16 %v419
        %v996 = vunpack.c.l.b16 %v420
        %v997 = vunpack.c.h.b16 %v420
        %v998 = vunpack.c.l.b16 %v421
        %v999 = vunpack.c.h.b16 %v421
        %v1000 = vunpack.c.l.b16 %v422
        %v1001 = vunpack.c.l.b16 %v423
        %v1002 = vunpack.c.h.b16 %v423
        %v1003 = vunpack.c.l.b16 %v424
        %v1004 = vunpack.c.h.b16 %v424
        %v1005 = vunpack.c.l.b16 %v425
        %v1006 = vpack.c.b16 %v691, %v686
        %v1007 = vpack.c.b16 %v692, %v687
        %v1008 = vpack.c.b16 %v693, %v688
        %v1009 = vpack.c.b16 %v694, %v689
        %v1010 = vpack.c.b16 %v695, %v690
        %v1011 = vpack.c.b16 %v701, %v696
        %v1012 = vpack.c.b16 %v702, %v697
        %v1013 = vpack.c.b16 %v703, %v698
        %v1014 = vpack.c.b16 %v704, %v699
        %v1015 = vpack.c.b16 %v705, %v700
        %v1016 = vpack.c.b16 %v711, %v706
        %v1017 = vpack.c.b16 %v712, %v707
        %v1018 = vpack.c.b16 %v713, %v708
        %v1019 = vpack.c.b16 %v714, %v709
        %v1020 = vpack.c.b16 %v715, %v710
        %v1021 = vpack.c.b16 %v721, %v716
        %v1022 = vpack.c.b16 %v722, %v717
        %v1023 = vpack.c.b16 %v723, %v718
        %v1024 = vpack.c.b16 %v724, %v719
        %v1025 = vpack.c.b16 %v725, %v720
        %v1026 = vpack.c.b16 %v731, %v726
        %v1027 = vpack.c.b16 %v732, %v727
        %v1028 = vpack.c.b16 %v733, %v728
        %v1029 = vpack.c.b16 %v734, %v729
        %v1030 = vpack.c.b16 %v735, %v730
        %v1031 = vpack.c.b16 %v741, %v736
        %v1032 = vpack.c.b16 %v742, %v737
        %v1033 = vpack.c.b16 %v743, %v738
        %v1034 = vpack.c.b16 %v744, %v739
        %v1035 = vpack.c.b16 %v745, %v740
        %v1036 = vpack.c.b16 %v751, %v746
        %v1037 = vpack.c.b16 %v752, %v747
        %v1038 = vpack.c.b16 %v753, %v748
        %v1039 = vpack.c.b16 %v754, %v749
        %v1040 = vpack.c.b16 %v755, %v750
        %v1041 = vpack.c.b16 %v761, %v756
        %v1042 = vpack.c.b16 %v762, %v757
        %v1043 = vpack.c.b16 %v763, %v758
        %v1044 = vpack.c.b16 %v764, %v759
        %v1045 = vpack.c.b16 %v765, %v760
        %v1046 = vpack.c.b16 %v771, %v766
        %v1047 = vpack.c.b16 %v772, %v767
        %v1048 = vpack.c.b16 %v773, %v768
        %v1049 = vpack.c.b16 %v774, %v769
        %v1050 = vpack.c.b16 %v775, %v770
        %v1051 = vpack.c.b16 %v781, %v776
        %v1052 = vpack.c.b16 %v782, %v777
        %v1053 = vpack.c.b16 %v783, %v778
        %v1054 = vpack.c.b16 %v784, %v779
        %v1055 = vpack.c.b16 %v785, %v780
        %v1056 = vpack.c.b16 %v791, %v786
        %v1057 = vpack.c.b16 %v792, %v787
        %v1058 = vpack.c.b16 %v793, %v788
        %v1059 = vpack.c.b16 %v794, %v789
        %v1060 = vpack.c.b16 %v795, %v790
        %v1061 = vpack.c.b16 %v801, %v796
        %v1062 = vpack.c.b16 %v802, %v797
        %v1063 = vpack.c.b16 %v803, %v798
        %v1064 = vpack.c.b16 %v804, %v799
        %v1065 = vpack.c.b16 %v805, %v800
        %v1066 = vpack.c.b16 %v811, %v806
        %v1067 = vpack.c.b16 %v812, %v807
        %v1068 = vpack.c.b16 %v813, %v808
        %v1069 = vpack.c.b16 %v814, %v809
        %v1070 = vpack.c.b16 %v815, %v810
        %v1071 = vpack.c.b16 %v821, %v816
        %v1072 = vpack.c.b16 %v822, %v817
        %v1073 = vpack.c.b16 %v823, %v818
        %v1074 = vpack.c.b16 %v824, %v819
        %v1075 = vpack.c.b16 %v825, %v820
        %v1076 = vpack.c.b16 %v831, %v826
        %v1077 = vpack.c.b16 %v832, %v827
        %v1078 = vpack.c.b16 %v833, %v828
        %v1079 = vpack.c.b16 %v834, %v829
        %v1080 = vpack.c.b16 %v835, %v830
        %v1081 = vpack.c.b16 %v841, %v836
        %v1082 = vpack.c.b16 %v842, %v837
        %v1083 = vpack.c.b16 %v843, %v838
        %v1084 = vpack.c.b16 %v844, %v839
        %v1085 = vpack.c.b16 %v845, %v840
        %v1086 = vpack.c.b16 %v851, %v846
        %v1087 = vpack.c.b16 %v852, %v847
        %v1088 = vpack.c.b16 %v853, %v848
        %v1089 = vpack.c.b16 %v854, %v849
        %v1090 = vpack.c.b16 %v855, %v850
        %v1091 = vpack.c.b16 %v861, %v856
        %v1092 = vpack.c.b16 %v862, %v857
        %v1093 = vpack.c.b16 %v863, %v858
        %v1094 = vpack.c.b16 %v864, %v859
        %v1095 = vpack.c.b16 %v865, %v860
        %v1096 = vpack.c.b16 %v871, %v866
        %v1097 = vpack.c.b16 %v872, %v867
        %v1098 = vpack.c.b16 %v873, %v868
        %v1099 = vpack.c.b16 %v874, %v869
        %v1100 = vpack.c.b16 %v875, %v870
        %v1101 = vpack.c.b16 %v881, %v876
        %v1102 = vpack.c.b16 %v882, %v877
        %v1103 = vpack.c.b16 %v883, %v878
        %v1104 = vpack.c.b16 %v884, %v879
        %v1105 = vpack.c.b16 %v885, %v880
        %v1106 = vpack.c.b16 %v891, %v886
        %v1107 = vpack.c.b16 %v892, %v887
        %v1108 = vpack.c.b16 %v893, %v888
        %v1109 = vpack.c.b16 %v894, %v889
        %v1110 = vpack.c.b16 %v895, %v890
        %v1111 = vpack.c.b16 %v901, %v896
        %v1112 = vpack.c.b16 %v902, %v897
        %v1113 = vpack.c.b16 %v903, %v898
        %v1114 = vpack.c.b16 %v904, %v899
        %v1115 = vpack.c.b16 %v905, %v900
        %v1116 = vpack.c.b16 %v911, %v906
        %v1117 = vpack.c.b16 %v912, %v907
        %v1118 = vpack.c.b16 %v913, %v908
        %v1119 = vpack.c.b16 %v914, %v909
        %v1120 = vpack.c.b16 %v915, %v910
        %v1121 = vpack.c.b16 %v921, %v916
        %v1122 = vpack.c.b16 %v922, %v917
        %v1123 = vpack.c.b16 %v923, %v918
        %v1124 = vpack.c.b16 %v924, %v919
        %v1125 = vpack.c.b16 %v925, %v920
        %v1126 = vpack.c.b16 %v931, %v926
        %v1127 = vpack.c.b16 %v932, %v927
        %v1128 = vpack.c.b16 %v933, %v928
        %v1129 = vpack.c.b16 %v934, %v929
        %v1130 = vpack.c.b16 %v935, %v930
        %v1131 = vpack.c.b16 %v941, %v936
        %v1132 = vpack.c.b16 %v942, %v937
        %v1133 = vpack.c.b16 %v943, %v938
        %v1134 = vpack.c.b16 %v944, %v939
        %v1135 = vpack.c.b16 %v945, %v940
        %v1136 = vpack.c.b16 %v951, %v946
        %v1137 = vpack.c.b16 %v952, %v947
        %v1138 = vpack.c.b16 %v953, %v948
        %v1139 = vpack.c.b16 %v954, %v949
        %v1140 = vpack.c.b16 %v955, %v950
        %v1141 = vpack.c.b16 %v961, %v956
        %v1142 = vpack.c.b16 %v962, %v957
        %v1143 = vpack.c.b16 %v963, %v958
        %v1144 = vpack.c.b16 %v964, %v959
        %v1145 = vpack.c.b16 %v965, %v960
        %v1146 = vpack.c.b16 %v971, %v966
        %v1147 = vpack.c.b16 %v972, %v967
        %v1148 = vpack.c.b16 %v973, %v968
        %v1149 = vpack.c.b16 %v974, %v969
        %v1150 = vpack.c.b16 %v975, %v970
        %v1151 = vpack.c.b16 %v981, %v976
        %v1152 = vpack.c.b16 %v982, %v977
        %v1153 = vpack.c.b16 %v983, %v978
        %v1154 = vpack.c.b16 %v984, %v979
        %v1155 = vpack.c.b16 %v985, %v980
        %v1156 = vpack.c.b16 %v991, %v986
        %v1157 = vpack.c.b16 %v992, %v987
        %v1158 = vpack.c.b16 %v993, %v988
        %v1159 = vpack.c.b16 %v994, %v989
        %v1160 = vpack.c.b16 %v995, %v990
        %v1161 = vpack.c.b16 %v1001, %v996
        %v1162 = vpack.c.b16 %v1002, %v997
        %v1163 = vpack.c.b16 %v1003, %v998
        %v1164 = vpack.c.b16 %v1004, %v999
        %v1165 = vpack.c.b16 %v1005, %v1000
        %v1362 = vunpack.c.l.b16 %v426
        %v1363 = vunpack.c.h.b16 %v426
        %v1364 = vunpack.c.l.b16 %v427
        %v1365 = vunpack.c.h.b16 %v427
        %v1366 = vunpack.c.l.b16 %v428
        %v1367 = vunpack.c.h.b16 %v428
        %v1368 = vunpack.c.l.b16 %v429
        %v1369 = vunpack.c.h.b16 %v429
        %v1370 = vunpack.c.l.b16 %v430
        %v1371 = vunpack.c.h.b16 %v430
        %v1372 = vunpack.c.l.b16 %v431
        %v1373 = vunpack.c.h.b16 %v431
        %v1374 = vunpack.c.l.b16 %v432
        %v1375 = vunpack.c.h.b16 %v432
        %v1376 = vunpack.c.l.b16 %v433
        %v1377 = vunpack.c.h.b16 %v433
        %v1378 = vunpack.c.l.b16 %v434
        %v1379 = vunpack.c.h.b16 %v434
        %v1380 = vunpack.c.l.b16 %v435
        %v1381 = vunpack.c.h.b16 %v435
        %v1382 = vunpack.c.l.b16 %v436
        %v1383 = vunpack.c.h.b16 %v436
        %v1384 = vunpack.c.l.b16 %v437
        %v1385 = vunpack.c.h.b16 %v437
        %v1386 = vunpack.c.l.b16 %v438
        %v1387 = vunpack.c.h.b16 %v438
        %v1388 = vunpack.c.l.b16 %v439
        %v1389 = vunpack.c.h.b16 %v439
        %v1390 = vunpack.c.l.b16 %v440
        %v1391 = vunpack.c.h.b16 %v440
        %v1392 = vunpack.c.l.b16 %v441
        %v1393 = vunpack.c.h.b16 %v441
        %v1394 = vunpack.c.l.b16 %v442
        %v1395 = vunpack.c.h.b16 %v442
        %v1396 = vunpack.c.l.b16 %v443
        %v1397 = vunpack.c.h.b16 %v443
        %v1398 = vunpack.c.l.b16 %v444
        %v1399 = vunpack.c.h.b16 %v444
        %v1400 = vunpack.c.l.b16 %v445
        %v1401 = vunpack.c.h.b16 %v445
        %v1402 = vunpack.c.l.b16 %v446
        %v1403 = vunpack.c.h.b16 %v446
        %v1404 = vunpack.c.l.b16 %v447
        %v1405 = vunpack.c.h.b16 %v447
        %v1406 = vunpack.c.l.b16 %v448
        %v1407 = vunpack.c.h.b16 %v448
        %v1408 = vunpack.c.l.b16 %v449
        %v1409 = vunpack.c.h.b16 %v449
        %v1410 = vunpack.c.l.b16 %v450
        %v1411 = vunpack.c.h.b16 %v450
        %v1412 = vunpack.c.l.b16 %v451
        %v1413 = vunpack.c.h.b16 %v451
        %v1414 = vunpack.c.l.b16 %v452
        %v1415 = vunpack.c.h.b16 %v452
        %v1416 = vunpack.c.l.b16 %v453
        %v1417 = vunpack.c.h.b16 %v453
        %v1418 = vunpack.c.l.b16 %v454
        %v1419 = vunpack.c.h.b16 %v454
        %v1420 = vunpack.c.l.b16 %v455
        %v1421 = vunpack.c.h.b16 %v455
        %v1422 = vunpack.c.l.b16 %v456
        %v1423 = vunpack.c.h.b16 %v456
        %v1424 = vunpack.c.l.b16 %v457
        %v1425 = vunpack.c.h.b16 %v457
        %v1426 = vunpack.c.l.b16 %v458
        %v1427 = vunpack.c.h.b16 %v458
        %v1428 = vunpack.c.l.b16 %v459
        %v1429 = vunpack.c.h.b16 %v459
        %v1430 = vunpack.c.l.b16 %v460
        %v1431 = vunpack.c.h.b16 %v460
        %v1432 = vunpack.c.l.b16 %v461
        %v1433 = vunpack.c.h.b16 %v461
        %v1434 = vunpack.c.l.b16 %v462
        %v1435 = vunpack.c.h.b16 %v462
        %v1436 = vunpack.c.l.b16 %v463
        %v1437 = vunpack.c.h.b16 %v463
        %v1438 = vunpack.c.l.b16 %v464
        %v1439 = vunpack.c.h.b16 %v464
        %v1440 = vunpack.c.l.b16 %v465
        %v1441 = vunpack.c.h.b16 %v465
        %v1442 = vunpack.c.l.b16 %v466
        %v1443 = vunpack.c.h.b16 %v466
        %v1444 = vunpack.c.l.b16 %v467
        %v1445 = vunpack.c.h.b16 %v467
        %v1446 = vunpack.c.l.b16 %v468
        %v1447 = vunpack.c.h.b16 %v468
        %v1448 = vunpack.c.l.b16 %v469
        %v1449 = vunpack.c.h.b16 %v469
        %v1450 = vunpack.c.l.b16 %v470
        %v1451 = vunpack.c.h.b16 %v470
        %v1452 = vunpack.c.l.b16 %v471
        %v1453 = vunpack.c.h.b16 %v471
        %v1454 = vunpack.c.l.b16 %v472
        %v1455 = vunpack.c.h.b16 %v472
        %v1456 = vunpack.c.l.b16 %v473
        %v1457 = vunpack.c.h.b16 %v473
        %v1458 = vunpack.c.l.b16 %v474
        %v1459 = vunpack.c.h.b16 %v474
        %v1460 = vunpack.c.l.b16 %v475
        %v1461 = vunpack.c.h.b16 %v475
        %v1462 = vunpack.c.l.b16 %v476
        %v1463 = vunpack.c.h.b16 %v476
        %v1464 = vunpack.c.l.b16 %v477
        %v1465 = vunpack.c.h.b16 %v477
        %v1466 = vunpack.c.l.b16 %v478
        %v1467 = vunpack.c.h.b16 %v478
        %v1468 = vunpack.c.l.b16 %v479
        %v1469 = vunpack.c.h.b16 %v479
        %v1470 = vunpack.c.l.b16 %v480
        %v1471 = vunpack.c.h.b16 %v480
        %v1472 = vunpack.c.l.b16 %v481
        %v1473 = vunpack.c.h.b16 %v481
        %v1474 = vunpack.c.l.b16 %v482
        %v1475 = vunpack.c.h.b16 %v482
        %v1476 = vunpack.c.l.b16 %v483
        %v1477 = vunpack.c.h.b16 %v483
        %v1478 = vunpack.c.l.b16 %v484
        %v1479 = vunpack.c.h.b16 %v484
        %v1480 = vunpack.c.l.b16 %v485
        %v1481 = vunpack.c.h.b16 %v485
        %v1482 = vunpack.c.l.b16 %v486
        %v1483 = vunpack.c.h.b16 %v486
        %v1484 = vunpack.c.l.b16 %v487
        %v1485 = vunpack.c.h.b16 %v487
        %v1486 = vunpack.c.l.b16 %v488
        %v1487 = vunpack.c.h.b16 %v488
        %v1488 = vunpack.c.l.b16 %v489
        %v1489 = vunpack.c.h.b16 %v489
        %v1490 = vunpack.c.l.b16 %v490
        %v1491 = vunpack.c.h.b16 %v490
        %v1492 = vunpack.c.l.b16 %v491
        %v1493 = vunpack.c.h.b16 %v491
        %v1494 = vunpack.c.l.b16 %v492
        %v1495 = vunpack.c.h.b16 %v492
        %v1496 = vunpack.c.l.b16 %v493
        %v1497 = vunpack.c.h.b16 %v493
        %v1498 = vpack.c.b16 %v1364, %v1362
        %v1499 = vpack.c.b16 %v1365, %v1363
        %v1500 = vpack.c.b16 %v1368, %v1366
        %v1501 = vpack.c.b16 %v1369, %v1367
        %v1502 = vpack.c.b16 %v1372, %v1370
        %v1503 = vpack.c.b16 %v1373, %v1371
        %v1504 = vpack.c.b16 %v1376, %v1374
        %v1505 = vpack.c.b16 %v1377, %v1375
        %v1506 = vpack.c.b16 %v1380, %v1378
        %v1507 = vpack.c.b16 %v1381, %v1379
        %v1508 = vpack.c.b16 %v1384, %v1382
        %v1509 = vpack.c.b16 %v1385, %v1383
        %v1510 = vpack.c.b16 %v1388, %v1386
        %v1511 = vpack.c.b16 %v1389, %v1387
        %v1512 = vpack.c.b16 %v1392, %v1390
        %v1513 = vpack.c.b16 %v1393, %v1391
        %v1514 = vpack.c.b16 %v1396, %v1394
        %v1515 = vpack.c.b16 %v1397, %v1395
        %v1516 = vpack.c.b16 %v1400, %v1398
        %v1517 = vpack.c.b16 %v1401, %v1399
        %v1518 = vpack.c.b16 %v1404, %v1402
        %v1519 = vpack.c.b16 %v1405, %v1403
        %v1520 = vpack.c.b16 %v1408, %v1406
        %v1521 = vpack.c.b16 %v1409, %v1407
        %v1522 = vpack.c.b16 %v1412, %v1410
        %v1523 = vpack.c.b16 %v1413, %v1411
        %v1524 = vpack.c.b16 %v1416, %v1414
        %v1525 = vpack.c.b16 %v1417, %v1415
        %v1526 = vpack.c.b16 %v1420, %v1418
        %v1527 = vpack.c.b16 %v1421, %v1419
        %v1528 = vpack.c.b16 %v1424, %v1422
        %v1529 = vpack.c.b16 %v1425, %v1423
        %v1530 = vpack.c.b16 %v1428, %v1426
        %v1531 = vpack.c.b16 %v1429, %v1427
        %v1532 = vpack.c.b16 %v1432, %v1430
        %v1533 = vpack.c.b16 %v1433, %v1431
        %v1534 = vpack.c.b16 %v1436, %v1434
        %v1535 = vpack.c.b16 %v1437, %v1435
        %v1536 = vpack.c.b16 %v1440, %v1438
        %v1537 = vpack.c.b16 %v1441, %v1439
        %v1538 = vpack.c.b16 %v1444, %v1442
        %v1539 = vpack.c.b16 %v1445, %v1443
        %v1540 = vpack.c.b16 %v1448, %v1446
        %v1541 = vpack.c.b16 %v1449, %v1447
        %v1542 = vpack.c.b16 %v1452, %v1450
        %v1543 = vpack.c.b16 %v1453, %v1451
        %v1544 = vpack.c.b16 %v1456, %v1454
        %v1545 = vpack.c.b16 %v1457, %v1455
        %v1546 = vpack.c.b16 %v1460, %v1458
        %v1547 = vpack.c.b16 %v1461, %v1459
        %v1548 = vpack.c.b16 %v1464, %v1462
        %v1549 = vpack.c.b16 %v1465, %v1463
        %v1550 = vpack.c.b16 %v1468, %v1466
        %v1551 = vpack.c.b16 %v1469, %v1467
        %v1552 = vpack.c.b16 %v1472, %v1470
        %v1553 = vpack.c.b16 %v1473, %v1471
        %v1554 = vpack.c.b16 %v1476, %v1474
        %v1555 = vpack.c.b16 %v1477, %v1475
        %v1556 = vpack.c.b16 %v1480, %v1478
        %v1557 = vpack.c.b16 %v1481, %v1479
        %v1558 = vpack.c.b16 %v1484, %v1482
        %v1559 = vpack.c.b16 %v1485, %v1483
        %v1560 = vpack.c.b16 %v1488, %v1486
        %v1561 = vpack.c.b16 %v1489, %v1487
        %v1562 = vpack.c.b16 %v1492, %v1490
        %v1563 = vpack.c.b16 %v1493, %v1491
        %v1564 = vpack.c.b16 %v1496, %v1494
        %v1565 = vpack.c.b16 %v1497, %v1495
        %vm1634 = vcmask 261120
        %v1636 = vsel %vm1634, %v1010, 0
        %v1639 = vsel %vm1634, %v1015, 0
        %v1642 = vsel %vm1634, %v1020, 0
        %v1645 = vsel %vm1634, %v1025, 0
        %v1648 = vsel %vm1634, %v1030, 0
        %v1651 = vsel %vm1634, %v1035, 0
        %v1654 = vsel %vm1634, %v1040, 0
        %v1657 = vsel %vm1634, %v1045, 0
        %v1660 = vsel %vm1634, %v1050, 0
        %v1663 = vsel %vm1634, %v1055, 0
        %v1666 = vsel %vm1634, %v1060, 0
        %v1669 = vsel %vm1634, %v1065, 0
        %v1672 = vsel %vm1634, %v1070, 0
        %v1675 = vsel %vm1634, %v1075, 0
        %v1678 = vsel %vm1634, %v1080, 0
        %v1681 = vsel %vm1634, %v1085, 0
        %v1684 = vsel %vm1634, %v1090, 0
        %v1687 = vsel %vm1634, %v1095, 0
        %v1690 = vsel %vm1634, %v1100, 0
        %v1693 = vsel %vm1634, %v1105, 0
        %v1696 = vsel %vm1634, %v1110, 0
        %v1699 = vsel %vm1634, %v1115, 0
        %v1702 = vsel %vm1634, %v1120, 0
        %v1705 = vsel %vm1634, %v1125, 0
        %v1708 = vsel %vm1634, %v1130, 0
        %v1711 = vsel %vm1634, %v1135, 0
        %v1714 = vsel %vm1634, %v1140, 0
        %v1717 = vsel %vm1634, %v1145, 0
        %v1720 = vsel %vm1634, %v1150, 0
        %v1723 = vsel %vm1634, %v1155, 0
        %v1726 = vsel %vm1634, %v1160, 0
        %v1729 = vsel %vm1634, %v1165, 0
        %1731 = vmatpush.bf16.msra.mxu0 %v1512
        %1732 = vmatpush.bf16.msra.mxu0 %v1510
        %1733 = vmatpush.bf16.msra.mxu0 %v1508
        %1734 = vmatpush.bf16.msra.mxu0 %v1506
        %1735 = vmatpush.bf16.msra.mxu0 %v1504
        %1736 = vmatpush.bf16.msra.mxu0 %v1502
        %1737 = vmatpush.bf16.msra.mxu0 %v1500
        %1738 = vmatpush.bf16.msra.mxu0 %v1498
        %1739 = vmatmul.bf16.gmra.mxu0 %v1006
        %v1740 = vpop.f32.mrf.mxu0
        %v1741 = vadd.f32 0.0, %v1740
        %v1742 = vpop.f32.mrf.mxu0
        %v1743 = vadd.f32 0.0, %v1742
        %1744 = vmatmul.bf16.gmra.mxu0 %v1011
        %v1745 = vpop.f32.mrf.mxu0
        %v1746 = vadd.f32 0.0, %v1745
        %v1747 = vpop.f32.mrf.mxu0
        %v1748 = vadd.f32 0.0, %v1747
        %1749 = vmatmul.bf16.gmra.mxu0 %v1016
        %v1750 = vpop.f32.mrf.mxu0
        %v1751 = vadd.f32 0.0, %v1750
        %v1752 = vpop.f32.mrf.mxu0
        %v1753 = vadd.f32 0.0, %v1752
        %1754 = vmatmul.bf16.gmra.mxu0 %v1021
        %v1755 = vpop.f32.mrf.mxu0
        %v1756 = vadd.f32 0.0, %v1755
        %v1757 = vpop.f32.mrf.mxu0
        %v1758 = vadd.f32 0.0, %v1757
        %1759 = vmatmul.bf16.gmra.mxu0 %v1026
        %v1760 = vpop.f32.mrf.mxu0
        %v1761 = vadd.f32 0.0, %v1760
        %v1762 = vpop.f32.mrf.mxu0
        %v1763 = vadd.f32 0.0, %v1762
        %1764 = vmatmul.bf16.gmra.mxu0 %v1031
        %v1765 = vpop.f32.mrf.mxu0
        %v1766 = vadd.f32 0.0, %v1765
        %v1767 = vpop.f32.mrf.mxu0
        %v1768 = vadd.f32 0.0, %v1767
        %1769 = vmatmul.bf16.gmra.mxu0 %v1036
        %v1770 = vpop.f32.mrf.mxu0
        %v1771 = vadd.f32 0.0, %v1770
        %v1772 = vpop.f32.mrf.mxu0
        %v1773 = vadd.f32 0.0, %v1772
        %1774 = vmatmul.bf16.gmra.mxu0 %v1041
        %v1775 = vpop.f32.mrf.mxu0
        %v1776 = vadd.f32 0.0, %v1775
        %v1777 = vpop.f32.mrf.mxu0
        %v1778 = vadd.f32 0.0, %v1777
        %1779 = vmatmul.bf16.gmra.mxu0 %v1046
        %v1780 = vpop.f32.mrf.mxu0
        %v1781 = vadd.f32 0.0, %v1780
        %v1782 = vpop.f32.mrf.mxu0
        %v1783 = vadd.f32 0.0, %v1782
        %1784 = vmatmul.bf16.gmra.mxu0 %v1051
        %v1785 = vpop.f32.mrf.mxu0
        %v1786 = vadd.f32 0.0, %v1785
        %v1787 = vpop.f32.mrf.mxu0
        %v1788 = vadd.f32 0.0, %v1787
        %1789 = vmatmul.bf16.gmra.mxu0 %v1056
        %v1790 = vpop.f32.mrf.mxu0
        %v1791 = vadd.f32 0.0, %v1790
        %v1792 = vpop.f32.mrf.mxu0
        %v1793 = vadd.f32 0.0, %v1792
        %1794 = vmatmul.bf16.gmra.mxu0 %v1061
        %v1795 = vpop.f32.mrf.mxu0
        %v1796 = vadd.f32 0.0, %v1795
        %v1797 = vpop.f32.mrf.mxu0
        %v1798 = vadd.f32 0.0, %v1797
        %1799 = vmatmul.bf16.gmra.mxu0 %v1066
        %v1800 = vpop.f32.mrf.mxu0
        %v1801 = vadd.f32 0.0, %v1800
        %v1802 = vpop.f32.mrf.mxu0
        %v1803 = vadd.f32 0.0, %v1802
        %1804 = vmatmul.bf16.gmra.mxu0 %v1071
        %v1805 = vpop.f32.mrf.mxu0
        %v1806 = vadd.f32 0.0, %v1805
        %v1807 = vpop.f32.mrf.mxu0
        %v1808 = vadd.f32 0.0, %v1807
        %1809 = vmatmul.bf16.gmra.mxu0 %v1076
        %v1810 = vpop.f32.mrf.mxu0
        %v1811 = vadd.f32 0.0, %v1810
        %v1812 = vpop.f32.mrf.mxu0
        %v1813 = vadd.f32 0.0, %v1812
        %1814 = vmatmul.bf16.gmra.mxu0 %v1081
        %v1815 = vpop.f32.mrf.mxu0
        %v1816 = vadd.f32 0.0, %v1815
        %v1817 = vpop.f32.mrf.mxu0
        %v1818 = vadd.f32 0.0, %v1817
        %1819 = vmatmul.bf16.gmra.mxu0 %v1086
        %v1820 = vpop.f32.mrf.mxu0
        %v1821 = vadd.f32 0.0, %v1820
        %v1822 = vpop.f32.mrf.mxu0
        %v1823 = vadd.f32 0.0, %v1822
        %1824 = vmatmul.bf16.gmra.mxu0 %v1091
        %v1825 = vpop.f32.mrf.mxu0
        %v1826 = vadd.f32 0.0, %v1825
        %v1827 = vpop.f32.mrf.mxu0
        %v1828 = vadd.f32 0.0, %v1827
        %1829 = vmatmul.bf16.gmra.mxu0 %v1096
        %v1830 = vpop.f32.mrf.mxu0
        %v1831 = vadd.f32 0.0, %v1830
        %v1832 = vpop.f32.mrf.mxu0
        %v1833 = vadd.f32 0.0, %v1832
        %1834 = vmatmul.bf16.gmra.mxu0 %v1101
        %v1835 = vpop.f32.mrf.mxu0
        %v1836 = vadd.f32 0.0, %v1835
        %v1837 = vpop.f32.mrf.mxu0
        %v1838 = vadd.f32 0.0, %v1837
        %1839 = vmatmul.bf16.gmra.mxu0 %v1106
        %v1840 = vpop.f32.mrf.mxu0
        %v1841 = vadd.f32 0.0, %v1840
        %v1842 = vpop.f32.mrf.mxu0
        %v1843 = vadd.f32 0.0, %v1842
        %1844 = vmatmul.bf16.gmra.mxu0 %v1111
        %v1845 = vpop.f32.mrf.mxu0
        %v1846 = vadd.f32 0.0, %v1845
        %v1847 = vpop.f32.mrf.mxu0
        %v1848 = vadd.f32 0.0, %v1847
        %1849 = vmatmul.bf16.gmra.mxu0 %v1116
        %v1850 = vpop.f32.mrf.mxu0
        %v1851 = vadd.f32 0.0, %v1850
        %v1852 = vpop.f32.mrf.mxu0
        %v1853 = vadd.f32 0.0, %v1852
        %1854 = vmatmul.bf16.gmra.mxu0 %v1121
        %v1855 = vpop.f32.mrf.mxu0
        %v1856 = vadd.f32 0.0, %v1855
        %v1857 = vpop.f32.mrf.mxu0
        %v1858 = vadd.f32 0.0, %v1857
        %1859 = vmatmul.bf16.gmra.mxu0 %v1126
        %v1860 = vpop.f32.mrf.mxu0
        %v1861 = vadd.f32 0.0, %v1860
        %v1862 = vpop.f32.mrf.mxu0
        %v1863 = vadd.f32 0.0, %v1862
        %1864 = vmatmul.bf16.gmra.mxu0 %v1131
        %v1865 = vpop.f32.mrf.mxu0
        %v1866 = vadd.f32 0.0, %v1865
        %v1867 = vpop.f32.mrf.mxu0
        %v1868 = vadd.f32 0.0, %v1867
        %1869 = vmatmul.bf16.gmra.mxu0 %v1136
        %v1870 = vpop.f32.mrf.mxu0
        %v1871 = vadd.f32 0.0, %v1870
        %v1872 = vpop.f32.mrf.mxu0
        %v1873 = vadd.f32 0.0, %v1872
        %1874 = vmatmul.bf16.gmra.mxu0 %v1141
        %v1875 = vpop.f32.mrf.mxu0
        %v1876 = vadd.f32 0.0, %v1875
        %v1877 = vpop.f32.mrf.mxu0
        %v1878 = vadd.f32 0.0, %v1877
        %1879 = vmatmul.bf16.gmra.mxu0 %v1146
        %v1880 = vpop.f32.mrf.mxu0
        %v1881 = vadd.f32 0.0, %v1880
        %v1882 = vpop.f32.mrf.mxu0
        %v1883 = vadd.f32 0.0, %v1882
        %1884 = vmatmul.bf16.gmra.mxu0 %v1151
        %v1885 = vpop.f32.mrf.mxu0
        %v1886 = vadd.f32 0.0, %v1885
        %v1887 = vpop.f32.mrf.mxu0
        %v1888 = vadd.f32 0.0, %v1887
        %1889 = vmatmul.bf16.gmra.mxu0 %v1156
        %v1890 = vpop.f32.mrf.mxu0
        %v1891 = vadd.f32 0.0, %v1890
        %v1892 = vpop.f32.mrf.mxu0
        %v1893 = vadd.f32 0.0, %v1892
        %1894 = vmatmul.bf16.gmra.mxu0 %v1161
        %v1895 = vpop.f32.mrf.mxu0
        %v1896 = vadd.f32 0.0, %v1895
        %v1897 = vpop.f32.mrf.mxu0
        %v1898 = vadd.f32 0.0, %v1897
        %1899 = vdwg.mxu0
        %1900 = vmatpush.bf16.msra.mxu0 %v1528
        %1901 = vmatpush.bf16.msra.mxu0 %v1526
        %1902 = vmatpush.bf16.msra.mxu0 %v1524
        %1903 = vmatpush.bf16.msra.mxu0 %v1522
        %1904 = vmatpush.bf16.msra.mxu0 %v1520
        %1905 = vmatpush.bf16.msra.mxu0 %v1518
        %1906 = vmatpush.bf16.msra.mxu0 %v1516
        %1907 = vmatpush.bf16.msra.mxu0 %v1514
        %1908 = vmatmul.bf16.gmra.mxu0 %v1007
        %v1909 = vpop.f32.mrf.mxu0
        %v1910 = vadd.f32 %v1741, %v1909
        %v1911 = vpop.f32.mrf.mxu0
        %v1912 = vadd.f32 %v1743, %v1911
        %1913 = vmatmul.bf16.gmra.mxu0 %v1012
        %v1914 = vpop.f32.mrf.mxu0
        %v1915 = vadd.f32 %v1746, %v1914
        %v1916 = vpop.f32.mrf.mxu0
        %v1917 = vadd.f32 %v1748, %v1916
        %1918 = vmatmul.bf16.gmra.mxu0 %v1017
        %v1919 = vpop.f32.mrf.mxu0
        %v1920 = vadd.f32 %v1751, %v1919
        %v1921 = vpop.f32.mrf.mxu0
        %v1922 = vadd.f32 %v1753, %v1921
        %1923 = vmatmul.bf16.gmra.mxu0 %v1022
        %v1924 = vpop.f32.mrf.mxu0
        %v1925 = vadd.f32 %v1756, %v1924
        %v1926 = vpop.f32.mrf.mxu0
        %v1927 = vadd.f32 %v1758, %v1926
        %1928 = vmatmul.bf16.gmra.mxu0 %v1027
        %v1929 = vpop.f32.mrf.mxu0
        %v1930 = vadd.f32 %v1761, %v1929
        %v1931 = vpop.f32.mrf.mxu0
        %v1932 = vadd.f32 %v1763, %v1931
        %1933 = vmatmul.bf16.gmra.mxu0 %v1032
        %v1934 = vpop.f32.mrf.mxu0
        %v1935 = vadd.f32 %v1766, %v1934
        %v1936 = vpop.f32.mrf.mxu0
        %v1937 = vadd.f32 %v1768, %v1936
        %1938 = vmatmul.bf16.gmra.mxu0 %v1037
        %v1939 = vpop.f32.mrf.mxu0
        %v1940 = vadd.f32 %v1771, %v1939
        %v1941 = vpop.f32.mrf.mxu0
        %v1942 = vadd.f32 %v1773, %v1941
        %1943 = vmatmul.bf16.gmra.mxu0 %v1042
        %v1944 = vpop.f32.mrf.mxu0
        %v1945 = vadd.f32 %v1776, %v1944
        %v1946 = vpop.f32.mrf.mxu0
        %v1947 = vadd.f32 %v1778, %v1946
        %1948 = vmatmul.bf16.gmra.mxu0 %v1047
        %v1949 = vpop.f32.mrf.mxu0
        %v1950 = vadd.f32 %v1781, %v1949
        %v1951 = vpop.f32.mrf.mxu0
        %v1952 = vadd.f32 %v1783, %v1951
        %1953 = vmatmul.bf16.gmra.mxu0 %v1052
        %v1954 = vpop.f32.mrf.mxu0
        %v1955 = vadd.f32 %v1786, %v1954
        %v1956 = vpop.f32.mrf.mxu0
        %v1957 = vadd.f32 %v1788, %v1956
        %1958 = vmatmul.bf16.gmra.mxu0 %v1057
        %v1959 = vpop.f32.mrf.mxu0
        %v1960 = vadd.f32 %v1791, %v1959
        %v1961 = vpop.f32.mrf.mxu0
        %v1962 = vadd.f32 %v1793, %v1961
        %1963 = vmatmul.bf16.gmra.mxu0 %v1062
        %v1964 = vpop.f32.mrf.mxu0
        %v1965 = vadd.f32 %v1796, %v1964
        %v1966 = vpop.f32.mrf.mxu0
        %v1967 = vadd.f32 %v1798, %v1966
        %1968 = vmatmul.bf16.gmra.mxu0 %v1067
        %v1969 = vpop.f32.mrf.mxu0
        %v1970 = vadd.f32 %v1801, %v1969
        %v1971 = vpop.f32.mrf.mxu0
        %v1972 = vadd.f32 %v1803, %v1971
        %1973 = vmatmul.bf16.gmra.mxu0 %v1072
        %v1974 = vpop.f32.mrf.mxu0
        %v1975 = vadd.f32 %v1806, %v1974
        %v1976 = vpop.f32.mrf.mxu0
        %v1977 = vadd.f32 %v1808, %v1976
        %1978 = vmatmul.bf16.gmra.mxu0 %v1077
        %v1979 = vpop.f32.mrf.mxu0
        %v1980 = vadd.f32 %v1811, %v1979
        %v1981 = vpop.f32.mrf.mxu0
        %v1982 = vadd.f32 %v1813, %v1981
        %1983 = vmatmul.bf16.gmra.mxu0 %v1082
        %v1984 = vpop.f32.mrf.mxu0
        %v1985 = vadd.f32 %v1816, %v1984
        %v1986 = vpop.f32.mrf.mxu0
        %v1987 = vadd.f32 %v1818, %v1986
        %1988 = vmatmul.bf16.gmra.mxu0 %v1087
        %v1989 = vpop.f32.mrf.mxu0
        %v1990 = vadd.f32 %v1821, %v1989
        %v1991 = vpop.f32.mrf.mxu0
        %v1992 = vadd.f32 %v1823, %v1991
        %1993 = vmatmul.bf16.gmra.mxu0 %v1092
        %v1994 = vpop.f32.mrf.mxu0
        %v1995 = vadd.f32 %v1826, %v1994
        %v1996 = vpop.f32.mrf.mxu0
        %v1997 = vadd.f32 %v1828, %v1996
        %1998 = vmatmul.bf16.gmra.mxu0 %v1097
        %v1999 = vpop.f32.mrf.mxu0
        %v2000 = vadd.f32 %v1831, %v1999
        %v2001 = vpop.f32.mrf.mxu0
        %v2002 = vadd.f32 %v1833, %v2001
        %2003 = vmatmul.bf16.gmra.mxu0 %v1102
        %v2004 = vpop.f32.mrf.mxu0
        %v2005 = vadd.f32 %v1836, %v2004
        %v2006 = vpop.f32.mrf.mxu0
        %v2007 = vadd.f32 %v1838, %v2006
        %2008 = vmatmul.bf16.gmra.mxu0 %v1107
        %v2009 = vpop.f32.mrf.mxu0
        %v2010 = vadd.f32 %v1841, %v2009
        %v2011 = vpop.f32.mrf.mxu0
        %v2012 = vadd.f32 %v1843, %v2011
        %2013 = vmatmul.bf16.gmra.mxu0 %v1112
        %v2014 = vpop.f32.mrf.mxu0
        %v2015 = vadd.f32 %v1846, %v2014
        %v2016 = vpop.f32.mrf.mxu0
        %v2017 = vadd.f32 %v1848, %v2016
        %2018 = vmatmul.bf16.gmra.mxu0 %v1117
        %v2019 = vpop.f32.mrf.mxu0
        %v2020 = vadd.f32 %v1851, %v2019
        %v2021 = vpop.f32.mrf.mxu0
        %v2022 = vadd.f32 %v1853, %v2021
        %2023 = vmatmul.bf16.gmra.mxu0 %v1122
        %v2024 = vpop.f32.mrf.mxu0
        %v2025 = vadd.f32 %v1856, %v2024
        %v2026 = vpop.f32.mrf.mxu0
        %v2027 = vadd.f32 %v1858, %v2026
        %2028 = vmatmul.bf16.gmra.mxu0 %v1127
        %v2029 = vpop.f32.mrf.mxu0
        %v2030 = vadd.f32 %v1861, %v2029
        %v2031 = vpop.f32.mrf.mxu0
        %v2032 = vadd.f32 %v1863, %v2031
        %2033 = vmatmul.bf16.gmra.mxu0 %v1132
        %v2034 = vpop.f32.mrf.mxu0
        %v2035 = vadd.f32 %v1866, %v2034
        %v2036 = vpop.f32.mrf.mxu0
        %v2037 = vadd.f32 %v1868, %v2036
        %2038 = vmatmul.bf16.gmra.mxu0 %v1137
        %v2039 = vpop.f32.mrf.mxu0
        %v2040 = vadd.f32 %v1871, %v2039
        %v2041 = vpop.f32.mrf.mxu0
        %v2042 = vadd.f32 %v1873, %v2041
        %2043 = vmatmul.bf16.gmra.mxu0 %v1142
        %v2044 = vpop.f32.mrf.mxu0
        %v2045 = vadd.f32 %v1876, %v2044
        %v2046 = vpop.f32.mrf.mxu0
        %v2047 = vadd.f32 %v1878, %v2046
        %2048 = vmatmul.bf16.gmra.mxu0 %v1147
        %v2049 = vpop.f32.mrf.mxu0
        %v2050 = vadd.f32 %v1881, %v2049
        %v2051 = vpop.f32.mrf.mxu0
        %v2052 = vadd.f32 %v1883, %v2051
        %2053 = vmatmul.bf16.gmra.mxu0 %v1152
        %v2054 = vpop.f32.mrf.mxu0
        %v2055 = vadd.f32 %v1886, %v2054
        %v2056 = vpop.f32.mrf.mxu0
        %v2057 = vadd.f32 %v1888, %v2056
        %2058 = vmatmul.bf16.gmra.mxu0 %v1157
        %v2059 = vpop.f32.mrf.mxu0
        %v2060 = vadd.f32 %v1891, %v2059
        %v2061 = vpop.f32.mrf.mxu0
        %v2062 = vadd.f32 %v1893, %v2061
        %2063 = vmatmul.bf16.gmra.mxu0 %v1162
        %v2064 = vpop.f32.mrf.mxu0
        %v2065 = vadd.f32 %v1896, %v2064
        %v2066 = vpop.f32.mrf.mxu0
        %v2067 = vadd.f32 %v1898, %v2066
        %2068 = vdwg.mxu0
        %2069 = vmatpush.bf16.msra.mxu0 %v1544
        %2070 = vmatpush.bf16.msra.mxu0 %v1542
        %2071 = vmatpush.bf16.msra.mxu0 %v1540
        %2072 = vmatpush.bf16.msra.mxu0 %v1538
        %2073 = vmatpush.bf16.msra.mxu0 %v1536
        %2074 = vmatpush.bf16.msra.mxu0 %v1534
        %2075 = vmatpush.bf16.msra.mxu0 %v1532
        %2076 = vmatpush.bf16.msra.mxu0 %v1530
        %2077 = vmatmul.bf16.gmra.mxu0 %v1008
        %v2078 = vpop.f32.mrf.mxu0
        %v2079 = vadd.f32 %v1910, %v2078
        %v2080 = vpop.f32.mrf.mxu0
        %v2081 = vadd.f32 %v1912, %v2080
        %2082 = vmatmul.bf16.gmra.mxu0 %v1013
        %v2083 = vpop.f32.mrf.mxu0
        %v2084 = vadd.f32 %v1915, %v2083
        %v2085 = vpop.f32.mrf.mxu0
        %v2086 = vadd.f32 %v1917, %v2085
        %2087 = vmatmul.bf16.gmra.mxu0 %v1018
        %v2088 = vpop.f32.mrf.mxu0
        %v2089 = vadd.f32 %v1920, %v2088
        %v2090 = vpop.f32.mrf.mxu0
        %v2091 = vadd.f32 %v1922, %v2090
        %2092 = vmatmul.bf16.gmra.mxu0 %v1023
        %v2093 = vpop.f32.mrf.mxu0
        %v2094 = vadd.f32 %v1925, %v2093
        %v2095 = vpop.f32.mrf.mxu0
        %v2096 = vadd.f32 %v1927, %v2095
        %2097 = vmatmul.bf16.gmra.mxu0 %v1028
        %v2098 = vpop.f32.mrf.mxu0
        %v2099 = vadd.f32 %v1930, %v2098
        %v2100 = vpop.f32.mrf.mxu0
        %v2101 = vadd.f32 %v1932, %v2100
        %2102 = vmatmul.bf16.gmra.mxu0 %v1033
        %v2103 = vpop.f32.mrf.mxu0
        %v2104 = vadd.f32 %v1935, %v2103
        %v2105 = vpop.f32.mrf.mxu0
        %v2106 = vadd.f32 %v1937, %v2105
        %2107 = vmatmul.bf16.gmra.mxu0 %v1038
        %v2108 = vpop.f32.mrf.mxu0
        %v2109 = vadd.f32 %v1940, %v2108
        %v2110 = vpop.f32.mrf.mxu0
        %v2111 = vadd.f32 %v1942, %v2110
        %2112 = vmatmul.bf16.gmra.mxu0 %v1043
        %v2113 = vpop.f32.mrf.mxu0
        %v2114 = vadd.f32 %v1945, %v2113
        %v2115 = vpop.f32.mrf.mxu0
        %v2116 = vadd.f32 %v1947, %v2115
        %2117 = vmatmul.bf16.gmra.mxu0 %v1048
        %v2118 = vpop.f32.mrf.mxu0
        %v2119 = vadd.f32 %v1950, %v2118
        %v2120 = vpop.f32.mrf.mxu0
        %v2121 = vadd.f32 %v1952, %v2120
        %2122 = vmatmul.bf16.gmra.mxu0 %v1053
        %v2123 = vpop.f32.mrf.mxu0
        %v2124 = vadd.f32 %v1955, %v2123
        %v2125 = vpop.f32.mrf.mxu0
        %v2126 = vadd.f32 %v1957, %v2125
        %2127 = vmatmul.bf16.gmra.mxu0 %v1058
        %v2128 = vpop.f32.mrf.mxu0
        %v2129 = vadd.f32 %v1960, %v2128
        %v2130 = vpop.f32.mrf.mxu0
        %v2131 = vadd.f32 %v1962, %v2130
        %2132 = vmatmul.bf16.gmra.mxu0 %v1063
        %v2133 = vpop.f32.mrf.mxu0
        %v2134 = vadd.f32 %v1965, %v2133
        %v2135 = vpop.f32.mrf.mxu0
        %v2136 = vadd.f32 %v1967, %v2135
        %2137 = vmatmul.bf16.gmra.mxu0 %v1068
        %v2138 = vpop.f32.mrf.mxu0
        %v2139 = vadd.f32 %v1970, %v2138
        %v2140 = vpop.f32.mrf.mxu0
        %v2141 = vadd.f32 %v1972, %v2140
        %2142 = vmatmul.bf16.gmra.mxu0 %v1073
        %v2143 = vpop.f32.mrf.mxu0
        %v2144 = vadd.f32 %v1975, %v2143
        %v2145 = vpop.f32.mrf.mxu0
        %v2146 = vadd.f32 %v1977, %v2145
        %2147 = vmatmul.bf16.gmra.mxu0 %v1078
        %v2148 = vpop.f32.mrf.mxu0
        %v2149 = vadd.f32 %v1980, %v2148
        %v2150 = vpop.f32.mrf.mxu0
        %v2151 = vadd.f32 %v1982, %v2150
        %2152 = vmatmul.bf16.gmra.mxu0 %v1083
        %v2153 = vpop.f32.mrf.mxu0
        %v2154 = vadd.f32 %v1985, %v2153
        %v2155 = vpop.f32.mrf.mxu0
        %v2156 = vadd.f32 %v1987, %v2155
        %2157 = vmatmul.bf16.gmra.mxu0 %v1088
        %v2158 = vpop.f32.mrf.mxu0
        %v2159 = vadd.f32 %v1990, %v2158
        %v2160 = vpop.f32.mrf.mxu0
        %v2161 = vadd.f32 %v1992, %v2160
        %2162 = vmatmul.bf16.gmra.mxu0 %v1093
        %v2163 = vpop.f32.mrf.mxu0
        %v2164 = vadd.f32 %v1995, %v2163
        %v2165 = vpop.f32.mrf.mxu0
        %v2166 = vadd.f32 %v1997, %v2165
        %2167 = vmatmul.bf16.gmra.mxu0 %v1098
        %v2168 = vpop.f32.mrf.mxu0
        %v2169 = vadd.f32 %v2000, %v2168
        %v2170 = vpop.f32.mrf.mxu0
        %v2171 = vadd.f32 %v2002, %v2170
        %2172 = vmatmul.bf16.gmra.mxu0 %v1103
        %v2173 = vpop.f32.mrf.mxu0
        %v2174 = vadd.f32 %v2005, %v2173
        %v2175 = vpop.f32.mrf.mxu0
        %v2176 = vadd.f32 %v2007, %v2175
        %2177 = vmatmul.bf16.gmra.mxu0 %v1108
        %v2178 = vpop.f32.mrf.mxu0
        %v2179 = vadd.f32 %v2010, %v2178
        %v2180 = vpop.f32.mrf.mxu0
        %v2181 = vadd.f32 %v2012, %v2180
        %2182 = vmatmul.bf16.gmra.mxu0 %v1113
        %v2183 = vpop.f32.mrf.mxu0
        %v2184 = vadd.f32 %v2015, %v2183
        %v2185 = vpop.f32.mrf.mxu0
        %v2186 = vadd.f32 %v2017, %v2185
        %2187 = vmatmul.bf16.gmra.mxu0 %v1118
        %v2188 = vpop.f32.mrf.mxu0
        %v2189 = vadd.f32 %v2020, %v2188
        %v2190 = vpop.f32.mrf.mxu0
        %v2191 = vadd.f32 %v2022, %v2190
        %2192 = vmatmul.bf16.gmra.mxu0 %v1123
        %v2193 = vpop.f32.mrf.mxu0
        %v2194 = vadd.f32 %v2025, %v2193
        %v2195 = vpop.f32.mrf.mxu0
        %v2196 = vadd.f32 %v2027, %v2195
        %2197 = vmatmul.bf16.gmra.mxu0 %v1128
        %v2198 = vpop.f32.mrf.mxu0
        %v2199 = vadd.f32 %v2030, %v2198
        %v2200 = vpop.f32.mrf.mxu0
        %v2201 = vadd.f32 %v2032, %v2200
        %2202 = vmatmul.bf16.gmra.mxu0 %v1133
        %v2203 = vpop.f32.mrf.mxu0
        %v2204 = vadd.f32 %v2035, %v2203
        %v2205 = vpop.f32.mrf.mxu0
        %v2206 = vadd.f32 %v2037, %v2205
        %2207 = vmatmul.bf16.gmra.mxu0 %v1138
        %v2208 = vpop.f32.mrf.mxu0
        %v2209 = vadd.f32 %v2040, %v2208
        %v2210 = vpop.f32.mrf.mxu0
        %v2211 = vadd.f32 %v2042, %v2210
        %2212 = vmatmul.bf16.gmra.mxu0 %v1143
        %v2213 = vpop.f32.mrf.mxu0
        %v2214 = vadd.f32 %v2045, %v2213
        %v2215 = vpop.f32.mrf.mxu0
        %v2216 = vadd.f32 %v2047, %v2215
        %2217 = vmatmul.bf16.gmra.mxu0 %v1148
        %v2218 = vpop.f32.mrf.mxu0
        %v2219 = vadd.f32 %v2050, %v2218
        %v2220 = vpop.f32.mrf.mxu0
        %v2221 = vadd.f32 %v2052, %v2220
        %2222 = vmatmul.bf16.gmra.mxu0 %v1153
        %v2223 = vpop.f32.mrf.mxu0
        %v2224 = vadd.f32 %v2055, %v2223
        %v2225 = vpop.f32.mrf.mxu0
        %v2226 = vadd.f32 %v2057, %v2225
        %2227 = vmatmul.bf16.gmra.mxu0 %v1158
        %v2228 = vpop.f32.mrf.mxu0
        %v2229 = vadd.f32 %v2060, %v2228
        %v2230 = vpop.f32.mrf.mxu0
        %v2231 = vadd.f32 %v2062, %v2230
        %2232 = vmatmul.bf16.gmra.mxu0 %v1163
        %v2233 = vpop.f32.mrf.mxu0
        %v2234 = vadd.f32 %v2065, %v2233
        %v2235 = vpop.f32.mrf.mxu0
        %v2236 = vadd.f32 %v2067, %v2235
        %2237 = vdwg.mxu0
        %2238 = vmatpush.bf16.msra.mxu0 %v1560
        %2239 = vmatpush.bf16.msra.mxu0 %v1558
        %2240 = vmatpush.bf16.msra.mxu0 %v1556
        %2241 = vmatpush.bf16.msra.mxu0 %v1554
        %2242 = vmatpush.bf16.msra.mxu0 %v1552
        %2243 = vmatpush.bf16.msra.mxu0 %v1550
        %2244 = vmatpush.bf16.msra.mxu0 %v1548
        %2245 = vmatpush.bf16.msra.mxu0 %v1546
        %2246 = vmatmul.bf16.gmra.mxu0 %v1009
        %v2247 = vpop.f32.mrf.mxu0
        %v2248 = vadd.f32 %v2079, %v2247
        %v2249 = vpop.f32.mrf.mxu0
        %v2250 = vadd.f32 %v2081, %v2249
        %2251 = vmatmul.bf16.gmra.mxu0 %v1014
        %v2252 = vpop.f32.mrf.mxu0
        %v2253 = vadd.f32 %v2084, %v2252
        %v2254 = vpop.f32.mrf.mxu0
        %v2255 = vadd.f32 %v2086, %v2254
        %2256 = vmatmul.bf16.gmra.mxu0 %v1019
        %v2257 = vpop.f32.mrf.mxu0
        %v2258 = vadd.f32 %v2089, %v2257
        %v2259 = vpop.f32.mrf.mxu0
        %v2260 = vadd.f32 %v2091, %v2259
        %2261 = vmatmul.bf16.gmra.mxu0 %v1024
        %v2262 = vpop.f32.mrf.mxu0
        %v2263 = vadd.f32 %v2094, %v2262
        %v2264 = vpop.f32.mrf.mxu0
        %v2265 = vadd.f32 %v2096, %v2264
        %2266 = vmatmul.bf16.gmra.mxu0 %v1029
        %v2267 = vpop.f32.mrf.mxu0
        %v2268 = vadd.f32 %v2099, %v2267
        %v2269 = vpop.f32.mrf.mxu0
        %v2270 = vadd.f32 %v2101, %v2269
        %2271 = vmatmul.bf16.gmra.mxu0 %v1034
        %v2272 = vpop.f32.mrf.mxu0
        %v2273 = vadd.f32 %v2104, %v2272
        %v2274 = vpop.f32.mrf.mxu0
        %v2275 = vadd.f32 %v2106, %v2274
        %2276 = vmatmul.bf16.gmra.mxu0 %v1039
        %v2277 = vpop.f32.mrf.mxu0
        %v2278 = vadd.f32 %v2109, %v2277
        %v2279 = vpop.f32.mrf.mxu0
        %v2280 = vadd.f32 %v2111, %v2279
        %2281 = vmatmul.bf16.gmra.mxu0 %v1044
        %v2282 = vpop.f32.mrf.mxu0
        %v2283 = vadd.f32 %v2114, %v2282
        %v2284 = vpop.f32.mrf.mxu0
        %v2285 = vadd.f32 %v2116, %v2284
        %2286 = vmatmul.bf16.gmra.mxu0 %v1049
        %v2287 = vpop.f32.mrf.mxu0
        %v2288 = vadd.f32 %v2119, %v2287
        %v2289 = vpop.f32.mrf.mxu0
        %v2290 = vadd.f32 %v2121, %v2289
        %2291 = vmatmul.bf16.gmra.mxu0 %v1054
        %v2292 = vpop.f32.mrf.mxu0
        %v2293 = vadd.f32 %v2124, %v2292
        %v2294 = vpop.f32.mrf.mxu0
        %v2295 = vadd.f32 %v2126, %v2294
        %2296 = vmatmul.bf16.gmra.mxu0 %v1059
        %v2297 = vpop.f32.mrf.mxu0
        %v2298 = vadd.f32 %v2129, %v2297
        %v2299 = vpop.f32.mrf.mxu0
        %v2300 = vadd.f32 %v2131, %v2299
        %2301 = vmatmul.bf16.gmra.mxu0 %v1064
        %v2302 = vpop.f32.mrf.mxu0
        %v2303 = vadd.f32 %v2134, %v2302
        %v2304 = vpop.f32.mrf.mxu0
        %v2305 = vadd.f32 %v2136, %v2304
        %2306 = vmatmul.bf16.gmra.mxu0 %v1069
        %v2307 = vpop.f32.mrf.mxu0
        %v2308 = vadd.f32 %v2139, %v2307
        %v2309 = vpop.f32.mrf.mxu0
        %v2310 = vadd.f32 %v2141, %v2309
        %2311 = vmatmul.bf16.gmra.mxu0 %v1074
        %v2312 = vpop.f32.mrf.mxu0
        %v2313 = vadd.f32 %v2144, %v2312
        %v2314 = vpop.f32.mrf.mxu0
        %v2315 = vadd.f32 %v2146, %v2314
        %2316 = vmatmul.bf16.gmra.mxu0 %v1079
        %v2317 = vpop.f32.mrf.mxu0
        %v2318 = vadd.f32 %v2149, %v2317
        %v2319 = vpop.f32.mrf.mxu0
        %v2320 = vadd.f32 %v2151, %v2319
        %2321 = vmatmul.bf16.gmra.mxu0 %v1084
        %v2322 = vpop.f32.mrf.mxu0
        %v2323 = vadd.f32 %v2154, %v2322
        %v2324 = vpop.f32.mrf.mxu0
        %v2325 = vadd.f32 %v2156, %v2324
        %2326 = vmatmul.bf16.gmra.mxu0 %v1089
        %v2327 = vpop.f32.mrf.mxu0
        %v2328 = vadd.f32 %v2159, %v2327
        %v2329 = vpop.f32.mrf.mxu0
        %v2330 = vadd.f32 %v2161, %v2329
        %2331 = vmatmul.bf16.gmra.mxu0 %v1094
        %v2332 = vpop.f32.mrf.mxu0
        %v2333 = vadd.f32 %v2164, %v2332
        %v2334 = vpop.f32.mrf.mxu0
        %v2335 = vadd.f32 %v2166, %v2334
        %2336 = vmatmul.bf16.gmra.mxu0 %v1099
        %v2337 = vpop.f32.mrf.mxu0
        %v2338 = vadd.f32 %v2169, %v2337
        %v2339 = vpop.f32.mrf.mxu0
        %v2340 = vadd.f32 %v2171, %v2339
        %2341 = vmatmul.bf16.gmra.mxu0 %v1104
        %v2342 = vpop.f32.mrf.mxu0
        %v2343 = vadd.f32 %v2174, %v2342
        %v2344 = vpop.f32.mrf.mxu0
        %v2345 = vadd.f32 %v2176, %v2344
        %2346 = vmatmul.bf16.gmra.mxu0 %v1109
        %v2347 = vpop.f32.mrf.mxu0
        %v2348 = vadd.f32 %v2179, %v2347
        %v2349 = vpop.f32.mrf.mxu0
        %v2350 = vadd.f32 %v2181, %v2349
        %2351 = vmatmul.bf16.gmra.mxu0 %v1114
        %v2352 = vpop.f32.mrf.mxu0
        %v2353 = vadd.f32 %v2184, %v2352
        %v2354 = vpop.f32.mrf.mxu0
        %v2355 = vadd.f32 %v2186, %v2354
        %2356 = vmatmul.bf16.gmra.mxu0 %v1119
        %v2357 = vpop.f32.mrf.mxu0
        %v2358 = vadd.f32 %v2189, %v2357
        %v2359 = vpop.f32.mrf.mxu0
        %v2360 = vadd.f32 %v2191, %v2359
        %2361 = vmatmul.bf16.gmra.mxu0 %v1124
        %v2362 = vpop.f32.mrf.mxu0
        %v2363 = vadd.f32 %v2194, %v2362
        %v2364 = vpop.f32.mrf.mxu0
        %v2365 = vadd.f32 %v2196, %v2364
        %2366 = vmatmul.bf16.gmra.mxu0 %v1129
        %v2367 = vpop.f32.mrf.mxu0
        %v2368 = vadd.f32 %v2199, %v2367
        %v2369 = vpop.f32.mrf.mxu0
        %v2370 = vadd.f32 %v2201, %v2369
        %2371 = vmatmul.bf16.gmra.mxu0 %v1134
        %v2372 = vpop.f32.mrf.mxu0
        %v2373 = vadd.f32 %v2204, %v2372
        %v2374 = vpop.f32.mrf.mxu0
        %v2375 = vadd.f32 %v2206, %v2374
        %2376 = vmatmul.bf16.gmra.mxu0 %v1139
        %v2377 = vpop.f32.mrf.mxu0
        %v2378 = vadd.f32 %v2209, %v2377
        %v2379 = vpop.f32.mrf.mxu0
        %v2380 = vadd.f32 %v2211, %v2379
        %2381 = vmatmul.bf16.gmra.mxu0 %v1144
        %v2382 = vpop.f32.mrf.mxu0
        %v2383 = vadd.f32 %v2214, %v2382
        %v2384 = vpop.f32.mrf.mxu0
        %v2385 = vadd.f32 %v2216, %v2384
        %2386 = vmatmul.bf16.gmra.mxu0 %v1149
        %v2387 = vpop.f32.mrf.mxu0
        %v2388 = vadd.f32 %v2219, %v2387
        %v2389 = vpop.f32.mrf.mxu0
        %v2390 = vadd.f32 %v2221, %v2389
        %2391 = vmatmul.bf16.gmra.mxu0 %v1154
        %v2392 = vpop.f32.mrf.mxu0
        %v2393 = vadd.f32 %v2224, %v2392
        %v2394 = vpop.f32.mrf.mxu0
        %v2395 = vadd.f32 %v2226, %v2394
        %2396 = vmatmul.bf16.gmra.mxu0 %v1159
        %v2397 = vpop.f32.mrf.mxu0
        %v2398 = vadd.f32 %v2229, %v2397
        %v2399 = vpop.f32.mrf.mxu0
        %v2400 = vadd.f32 %v2231, %v2399
        %2401 = vmatmul.bf16.gmra.mxu0 %v1164
        %v2402 = vpop.f32.mrf.mxu0
        %v2403 = vadd.f32 %v2234, %v2402
        %v2404 = vpop.f32.mrf.mxu0
        %v2405 = vadd.f32 %v2236, %v2404
        %2406 = vdwg.mxu0
        %2407 = vmatpush.bf16.msra.mxu0 0
        %2408 = vmatpush.bf16.msra.mxu0 0
        %2409 = vmatpush.bf16.msra.mxu0 0
        %2410 = vmatpush.bf16.msra.mxu0 0
        %2411 = vmatpush.bf16.msra.mxu0 0
        %2412 = vmatpush.bf16.msra.mxu0 0
        %2413 = vmatpush.bf16.msra.mxu0 %v1564
        %2414 = vmatpush.bf16.msra.mxu0 %v1562
        %2415 = vmatmul.bf16.gmra.mxu0 %v1636
        %v2416 = vpop.f32.mrf.mxu0
        %v2417 = vadd.f32 %v2248, %v2416
        %v2418 = vpop.f32.mrf.mxu0
        %v2419 = vadd.f32 %v2250, %v2418
        %2420 = vmatmul.bf16.gmra.mxu0 %v1639
        %v2421 = vpop.f32.mrf.mxu0
        %v2422 = vadd.f32 %v2253, %v2421
        %v2423 = vpop.f32.mrf.mxu0
        %v2424 = vadd.f32 %v2255, %v2423
        %2425 = vmatmul.bf16.gmra.mxu0 %v1642
        %v2426 = vpop.f32.mrf.mxu0
        %v2427 = vadd.f32 %v2258, %v2426
        %v2428 = vpop.f32.mrf.mxu0
        %v2429 = vadd.f32 %v2260, %v2428
        %2430 = vmatmul.bf16.gmra.mxu0 %v1645
        %v2431 = vpop.f32.mrf.mxu0
        %v2432 = vadd.f32 %v2263, %v2431
        %v2433 = vpop.f32.mrf.mxu0
        %v2434 = vadd.f32 %v2265, %v2433
        %2435 = vmatmul.bf16.gmra.mxu0 %v1648
        %v2436 = vpop.f32.mrf.mxu0
        %v2437 = vadd.f32 %v2268, %v2436
        %v2438 = vpop.f32.mrf.mxu0
        %v2439 = vadd.f32 %v2270, %v2438
        %2440 = vmatmul.bf16.gmra.mxu0 %v1651
        %v2441 = vpop.f32.mrf.mxu0
        %v2442 = vadd.f32 %v2273, %v2441
        %v2443 = vpop.f32.mrf.mxu0
        %v2444 = vadd.f32 %v2275, %v2443
        %2445 = vmatmul.bf16.gmra.mxu0 %v1654
        %v2446 = vpop.f32.mrf.mxu0
        %v2447 = vadd.f32 %v2278, %v2446
        %v2448 = vpop.f32.mrf.mxu0
        %v2449 = vadd.f32 %v2280, %v2448
        %2450 = vmatmul.bf16.gmra.mxu0 %v1657
        %v2451 = vpop.f32.mrf.mxu0
        %v2452 = vadd.f32 %v2283, %v2451
        %v2453 = vpop.f32.mrf.mxu0
        %v2454 = vadd.f32 %v2285, %v2453
        %2455 = vmatmul.bf16.gmra.mxu0 %v1660
        %v2456 = vpop.f32.mrf.mxu0
        %v2457 = vadd.f32 %v2288, %v2456
        %v2458 = vpop.f32.mrf.mxu0
        %v2459 = vadd.f32 %v2290, %v2458
        %2460 = vmatmul.bf16.gmra.mxu0 %v1663
        %v2461 = vpop.f32.mrf.mxu0
        %v2462 = vadd.f32 %v2293, %v2461
        %v2463 = vpop.f32.mrf.mxu0
        %v2464 = vadd.f32 %v2295, %v2463
        %2465 = vmatmul.bf16.gmra.mxu0 %v1666
        %v2466 = vpop.f32.mrf.mxu0
        %v2467 = vadd.f32 %v2298, %v2466
        %v2468 = vpop.f32.mrf.mxu0
        %v2469 = vadd.f32 %v2300, %v2468
        %2470 = vmatmul.bf16.gmra.mxu0 %v1669
        %v2471 = vpop.f32.mrf.mxu0
        %v2472 = vadd.f32 %v2303, %v2471
        %v2473 = vpop.f32.mrf.mxu0
        %v2474 = vadd.f32 %v2305, %v2473
        %2475 = vmatmul.bf16.gmra.mxu0 %v1672
        %v2476 = vpop.f32.mrf.mxu0
        %v2477 = vadd.f32 %v2308, %v2476
        %v2478 = vpop.f32.mrf.mxu0
        %v2479 = vadd.f32 %v2310, %v2478
        %2480 = vmatmul.bf16.gmra.mxu0 %v1675
        %v2481 = vpop.f32.mrf.mxu0
        %v2482 = vadd.f32 %v2313, %v2481
        %v2483 = vpop.f32.mrf.mxu0
        %v2484 = vadd.f32 %v2315, %v2483
        %2485 = vmatmul.bf16.gmra.mxu0 %v1678
        %v2486 = vpop.f32.mrf.mxu0
        %v2487 = vadd.f32 %v2318, %v2486
        %v2488 = vpop.f32.mrf.mxu0
        %v2489 = vadd.f32 %v2320, %v2488
        %2490 = vmatmul.bf16.gmra.mxu0 %v1681
        %v2491 = vpop.f32.mrf.mxu0
        %v2492 = vadd.f32 %v2323, %v2491
        %v2493 = vpop.f32.mrf.mxu0
        %v2494 = vadd.f32 %v2325, %v2493
        %2495 = vmatmul.bf16.gmra.mxu0 %v1684
        %v2496 = vpop.f32.mrf.mxu0
        %v2497 = vadd.f32 %v2328, %v2496
        %v2498 = vpop.f32.mrf.mxu0
        %v2499 = vadd.f32 %v2330, %v2498
        %2500 = vmatmul.bf16.gmra.mxu0 %v1687
        %v2501 = vpop.f32.mrf.mxu0
        %v2502 = vadd.f32 %v2333, %v2501
        %v2503 = vpop.f32.mrf.mxu0
        %v2504 = vadd.f32 %v2335, %v2503
        %2505 = vmatmul.bf16.gmra.mxu0 %v1690
        %v2506 = vpop.f32.mrf.mxu0
        %v2507 = vadd.f32 %v2338, %v2506
        %v2508 = vpop.f32.mrf.mxu0
        %v2509 = vadd.f32 %v2340, %v2508
        %2510 = vmatmul.bf16.gmra.mxu0 %v1693
        %v2511 = vpop.f32.mrf.mxu0
        %v2512 = vadd.f32 %v2343, %v2511
        %v2513 = vpop.f32.mrf.mxu0
        %v2514 = vadd.f32 %v2345, %v2513
        %2515 = vmatmul.bf16.gmra.mxu0 %v1696
        %v2516 = vpop.f32.mrf.mxu0
        %v2517 = vadd.f32 %v2348, %v2516
        %v2518 = vpop.f32.mrf.mxu0
        %v2519 = vadd.f32 %v2350, %v2518
        %2520 = vmatmul.bf16.gmra.mxu0 %v1699
        %v2521 = vpop.f32.mrf.mxu0
        %v2522 = vadd.f32 %v2353, %v2521
        %v2523 = vpop.f32.mrf.mxu0
        %v2524 = vadd.f32 %v2355, %v2523
        %2525 = vmatmul.bf16.gmra.mxu0 %v1702
        %v2526 = vpop.f32.mrf.mxu0
        %v2527 = vadd.f32 %v2358, %v2526
        %v2528 = vpop.f32.mrf.mxu0
        %v2529 = vadd.f32 %v2360, %v2528
        %2530 = vmatmul.bf16.gmra.mxu0 %v1705
        %v2531 = vpop.f32.mrf.mxu0
        %v2532 = vadd.f32 %v2363, %v2531
        %v2533 = vpop.f32.mrf.mxu0
        %v2534 = vadd.f32 %v2365, %v2533
        %2535 = vmatmul.bf16.gmra.mxu0 %v1708
        %v2536 = vpop.f32.mrf.mxu0
        %v2537 = vadd.f32 %v2368, %v2536
        %v2538 = vpop.f32.mrf.mxu0
        %v2539 = vadd.f32 %v2370, %v2538
        %2540 = vmatmul.bf16.gmra.mxu0 %v1711
        %v2541 = vpop.f32.mrf.mxu0
        %v2542 = vadd.f32 %v2373, %v2541
        %v2543 = vpop.f32.mrf.mxu0
        %v2544 = vadd.f32 %v2375, %v2543
        %2545 = vmatmul.bf16.gmra.mxu0 %v1714
        %v2546 = vpop.f32.mrf.mxu0
        %v2547 = vadd.f32 %v2378, %v2546
        %v2548 = vpop.f32.mrf.mxu0
        %v2549 = vadd.f32 %v2380, %v2548
        %2550 = vmatmul.bf16.gmra.mxu0 %v1717
        %v2551 = vpop.f32.mrf.mxu0
        %v2552 = vadd.f32 %v2383, %v2551
        %v2553 = vpop.f32.mrf.mxu0
        %v2554 = vadd.f32 %v2385, %v2553
        %2555 = vmatmul.bf16.gmra.mxu0 %v1720
        %v2556 = vpop.f32.mrf.mxu0
        %v2557 = vadd.f32 %v2388, %v2556
        %v2558 = vpop.f32.mrf.mxu0
        %v2559 = vadd.f32 %v2390, %v2558
        %2560 = vmatmul.bf16.gmra.mxu0 %v1723
        %v2561 = vpop.f32.mrf.mxu0
        %v2562 = vadd.f32 %v2393, %v2561
        %v2563 = vpop.f32.mrf.mxu0
        %v2564 = vadd.f32 %v2395, %v2563
        %2565 = vmatmul.bf16.gmra.mxu0 %v1726
        %v2566 = vpop.f32.mrf.mxu0
        %v2567 = vadd.f32 %v2398, %v2566
        %v2568 = vpop.f32.mrf.mxu0
        %v2569 = vadd.f32 %v2400, %v2568
        %2570 = vmatmul.bf16.gmra.mxu0 %v1729
        %v2571 = vpop.f32.mrf.mxu0
        %v2572 = vadd.f32 %v2403, %v2571
        %v2573 = vpop.f32.mrf.mxu0
        %v2574 = vadd.f32 %v2405, %v2573
        %2575 = vdwg.mxu0
        %2576 = vmatpush.bf16.msra.mxu0 %v1513
        %2577 = vmatpush.bf16.msra.mxu0 %v1511
        %2578 = vmatpush.bf16.msra.mxu0 %v1509
        %2579 = vmatpush.bf16.msra.mxu0 %v1507
        %2580 = vmatpush.bf16.msra.mxu0 %v1505
        %2581 = vmatpush.bf16.msra.mxu0 %v1503
        %2582 = vmatpush.bf16.msra.mxu0 %v1501
        %2583 = vmatpush.bf16.msra.mxu0 %v1499
        %2584 = vmatmul.bf16.gmra.mxu0 %v1006
        %v2585 = vpop.f32.mrf.mxu0
        %v2586 = vadd.f32 0.0, %v2585
        %v2587 = vpop.f32.mrf.mxu0
        %v2588 = vadd.f32 0.0, %v2587
        %2589 = vmatmul.bf16.gmra.mxu0 %v1011
        %v2590 = vpop.f32.mrf.mxu0
        %v2591 = vadd.f32 0.0, %v2590
        %v2592 = vpop.f32.mrf.mxu0
        %v2593 = vadd.f32 0.0, %v2592
        %2594 = vmatmul.bf16.gmra.mxu0 %v1016
        %v2595 = vpop.f32.mrf.mxu0
        %v2596 = vadd.f32 0.0, %v2595
        %v2597 = vpop.f32.mrf.mxu0
        %v2598 = vadd.f32 0.0, %v2597
        %2599 = vmatmul.bf16.gmra.mxu0 %v1021
        %v2600 = vpop.f32.mrf.mxu0
        %v2601 = vadd.f32 0.0, %v2600
        %v2602 = vpop.f32.mrf.mxu0
        %v2603 = vadd.f32 0.0, %v2602
        %2604 = vmatmul.bf16.gmra.mxu0 %v1026
        %v2605 = vpop.f32.mrf.mxu0
        %v2606 = vadd.f32 0.0, %v2605
        %v2607 = vpop.f32.mrf.mxu0
        %v2608 = vadd.f32 0.0, %v2607
        %2609 = vmatmul.bf16.gmra.mxu0 %v1031
        %v2610 = vpop.f32.mrf.mxu0
        %v2611 = vadd.f32 0.0, %v2610
        %v2612 = vpop.f32.mrf.mxu0
        %v2613 = vadd.f32 0.0, %v2612
        %2614 = vmatmul.bf16.gmra.mxu0 %v1036
        %v2615 = vpop.f32.mrf.mxu0
        %v2616 = vadd.f32 0.0, %v2615
        %v2617 = vpop.f32.mrf.mxu0
        %v2618 = vadd.f32 0.0, %v2617
        %2619 = vmatmul.bf16.gmra.mxu0 %v1041
        %v2620 = vpop.f32.mrf.mxu0
        %v2621 = vadd.f32 0.0, %v2620
        %v2622 = vpop.f32.mrf.mxu0
        %v2623 = vadd.f32 0.0, %v2622
        %2624 = vmatmul.bf16.gmra.mxu0 %v1046
        %v2625 = vpop.f32.mrf.mxu0
        %v2626 = vadd.f32 0.0, %v2625
        %v2627 = vpop.f32.mrf.mxu0
        %v2628 = vadd.f32 0.0, %v2627
        %2629 = vmatmul.bf16.gmra.mxu0 %v1051
        %v2630 = vpop.f32.mrf.mxu0
        %v2631 = vadd.f32 0.0, %v2630
        %v2632 = vpop.f32.mrf.mxu0
        %v2633 = vadd.f32 0.0, %v2632
        %2634 = vmatmul.bf16.gmra.mxu0 %v1056
        %v2635 = vpop.f32.mrf.mxu0
        %v2636 = vadd.f32 0.0, %v2635
        %v2637 = vpop.f32.mrf.mxu0
        %v2638 = vadd.f32 0.0, %v2637
        %2639 = vmatmul.bf16.gmra.mxu0 %v1061
        %v2640 = vpop.f32.mrf.mxu0
        %v2641 = vadd.f32 0.0, %v2640
        %v2642 = vpop.f32.mrf.mxu0
        %v2643 = vadd.f32 0.0, %v2642
        %2644 = vmatmul.bf16.gmra.mxu0 %v1066
        %v2645 = vpop.f32.mrf.mxu0
        %v2646 = vadd.f32 0.0, %v2645
        %v2647 = vpop.f32.mrf.mxu0
        %v2648 = vadd.f32 0.0, %v2647
        %2649 = vmatmul.bf16.gmra.mxu0 %v1071
        %v2650 = vpop.f32.mrf.mxu0
        %v2651 = vadd.f32 0.0, %v2650
        %v2652 = vpop.f32.mrf.mxu0
        %v2653 = vadd.f32 0.0, %v2652
        %2654 = vmatmul.bf16.gmra.mxu0 %v1076
        %v2655 = vpop.f32.mrf.mxu0
        %v2656 = vadd.f32 0.0, %v2655
        %v2657 = vpop.f32.mrf.mxu0
        %v2658 = vadd.f32 0.0, %v2657
        %2659 = vmatmul.bf16.gmra.mxu0 %v1081
        %v2660 = vpop.f32.mrf.mxu0
        %v2661 = vadd.f32 0.0, %v2660
        %v2662 = vpop.f32.mrf.mxu0
        %v2663 = vadd.f32 0.0, %v2662
        %2664 = vmatmul.bf16.gmra.mxu0 %v1086
        %v2665 = vpop.f32.mrf.mxu0
        %v2666 = vadd.f32 0.0, %v2665
        %v2667 = vpop.f32.mrf.mxu0
        %v2668 = vadd.f32 0.0, %v2667
        %2669 = vmatmul.bf16.gmra.mxu0 %v1091
        %v2670 = vpop.f32.mrf.mxu0
        %v2671 = vadd.f32 0.0, %v2670
        %v2672 = vpop.f32.mrf.mxu0
        %v2673 = vadd.f32 0.0, %v2672
        %2674 = vmatmul.bf16.gmra.mxu0 %v1096
        %v2675 = vpop.f32.mrf.mxu0
        %v2676 = vadd.f32 0.0, %v2675
        %v2677 = vpop.f32.mrf.mxu0
        %v2678 = vadd.f32 0.0, %v2677
        %2679 = vmatmul.bf16.gmra.mxu0 %v1101
        %v2680 = vpop.f32.mrf.mxu0
        %v2681 = vadd.f32 0.0, %v2680
        %v2682 = vpop.f32.mrf.mxu0
        %v2683 = vadd.f32 0.0, %v2682
        %2684 = vmatmul.bf16.gmra.mxu0 %v1106
        %v2685 = vpop.f32.mrf.mxu0
        %v2686 = vadd.f32 0.0, %v2685
        %v2687 = vpop.f32.mrf.mxu0
        %v2688 = vadd.f32 0.0, %v2687
        %2689 = vmatmul.bf16.gmra.mxu0 %v1111
        %v2690 = vpop.f32.mrf.mxu0
        %v2691 = vadd.f32 0.0, %v2690
        %v2692 = vpop.f32.mrf.mxu0
        %v2693 = vadd.f32 0.0, %v2692
        %2694 = vmatmul.bf16.gmra.mxu0 %v1116
        %v2695 = vpop.f32.mrf.mxu0
        %v2696 = vadd.f32 0.0, %v2695
        %v2697 = vpop.f32.mrf.mxu0
        %v2698 = vadd.f32 0.0, %v2697
        %2699 = vmatmul.bf16.gmra.mxu0 %v1121
        %v2700 = vpop.f32.mrf.mxu0
        %v2701 = vadd.f32 0.0, %v2700
        %v2702 = vpop.f32.mrf.mxu0
        %v2703 = vadd.f32 0.0, %v2702
        %2704 = vmatmul.bf16.gmra.mxu0 %v1126
        %v2705 = vpop.f32.mrf.mxu0
        %v2706 = vadd.f32 0.0, %v2705
        %v2707 = vpop.f32.mrf.mxu0
        %v2708 = vadd.f32 0.0, %v2707
        %2709 = vmatmul.bf16.gmra.mxu0 %v1131
        %v2710 = vpop.f32.mrf.mxu0
        %v2711 = vadd.f32 0.0, %v2710
        %v2712 = vpop.f32.mrf.mxu0
        %v2713 = vadd.f32 0.0, %v2712
        %2714 = vmatmul.bf16.gmra.mxu0 %v1136
        %v2715 = vpop.f32.mrf.mxu0
        %v2716 = vadd.f32 0.0, %v2715
        %v2717 = vpop.f32.mrf.mxu0
        %v2718 = vadd.f32 0.0, %v2717
        %2719 = vmatmul.bf16.gmra.mxu0 %v1141
        %v2720 = vpop.f32.mrf.mxu0
        %v2721 = vadd.f32 0.0, %v2720
        %v2722 = vpop.f32.mrf.mxu0
        %v2723 = vadd.f32 0.0, %v2722
        %2724 = vmatmul.bf16.gmra.mxu0 %v1146
        %v2725 = vpop.f32.mrf.mxu0
        %v2726 = vadd.f32 0.0, %v2725
        %v2727 = vpop.f32.mrf.mxu0
        %v2728 = vadd.f32 0.0, %v2727
        %2729 = vmatmul.bf16.gmra.mxu0 %v1151
        %v2730 = vpop.f32.mrf.mxu0
        %v2731 = vadd.f32 0.0, %v2730
        %v2732 = vpop.f32.mrf.mxu0
        %v2733 = vadd.f32 0.0, %v2732
        %2734 = vmatmul.bf16.gmra.mxu0 %v1156
        %v2735 = vpop.f32.mrf.mxu0
        %v2736 = vadd.f32 0.0, %v2735
        %v2737 = vpop.f32.mrf.mxu0
        %v2738 = vadd.f32 0.0, %v2737
        %2739 = vmatmul.bf16.gmra.mxu0 %v1161
        %v2740 = vpop.f32.mrf.mxu0
        %v2741 = vadd.f32 0.0, %v2740
        %v2742 = vpop.f32.mrf.mxu0
        %v2743 = vadd.f32 0.0, %v2742
        %2744 = vdwg.mxu0
        %2745 = vmatpush.bf16.msra.mxu0 %v1529
        %2746 = vmatpush.bf16.msra.mxu0 %v1527
        %2747 = vmatpush.bf16.msra.mxu0 %v1525
        %2748 = vmatpush.bf16.msra.mxu0 %v1523
        %2749 = vmatpush.bf16.msra.mxu0 %v1521
        %2750 = vmatpush.bf16.msra.mxu0 %v1519
        %2751 = vmatpush.bf16.msra.mxu0 %v1517
        %2752 = vmatpush.bf16.msra.mxu0 %v1515
        %2753 = vmatmul.bf16.gmra.mxu0 %v1007
        %v2754 = vpop.f32.mrf.mxu0
        %v2755 = vadd.f32 %v2586, %v2754
        %v2756 = vpop.f32.mrf.mxu0
        %v2757 = vadd.f32 %v2588, %v2756
        %2758 = vmatmul.bf16.gmra.mxu0 %v1012
        %v2759 = vpop.f32.mrf.mxu0
        %v2760 = vadd.f32 %v2591, %v2759
        %v2761 = vpop.f32.mrf.mxu0
        %v2762 = vadd.f32 %v2593, %v2761
        %2763 = vmatmul.bf16.gmra.mxu0 %v1017
        %v2764 = vpop.f32.mrf.mxu0
        %v2765 = vadd.f32 %v2596, %v2764
        %v2766 = vpop.f32.mrf.mxu0
        %v2767 = vadd.f32 %v2598, %v2766
        %2768 = vmatmul.bf16.gmra.mxu0 %v1022
        %v2769 = vpop.f32.mrf.mxu0
        %v2770 = vadd.f32 %v2601, %v2769
        %v2771 = vpop.f32.mrf.mxu0
        %v2772 = vadd.f32 %v2603, %v2771
        %2773 = vmatmul.bf16.gmra.mxu0 %v1027
        %v2774 = vpop.f32.mrf.mxu0
        %v2775 = vadd.f32 %v2606, %v2774
        %v2776 = vpop.f32.mrf.mxu0
        %v2777 = vadd.f32 %v2608, %v2776
        %2778 = vmatmul.bf16.gmra.mxu0 %v1032
        %v2779 = vpop.f32.mrf.mxu0
        %v2780 = vadd.f32 %v2611, %v2779
        %v2781 = vpop.f32.mrf.mxu0
        %v2782 = vadd.f32 %v2613, %v2781
        %2783 = vmatmul.bf16.gmra.mxu0 %v1037
        %v2784 = vpop.f32.mrf.mxu0
        %v2785 = vadd.f32 %v2616, %v2784
        %v2786 = vpop.f32.mrf.mxu0
        %v2787 = vadd.f32 %v2618, %v2786
        %2788 = vmatmul.bf16.gmra.mxu0 %v1042
        %v2789 = vpop.f32.mrf.mxu0
        %v2790 = vadd.f32 %v2621, %v2789
        %v2791 = vpop.f32.mrf.mxu0
        %v2792 = vadd.f32 %v2623, %v2791
        %2793 = vmatmul.bf16.gmra.mxu0 %v1047
        %v2794 = vpop.f32.mrf.mxu0
        %v2795 = vadd.f32 %v2626, %v2794
        %v2796 = vpop.f32.mrf.mxu0
        %v2797 = vadd.f32 %v2628, %v2796
        %2798 = vmatmul.bf16.gmra.mxu0 %v1052
        %v2799 = vpop.f32.mrf.mxu0
        %v2800 = vadd.f32 %v2631, %v2799
        %v2801 = vpop.f32.mrf.mxu0
        %v2802 = vadd.f32 %v2633, %v2801
        %2803 = vmatmul.bf16.gmra.mxu0 %v1057
        %v2804 = vpop.f32.mrf.mxu0
        %v2805 = vadd.f32 %v2636, %v2804
        %v2806 = vpop.f32.mrf.mxu0
        %v2807 = vadd.f32 %v2638, %v2806
        %2808 = vmatmul.bf16.gmra.mxu0 %v1062
        %v2809 = vpop.f32.mrf.mxu0
        %v2810 = vadd.f32 %v2641, %v2809
        %v2811 = vpop.f32.mrf.mxu0
        %v2812 = vadd.f32 %v2643, %v2811
        %2813 = vmatmul.bf16.gmra.mxu0 %v1067
        %v2814 = vpop.f32.mrf.mxu0
        %v2815 = vadd.f32 %v2646, %v2814
        %v2816 = vpop.f32.mrf.mxu0
        %v2817 = vadd.f32 %v2648, %v2816
        %2818 = vmatmul.bf16.gmra.mxu0 %v1072
        %v2819 = vpop.f32.mrf.mxu0
        %v2820 = vadd.f32 %v2651, %v2819
        %v2821 = vpop.f32.mrf.mxu0
        %v2822 = vadd.f32 %v2653, %v2821
        %2823 = vmatmul.bf16.gmra.mxu0 %v1077
        %v2824 = vpop.f32.mrf.mxu0
        %v2825 = vadd.f32 %v2656, %v2824
        %v2826 = vpop.f32.mrf.mxu0
        %v2827 = vadd.f32 %v2658, %v2826
        %2828 = vmatmul.bf16.gmra.mxu0 %v1082
        %v2829 = vpop.f32.mrf.mxu0
        %v2830 = vadd.f32 %v2661, %v2829
        %v2831 = vpop.f32.mrf.mxu0
        %v2832 = vadd.f32 %v2663, %v2831
        %2833 = vmatmul.bf16.gmra.mxu0 %v1087
        %v2834 = vpop.f32.mrf.mxu0
        %v2835 = vadd.f32 %v2666, %v2834
        %v2836 = vpop.f32.mrf.mxu0
        %v2837 = vadd.f32 %v2668, %v2836
        %2838 = vmatmul.bf16.gmra.mxu0 %v1092
        %v2839 = vpop.f32.mrf.mxu0
        %v2840 = vadd.f32 %v2671, %v2839
        %v2841 = vpop.f32.mrf.mxu0
        %v2842 = vadd.f32 %v2673, %v2841
        %2843 = vmatmul.bf16.gmra.mxu0 %v1097
        %v2844 = vpop.f32.mrf.mxu0
        %v2845 = vadd.f32 %v2676, %v2844
        %v2846 = vpop.f32.mrf.mxu0
        %v2847 = vadd.f32 %v2678, %v2846
        %2848 = vmatmul.bf16.gmra.mxu0 %v1102
        %v2849 = vpop.f32.mrf.mxu0
        %v2850 = vadd.f32 %v2681, %v2849
        %v2851 = vpop.f32.mrf.mxu0
        %v2852 = vadd.f32 %v2683, %v2851
        %2853 = vmatmul.bf16.gmra.mxu0 %v1107
        %v2854 = vpop.f32.mrf.mxu0
        %v2855 = vadd.f32 %v2686, %v2854
        %v2856 = vpop.f32.mrf.mxu0
        %v2857 = vadd.f32 %v2688, %v2856
        %2858 = vmatmul.bf16.gmra.mxu0 %v1112
        %v2859 = vpop.f32.mrf.mxu0
        %v2860 = vadd.f32 %v2691, %v2859
        %v2861 = vpop.f32.mrf.mxu0
        %v2862 = vadd.f32 %v2693, %v2861
        %2863 = vmatmul.bf16.gmra.mxu0 %v1117
        %v2864 = vpop.f32.mrf.mxu0
        %v2865 = vadd.f32 %v2696, %v2864
        %v2866 = vpop.f32.mrf.mxu0
        %v2867 = vadd.f32 %v2698, %v2866
        %2868 = vmatmul.bf16.gmra.mxu0 %v1122
        %v2869 = vpop.f32.mrf.mxu0
        %v2870 = vadd.f32 %v2701, %v2869
        %v2871 = vpop.f32.mrf.mxu0
        %v2872 = vadd.f32 %v2703, %v2871
        %2873 = vmatmul.bf16.gmra.mxu0 %v1127
        %v2874 = vpop.f32.mrf.mxu0
        %v2875 = vadd.f32 %v2706, %v2874
        %v2876 = vpop.f32.mrf.mxu0
        %v2877 = vadd.f32 %v2708, %v2876
        %2878 = vmatmul.bf16.gmra.mxu0 %v1132
        %v2879 = vpop.f32.mrf.mxu0
        %v2880 = vadd.f32 %v2711, %v2879
        %v2881 = vpop.f32.mrf.mxu0
        %v2882 = vadd.f32 %v2713, %v2881
        %2883 = vmatmul.bf16.gmra.mxu0 %v1137
        %v2884 = vpop.f32.mrf.mxu0
        %v2885 = vadd.f32 %v2716, %v2884
        %v2886 = vpop.f32.mrf.mxu0
        %v2887 = vadd.f32 %v2718, %v2886
        %2888 = vmatmul.bf16.gmra.mxu0 %v1142
        %v2889 = vpop.f32.mrf.mxu0
        %v2890 = vadd.f32 %v2721, %v2889
        %v2891 = vpop.f32.mrf.mxu0
        %v2892 = vadd.f32 %v2723, %v2891
        %2893 = vmatmul.bf16.gmra.mxu0 %v1147
        %v2894 = vpop.f32.mrf.mxu0
        %v2895 = vadd.f32 %v2726, %v2894
        %v2896 = vpop.f32.mrf.mxu0
        %v2897 = vadd.f32 %v2728, %v2896
        %2898 = vmatmul.bf16.gmra.mxu0 %v1152
        %v2899 = vpop.f32.mrf.mxu0
        %v2900 = vadd.f32 %v2731, %v2899
        %v2901 = vpop.f32.mrf.mxu0
        %v2902 = vadd.f32 %v2733, %v2901
        %2903 = vmatmul.bf16.gmra.mxu0 %v1157
        %v2904 = vpop.f32.mrf.mxu0
        %v2905 = vadd.f32 %v2736, %v2904
        %v2906 = vpop.f32.mrf.mxu0
        %v2907 = vadd.f32 %v2738, %v2906
        %2908 = vmatmul.bf16.gmra.mxu0 %v1162
        %v2909 = vpop.f32.mrf.mxu0
        %v2910 = vadd.f32 %v2741, %v2909
        %v2911 = vpop.f32.mrf.mxu0
        %v2912 = vadd.f32 %v2743, %v2911
        %2913 = vdwg.mxu0
        %2914 = vmatpush.bf16.msra.mxu0 %v1545
        %2915 = vmatpush.bf16.msra.mxu0 %v1543
        %2916 = vmatpush.bf16.msra.mxu0 %v1541
        %2917 = vmatpush.bf16.msra.mxu0 %v1539
        %2918 = vmatpush.bf16.msra.mxu0 %v1537
        %2919 = vmatpush.bf16.msra.mxu0 %v1535
        %2920 = vmatpush.bf16.msra.mxu0 %v1533
        %2921 = vmatpush.bf16.msra.mxu0 %v1531
        %2922 = vmatmul.bf16.gmra.mxu0 %v1008
        %v2923 = vpop.f32.mrf.mxu0
        %v2924 = vadd.f32 %v2755, %v2923
        %v2925 = vpop.f32.mrf.mxu0
        %v2926 = vadd.f32 %v2757, %v2925
        %2927 = vmatmul.bf16.gmra.mxu0 %v1013
        %v2928 = vpop.f32.mrf.mxu0
        %v2929 = vadd.f32 %v2760, %v2928
        %v2930 = vpop.f32.mrf.mxu0
        %v2931 = vadd.f32 %v2762, %v2930
        %2932 = vmatmul.bf16.gmra.mxu0 %v1018
        %v2933 = vpop.f32.mrf.mxu0
        %v2934 = vadd.f32 %v2765, %v2933
        %v2935 = vpop.f32.mrf.mxu0
        %v2936 = vadd.f32 %v2767, %v2935
        %2937 = vmatmul.bf16.gmra.mxu0 %v1023
        %v2938 = vpop.f32.mrf.mxu0
        %v2939 = vadd.f32 %v2770, %v2938
        %v2940 = vpop.f32.mrf.mxu0
        %v2941 = vadd.f32 %v2772, %v2940
        %2942 = vmatmul.bf16.gmra.mxu0 %v1028
        %v2943 = vpop.f32.mrf.mxu0
        %v2944 = vadd.f32 %v2775, %v2943
        %v2945 = vpop.f32.mrf.mxu0
        %v2946 = vadd.f32 %v2777, %v2945
        %2947 = vmatmul.bf16.gmra.mxu0 %v1033
        %v2948 = vpop.f32.mrf.mxu0
        %v2949 = vadd.f32 %v2780, %v2948
        %v2950 = vpop.f32.mrf.mxu0
        %v2951 = vadd.f32 %v2782, %v2950
        %2952 = vmatmul.bf16.gmra.mxu0 %v1038
        %v2953 = vpop.f32.mrf.mxu0
        %v2954 = vadd.f32 %v2785, %v2953
        %v2955 = vpop.f32.mrf.mxu0
        %v2956 = vadd.f32 %v2787, %v2955
        %2957 = vmatmul.bf16.gmra.mxu0 %v1043
        %v2958 = vpop.f32.mrf.mxu0
        %v2959 = vadd.f32 %v2790, %v2958
        %v2960 = vpop.f32.mrf.mxu0
        %v2961 = vadd.f32 %v2792, %v2960
        %2962 = vmatmul.bf16.gmra.mxu0 %v1048
        %v2963 = vpop.f32.mrf.mxu0
        %v2964 = vadd.f32 %v2795, %v2963
        %v2965 = vpop.f32.mrf.mxu0
        %v2966 = vadd.f32 %v2797, %v2965
        %2967 = vmatmul.bf16.gmra.mxu0 %v1053
        %v2968 = vpop.f32.mrf.mxu0
        %v2969 = vadd.f32 %v2800, %v2968
        %v2970 = vpop.f32.mrf.mxu0
        %v2971 = vadd.f32 %v2802, %v2970
        %2972 = vmatmul.bf16.gmra.mxu0 %v1058
        %v2973 = vpop.f32.mrf.mxu0
        %v2974 = vadd.f32 %v2805, %v2973
        %v2975 = vpop.f32.mrf.mxu0
        %v2976 = vadd.f32 %v2807, %v2975
        %2977 = vmatmul.bf16.gmra.mxu0 %v1063
        %v2978 = vpop.f32.mrf.mxu0
        %v2979 = vadd.f32 %v2810, %v2978
        %v2980 = vpop.f32.mrf.mxu0
        %v2981 = vadd.f32 %v2812, %v2980
        %2982 = vmatmul.bf16.gmra.mxu0 %v1068
        %v2983 = vpop.f32.mrf.mxu0
        %v2984 = vadd.f32 %v2815, %v2983
        %v2985 = vpop.f32.mrf.mxu0
        %v2986 = vadd.f32 %v2817, %v2985
        %2987 = vmatmul.bf16.gmra.mxu0 %v1073
        %v2988 = vpop.f32.mrf.mxu0
        %v2989 = vadd.f32 %v2820, %v2988
        %v2990 = vpop.f32.mrf.mxu0
        %v2991 = vadd.f32 %v2822, %v2990
        %2992 = vmatmul.bf16.gmra.mxu0 %v1078
        %v2993 = vpop.f32.mrf.mxu0
        %v2994 = vadd.f32 %v2825, %v2993
        %v2995 = vpop.f32.mrf.mxu0
        %v2996 = vadd.f32 %v2827, %v2995
        %2997 = vmatmul.bf16.gmra.mxu0 %v1083
        %v2998 = vpop.f32.mrf.mxu0
        %v2999 = vadd.f32 %v2830, %v2998
        %v3000 = vpop.f32.mrf.mxu0
        %v3001 = vadd.f32 %v2832, %v3000
        %3002 = vmatmul.bf16.gmra.mxu0 %v1088
        %v3003 = vpop.f32.mrf.mxu0
        %v3004 = vadd.f32 %v2835, %v3003
        %v3005 = vpop.f32.mrf.mxu0
        %v3006 = vadd.f32 %v2837, %v3005
        %3007 = vmatmul.bf16.gmra.mxu0 %v1093
        %v3008 = vpop.f32.mrf.mxu0
        %v3009 = vadd.f32 %v2840, %v3008
        %v3010 = vpop.f32.mrf.mxu0
        %v3011 = vadd.f32 %v2842, %v3010
        %3012 = vmatmul.bf16.gmra.mxu0 %v1098
        %v3013 = vpop.f32.mrf.mxu0
        %v3014 = vadd.f32 %v2845, %v3013
        %v3015 = vpop.f32.mrf.mxu0
        %v3016 = vadd.f32 %v2847, %v3015
        %3017 = vmatmul.bf16.gmra.mxu0 %v1103
        %v3018 = vpop.f32.mrf.mxu0
        %v3019 = vadd.f32 %v2850, %v3018
        %v3020 = vpop.f32.mrf.mxu0
        %v3021 = vadd.f32 %v2852, %v3020
        %3022 = vmatmul.bf16.gmra.mxu0 %v1108
        %v3023 = vpop.f32.mrf.mxu0
        %v3024 = vadd.f32 %v2855, %v3023
        %v3025 = vpop.f32.mrf.mxu0
        %v3026 = vadd.f32 %v2857, %v3025
        %3027 = vmatmul.bf16.gmra.mxu0 %v1113
        %v3028 = vpop.f32.mrf.mxu0
        %v3029 = vadd.f32 %v2860, %v3028
        %v3030 = vpop.f32.mrf.mxu0
        %v3031 = vadd.f32 %v2862, %v3030
        %3032 = vmatmul.bf16.gmra.mxu0 %v1118
        %v3033 = vpop.f32.mrf.mxu0
        %v3034 = vadd.f32 %v2865, %v3033
        %v3035 = vpop.f32.mrf.mxu0
        %v3036 = vadd.f32 %v2867, %v3035
        %3037 = vmatmul.bf16.gmra.mxu0 %v1123
        %v3038 = vpop.f32.mrf.mxu0
        %v3039 = vadd.f32 %v2870, %v3038
        %v3040 = vpop.f32.mrf.mxu0
        %v3041 = vadd.f32 %v2872, %v3040
        %3042 = vmatmul.bf16.gmra.mxu0 %v1128
        %v3043 = vpop.f32.mrf.mxu0
        %v3044 = vadd.f32 %v2875, %v3043
        %v3045 = vpop.f32.mrf.mxu0
        %v3046 = vadd.f32 %v2877, %v3045
        %3047 = vmatmul.bf16.gmra.mxu0 %v1133
        %v3048 = vpop.f32.mrf.mxu0
        %v3049 = vadd.f32 %v2880, %v3048
        %v3050 = vpop.f32.mrf.mxu0
        %v3051 = vadd.f32 %v2882, %v3050
        %3052 = vmatmul.bf16.gmra.mxu0 %v1138
        %v3053 = vpop.f32.mrf.mxu0
        %v3054 = vadd.f32 %v2885, %v3053
        %v3055 = vpop.f32.mrf.mxu0
        %v3056 = vadd.f32 %v2887, %v3055
        %3057 = vmatmul.bf16.gmra.mxu0 %v1143
        %v3058 = vpop.f32.mrf.mxu0
        %v3059 = vadd.f32 %v2890, %v3058
        %v3060 = vpop.f32.mrf.mxu0
        %v3061 = vadd.f32 %v2892, %v3060
        %3062 = vmatmul.bf16.gmra.mxu0 %v1148
        %v3063 = vpop.f32.mrf.mxu0
        %v3064 = vadd.f32 %v2895, %v3063
        %v3065 = vpop.f32.mrf.mxu0
        %v3066 = vadd.f32 %v2897, %v3065
        %3067 = vmatmul.bf16.gmra.mxu0 %v1153
        %v3068 = vpop.f32.mrf.mxu0
        %v3069 = vadd.f32 %v2900, %v3068
        %v3070 = vpop.f32.mrf.mxu0
        %v3071 = vadd.f32 %v2902, %v3070
        %3072 = vmatmul.bf16.gmra.mxu0 %v1158
        %v3073 = vpop.f32.mrf.mxu0
        %v3074 = vadd.f32 %v2905, %v3073
        %v3075 = vpop.f32.mrf.mxu0
        %v3076 = vadd.f32 %v2907, %v3075
        %3077 = vmatmul.bf16.gmra.mxu0 %v1163
        %v3078 = vpop.f32.mrf.mxu0
        %v3079 = vadd.f32 %v2910, %v3078
        %v3080 = vpop.f32.mrf.mxu0
        %v3081 = vadd.f32 %v2912, %v3080
        %3082 = vdwg.mxu0
        %3083 = vmatpush.bf16.msra.mxu0 %v1561
        %3084 = vmatpush.bf16.msra.mxu0 %v1559
        %3085 = vmatpush.bf16.msra.mxu0 %v1557
        %3086 = vmatpush.bf16.msra.mxu0 %v1555
        %3087 = vmatpush.bf16.msra.mxu0 %v1553
        %3088 = vmatpush.bf16.msra.mxu0 %v1551
        %3089 = vmatpush.bf16.msra.mxu0 %v1549
        %3090 = vmatpush.bf16.msra.mxu0 %v1547
        %3091 = vmatmul.bf16.gmra.mxu0 %v1009
        %v3092 = vpop.f32.mrf.mxu0
        %v3093 = vadd.f32 %v2924, %v3092
        %v3094 = vpop.f32.mrf.mxu0
        %v3095 = vadd.f32 %v2926, %v3094
        %3096 = vmatmul.bf16.gmra.mxu0 %v1014
        %v3097 = vpop.f32.mrf.mxu0
        %v3098 = vadd.f32 %v2929, %v3097
        %v3099 = vpop.f32.mrf.mxu0
        %v3100 = vadd.f32 %v2931, %v3099
        %3101 = vmatmul.bf16.gmra.mxu0 %v1019
        %v3102 = vpop.f32.mrf.mxu0
        %v3103 = vadd.f32 %v2934, %v3102
        %v3104 = vpop.f32.mrf.mxu0
        %v3105 = vadd.f32 %v2936, %v3104
        %3106 = vmatmul.bf16.gmra.mxu0 %v1024
        %v3107 = vpop.f32.mrf.mxu0
        %v3108 = vadd.f32 %v2939, %v3107
        %v3109 = vpop.f32.mrf.mxu0
        %v3110 = vadd.f32 %v2941, %v3109
        %3111 = vmatmul.bf16.gmra.mxu0 %v1029
        %v3112 = vpop.f32.mrf.mxu0
        %v3113 = vadd.f32 %v2944, %v3112
        %v3114 = vpop.f32.mrf.mxu0
        %v3115 = vadd.f32 %v2946, %v3114
        %3116 = vmatmul.bf16.gmra.mxu0 %v1034
        %v3117 = vpop.f32.mrf.mxu0
        %v3118 = vadd.f32 %v2949, %v3117
        %v3119 = vpop.f32.mrf.mxu0
        %v3120 = vadd.f32 %v2951, %v3119
        %3121 = vmatmul.bf16.gmra.mxu0 %v1039
        %v3122 = vpop.f32.mrf.mxu0
        %v3123 = vadd.f32 %v2954, %v3122
        %v3124 = vpop.f32.mrf.mxu0
        %v3125 = vadd.f32 %v2956, %v3124
        %3126 = vmatmul.bf16.gmra.mxu0 %v1044
        %v3127 = vpop.f32.mrf.mxu0
        %v3128 = vadd.f32 %v2959, %v3127
        %v3129 = vpop.f32.mrf.mxu0
        %v3130 = vadd.f32 %v2961, %v3129
        %3131 = vmatmul.bf16.gmra.mxu0 %v1049
        %v3132 = vpop.f32.mrf.mxu0
        %v3133 = vadd.f32 %v2964, %v3132
        %v3134 = vpop.f32.mrf.mxu0
        %v3135 = vadd.f32 %v2966, %v3134
        %3136 = vmatmul.bf16.gmra.mxu0 %v1054
        %v3137 = vpop.f32.mrf.mxu0
        %v3138 = vadd.f32 %v2969, %v3137
        %v3139 = vpop.f32.mrf.mxu0
        %v3140 = vadd.f32 %v2971, %v3139
        %3141 = vmatmul.bf16.gmra.mxu0 %v1059
        %v3142 = vpop.f32.mrf.mxu0
        %v3143 = vadd.f32 %v2974, %v3142
        %v3144 = vpop.f32.mrf.mxu0
        %v3145 = vadd.f32 %v2976, %v3144
        %3146 = vmatmul.bf16.gmra.mxu0 %v1064
        %v3147 = vpop.f32.mrf.mxu0
        %v3148 = vadd.f32 %v2979, %v3147
        %v3149 = vpop.f32.mrf.mxu0
        %v3150 = vadd.f32 %v2981, %v3149
        %3151 = vmatmul.bf16.gmra.mxu0 %v1069
        %v3152 = vpop.f32.mrf.mxu0
        %v3153 = vadd.f32 %v2984, %v3152
        %v3154 = vpop.f32.mrf.mxu0
        %v3155 = vadd.f32 %v2986, %v3154
        %3156 = vmatmul.bf16.gmra.mxu0 %v1074
        %v3157 = vpop.f32.mrf.mxu0
        %v3158 = vadd.f32 %v2989, %v3157
        %v3159 = vpop.f32.mrf.mxu0
        %v3160 = vadd.f32 %v2991, %v3159
        %3161 = vmatmul.bf16.gmra.mxu0 %v1079
        %v3162 = vpop.f32.mrf.mxu0
        %v3163 = vadd.f32 %v2994, %v3162
        %v3164 = vpop.f32.mrf.mxu0
        %v3165 = vadd.f32 %v2996, %v3164
        %3166 = vmatmul.bf16.gmra.mxu0 %v1084
        %v3167 = vpop.f32.mrf.mxu0
        %v3168 = vadd.f32 %v2999, %v3167
        %v3169 = vpop.f32.mrf.mxu0
        %v3170 = vadd.f32 %v3001, %v3169
        %3171 = vmatmul.bf16.gmra.mxu0 %v1089
        %v3172 = vpop.f32.mrf.mxu0
        %v3173 = vadd.f32 %v3004, %v3172
        %v3174 = vpop.f32.mrf.mxu0
        %v3175 = vadd.f32 %v3006, %v3174
        %3176 = vmatmul.bf16.gmra.mxu0 %v1094
        %v3177 = vpop.f32.mrf.mxu0
        %v3178 = vadd.f32 %v3009, %v3177
        %v3179 = vpop.f32.mrf.mxu0
        %v3180 = vadd.f32 %v3011, %v3179
        %3181 = vmatmul.bf16.gmra.mxu0 %v1099
        %v3182 = vpop.f32.mrf.mxu0
        %v3183 = vadd.f32 %v3014, %v3182
        %v3184 = vpop.f32.mrf.mxu0
        %v3185 = vadd.f32 %v3016, %v3184
        %3186 = vmatmul.bf16.gmra.mxu0 %v1104
        %v3187 = vpop.f32.mrf.mxu0
        %v3188 = vadd.f32 %v3019, %v3187
        %v3189 = vpop.f32.mrf.mxu0
        %v3190 = vadd.f32 %v3021, %v3189
        %3191 = vmatmul.bf16.gmra.mxu0 %v1109
        %v3192 = vpop.f32.mrf.mxu0
        %v3193 = vadd.f32 %v3024, %v3192
        %v3194 = vpop.f32.mrf.mxu0
        %v3195 = vadd.f32 %v3026, %v3194
        %3196 = vmatmul.bf16.gmra.mxu0 %v1114
        %v3197 = vpop.f32.mrf.mxu0
        %v3198 = vadd.f32 %v3029, %v3197
        %v3199 = vpop.f32.mrf.mxu0
        %v3200 = vadd.f32 %v3031, %v3199
        %3201 = vmatmul.bf16.gmra.mxu0 %v1119
        %v3202 = vpop.f32.mrf.mxu0
        %v3203 = vadd.f32 %v3034, %v3202
        %v3204 = vpop.f32.mrf.mxu0
        %v3205 = vadd.f32 %v3036, %v3204
        %3206 = vmatmul.bf16.gmra.mxu0 %v1124
        %v3207 = vpop.f32.mrf.mxu0
        %v3208 = vadd.f32 %v3039, %v3207
        %v3209 = vpop.f32.mrf.mxu0
        %v3210 = vadd.f32 %v3041, %v3209
        %3211 = vmatmul.bf16.gmra.mxu0 %v1129
        %v3212 = vpop.f32.mrf.mxu0
        %v3213 = vadd.f32 %v3044, %v3212
        %v3214 = vpop.f32.mrf.mxu0
        %v3215 = vadd.f32 %v3046, %v3214
        %3216 = vmatmul.bf16.gmra.mxu0 %v1134
        %v3217 = vpop.f32.mrf.mxu0
        %v3218 = vadd.f32 %v3049, %v3217
        %v3219 = vpop.f32.mrf.mxu0
        %v3220 = vadd.f32 %v3051, %v3219
        %3221 = vmatmul.bf16.gmra.mxu0 %v1139
        %v3222 = vpop.f32.mrf.mxu0
        %v3223 = vadd.f32 %v3054, %v3222
        %v3224 = vpop.f32.mrf.mxu0
        %v3225 = vadd.f32 %v3056, %v3224
        %3226 = vmatmul.bf16.gmra.mxu0 %v1144
        %v3227 = vpop.f32.mrf.mxu0
        %v3228 = vadd.f32 %v3059, %v3227
        %v3229 = vpop.f32.mrf.mxu0
        %v3230 = vadd.f32 %v3061, %v3229
        %3231 = vmatmul.bf16.gmra.mxu0 %v1149
        %v3232 = vpop.f32.mrf.mxu0
        %v3233 = vadd.f32 %v3064, %v3232
        %v3234 = vpop.f32.mrf.mxu0
        %v3235 = vadd.f32 %v3066, %v3234
        %3236 = vmatmul.bf16.gmra.mxu0 %v1154
        %v3237 = vpop.f32.mrf.mxu0
        %v3238 = vadd.f32 %v3069, %v3237
        %v3239 = vpop.f32.mrf.mxu0
        %v3240 = vadd.f32 %v3071, %v3239
        %3241 = vmatmul.bf16.gmra.mxu0 %v1159
        %v3242 = vpop.f32.mrf.mxu0
        %v3243 = vadd.f32 %v3074, %v3242
        %v3244 = vpop.f32.mrf.mxu0
        %v3245 = vadd.f32 %v3076, %v3244
        %3246 = vmatmul.bf16.gmra.mxu0 %v1164
        %v3247 = vpop.f32.mrf.mxu0
        %v3248 = vadd.f32 %v3079, %v3247
        %v3249 = vpop.f32.mrf.mxu0
        %v3250 = vadd.f32 %v3081, %v3249
        %3251 = vdwg.mxu0
        %3252 = vmatpush.bf16.msra.mxu0 0
        %3253 = vmatpush.bf16.msra.mxu0 0
        %3254 = vmatpush.bf16.msra.mxu0 0
        %3255 = vmatpush.bf16.msra.mxu0 0
        %3256 = vmatpush.bf16.msra.mxu0 0
        %3257 = vmatpush.bf16.msra.mxu0 0
        %3258 = vmatpush.bf16.msra.mxu0 %v1565
        %3259 = vmatpush.bf16.msra.mxu0 %v1563
        %3260 = vmatmul.bf16.gmra.mxu0 %v1636
        %v3261 = vpop.f32.mrf.mxu0
        %v3262 = vadd.f32 %v3093, %v3261
        %v3263 = vpop.f32.mrf.mxu0
        %v3264 = vadd.f32 %v3095, %v3263
        %3265 = vmatmul.bf16.gmra.mxu0 %v1639
        %v3266 = vpop.f32.mrf.mxu0
        %v3267 = vadd.f32 %v3098, %v3266
        %v3268 = vpop.f32.mrf.mxu0
        %v3269 = vadd.f32 %v3100, %v3268
        %3270 = vmatmul.bf16.gmra.mxu0 %v1642
        %v3271 = vpop.f32.mrf.mxu0
        %v3272 = vadd.f32 %v3103, %v3271
        %v3273 = vpop.f32.mrf.mxu0
        %v3274 = vadd.f32 %v3105, %v3273
        %3275 = vmatmul.bf16.gmra.mxu0 %v1645
        %v3276 = vpop.f32.mrf.mxu0
        %v3277 = vadd.f32 %v3108, %v3276
        %v3278 = vpop.f32.mrf.mxu0
        %v3279 = vadd.f32 %v3110, %v3278
        %3280 = vmatmul.bf16.gmra.mxu0 %v1648
        %v3281 = vpop.f32.mrf.mxu0
        %v3282 = vadd.f32 %v3113, %v3281
        %v3283 = vpop.f32.mrf.mxu0
        %v3284 = vadd.f32 %v3115, %v3283
        %3285 = vmatmul.bf16.gmra.mxu0 %v1651
        %v3286 = vpop.f32.mrf.mxu0
        %v3287 = vadd.f32 %v3118, %v3286
        %v3288 = vpop.f32.mrf.mxu0
        %v3289 = vadd.f32 %v3120, %v3288
        %3290 = vmatmul.bf16.gmra.mxu0 %v1654
        %v3291 = vpop.f32.mrf.mxu0
        %v3292 = vadd.f32 %v3123, %v3291
        %v3293 = vpop.f32.mrf.mxu0
        %v3294 = vadd.f32 %v3125, %v3293
        %3295 = vmatmul.bf16.gmra.mxu0 %v1657
        %v3296 = vpop.f32.mrf.mxu0
        %v3297 = vadd.f32 %v3128, %v3296
        %v3298 = vpop.f32.mrf.mxu0
        %v3299 = vadd.f32 %v3130, %v3298
        %3300 = vmatmul.bf16.gmra.mxu0 %v1660
        %v3301 = vpop.f32.mrf.mxu0
        %v3302 = vadd.f32 %v3133, %v3301
        %v3303 = vpop.f32.mrf.mxu0
        %v3304 = vadd.f32 %v3135, %v3303
        %3305 = vmatmul.bf16.gmra.mxu0 %v1663
        %v3306 = vpop.f32.mrf.mxu0
        %v3307 = vadd.f32 %v3138, %v3306
        %v3308 = vpop.f32.mrf.mxu0
        %v3309 = vadd.f32 %v3140, %v3308
        %3310 = vmatmul.bf16.gmra.mxu0 %v1666
        %v3311 = vpop.f32.mrf.mxu0
        %v3312 = vadd.f32 %v3143, %v3311
        %v3313 = vpop.f32.mrf.mxu0
        %v3314 = vadd.f32 %v3145, %v3313
        %3315 = vmatmul.bf16.gmra.mxu0 %v1669
        %v3316 = vpop.f32.mrf.mxu0
        %v3317 = vadd.f32 %v3148, %v3316
        %v3318 = vpop.f32.mrf.mxu0
        %v3319 = vadd.f32 %v3150, %v3318
        %3320 = vmatmul.bf16.gmra.mxu0 %v1672
        %v3321 = vpop.f32.mrf.mxu0
        %v3322 = vadd.f32 %v3153, %v3321
        %v3323 = vpop.f32.mrf.mxu0
        %v3324 = vadd.f32 %v3155, %v3323
        %3325 = vmatmul.bf16.gmra.mxu0 %v1675
        %v3326 = vpop.f32.mrf.mxu0
        %v3327 = vadd.f32 %v3158, %v3326
        %v3328 = vpop.f32.mrf.mxu0
        %v3329 = vadd.f32 %v3160, %v3328
        %3330 = vmatmul.bf16.gmra.mxu0 %v1678
        %v3331 = vpop.f32.mrf.mxu0
        %v3332 = vadd.f32 %v3163, %v3331
        %v3333 = vpop.f32.mrf.mxu0
        %v3334 = vadd.f32 %v3165, %v3333
        %3335 = vmatmul.bf16.gmra.mxu0 %v1681
        %v3336 = vpop.f32.mrf.mxu0
        %v3337 = vadd.f32 %v3168, %v3336
        %v3338 = vpop.f32.mrf.mxu0
        %v3339 = vadd.f32 %v3170, %v3338
        %3340 = vmatmul.bf16.gmra.mxu0 %v1684
        %v3341 = vpop.f32.mrf.mxu0
        %v3342 = vadd.f32 %v3173, %v3341
        %v3343 = vpop.f32.mrf.mxu0
        %v3344 = vadd.f32 %v3175, %v3343
        %3345 = vmatmul.bf16.gmra.mxu0 %v1687
        %v3346 = vpop.f32.mrf.mxu0
        %v3347 = vadd.f32 %v3178, %v3346
        %v3348 = vpop.f32.mrf.mxu0
        %v3349 = vadd.f32 %v3180, %v3348
        %3350 = vmatmul.bf16.gmra.mxu0 %v1690
        %v3351 = vpop.f32.mrf.mxu0
        %v3352 = vadd.f32 %v3183, %v3351
        %v3353 = vpop.f32.mrf.mxu0
        %v3354 = vadd.f32 %v3185, %v3353
        %3355 = vmatmul.bf16.gmra.mxu0 %v1693
        %v3356 = vpop.f32.mrf.mxu0
        %v3357 = vadd.f32 %v3188, %v3356
        %v3358 = vpop.f32.mrf.mxu0
        %v3359 = vadd.f32 %v3190, %v3358
        %3360 = vmatmul.bf16.gmra.mxu0 %v1696
        %v3361 = vpop.f32.mrf.mxu0
        %v3362 = vadd.f32 %v3193, %v3361
        %v3363 = vpop.f32.mrf.mxu0
        %v3364 = vadd.f32 %v3195, %v3363
        %3365 = vmatmul.bf16.gmra.mxu0 %v1699
        %v3366 = vpop.f32.mrf.mxu0
        %v3367 = vadd.f32 %v3198, %v3366
        %v3368 = vpop.f32.mrf.mxu0
        %v3369 = vadd.f32 %v3200, %v3368
        %3370 = vmatmul.bf16.gmra.mxu0 %v1702
        %v3371 = vpop.f32.mrf.mxu0
        %v3372 = vadd.f32 %v3203, %v3371
        %v3373 = vpop.f32.mrf.mxu0
        %v3374 = vadd.f32 %v3205, %v3373
        %3375 = vmatmul.bf16.gmra.mxu0 %v1705
        %v3376 = vpop.f32.mrf.mxu0
        %v3377 = vadd.f32 %v3208, %v3376
        %v3378 = vpop.f32.mrf.mxu0
        %v3379 = vadd.f32 %v3210, %v3378
        %3380 = vmatmul.bf16.gmra.mxu0 %v1708
        %v3381 = vpop.f32.mrf.mxu0
        %v3382 = vadd.f32 %v3213, %v3381
        %v3383 = vpop.f32.mrf.mxu0
        %v3384 = vadd.f32 %v3215, %v3383
        %3385 = vmatmul.bf16.gmra.mxu0 %v1711
        %v3386 = vpop.f32.mrf.mxu0
        %v3387 = vadd.f32 %v3218, %v3386
        %v3388 = vpop.f32.mrf.mxu0
        %v3389 = vadd.f32 %v3220, %v3388
        %3390 = vmatmul.bf16.gmra.mxu0 %v1714
        %v3391 = vpop.f32.mrf.mxu0
        %v3392 = vadd.f32 %v3223, %v3391
        %v3393 = vpop.f32.mrf.mxu0
        %v3394 = vadd.f32 %v3225, %v3393
        %3395 = vmatmul.bf16.gmra.mxu0 %v1717
        %v3396 = vpop.f32.mrf.mxu0
        %v3397 = vadd.f32 %v3228, %v3396
        %v3398 = vpop.f32.mrf.mxu0
        %v3399 = vadd.f32 %v3230, %v3398
        %3400 = vmatmul.bf16.gmra.mxu0 %v1720
        %v3401 = vpop.f32.mrf.mxu0
        %v3402 = vadd.f32 %v3233, %v3401
        %v3403 = vpop.f32.mrf.mxu0
        %v3404 = vadd.f32 %v3235, %v3403
        %3405 = vmatmul.bf16.gmra.mxu0 %v1723
        %v3406 = vpop.f32.mrf.mxu0
        %v3407 = vadd.f32 %v3238, %v3406
        %v3408 = vpop.f32.mrf.mxu0
        %v3409 = vadd.f32 %v3240, %v3408
        %3410 = vmatmul.bf16.gmra.mxu0 %v1726
        %v3411 = vpop.f32.mrf.mxu0
        %v3412 = vadd.f32 %v3243, %v3411
        %v3413 = vpop.f32.mrf.mxu0
        %v3414 = vadd.f32 %v3245, %v3413
        %3415 = vmatmul.bf16.gmra.mxu0 %v1729
        %v3416 = vpop.f32.mrf.mxu0
        %v3417 = vadd.f32 %v3248, %v3416
        %v3418 = vpop.f32.mrf.mxu0
        %v3419 = vadd.f32 %v3250, %v3418
        %3420 = vdwg.mxu0
        %v3421 = vadd.f32 %v2417, %v3262
        %3422 = vadd.xlane.f32.xlu0 %v3421
        %v3423 = vpop.xlane.xlu0 %3422
        %v3424 = vadd.f32 %v2419, %v3264
        %3425 = vadd.xlane.f32.xlu0 %v3424
        %v3426 = vpop.xlane.xlu0 %3425
        %v3427 = vadd.f32 %v2422, %v3267
        %3428 = vadd.xlane.f32.xlu0 %v3427
        %v3429 = vpop.xlane.xlu0 %3428
        %v3430 = vadd.f32 %v2424, %v3269
        %3431 = vadd.xlane.f32.xlu0 %v3430
        %v3432 = vpop.xlane.xlu0 %3431
        %v3433 = vadd.f32 %v2427, %v3272
        %3434 = vadd.xlane.f32.xlu0 %v3433
        %v3435 = vpop.xlane.xlu0 %3434
        %v3436 = vadd.f32 %v2429, %v3274
        %3437 = vadd.xlane.f32.xlu0 %v3436
        %v3438 = vpop.xlane.xlu0 %3437
        %v3439 = vadd.f32 %v2432, %v3277
        %3440 = vadd.xlane.f32.xlu0 %v3439
        %v3441 = vpop.xlane.xlu0 %3440
        %v3442 = vadd.f32 %v2434, %v3279
        %3443 = vadd.xlane.f32.xlu0 %v3442
        %v3444 = vpop.xlane.xlu0 %3443
        %v3445 = vadd.f32 %v2437, %v3282
        %3446 = vadd.xlane.f32.xlu0 %v3445
        %v3447 = vpop.xlane.xlu0 %3446
        %v3448 = vadd.f32 %v2439, %v3284
        %3449 = vadd.xlane.f32.xlu0 %v3448
        %v3450 = vpop.xlane.xlu0 %3449
        %v3451 = vadd.f32 %v2442, %v3287
        %3452 = vadd.xlane.f32.xlu0 %v3451
        %v3453 = vpop.xlane.xlu0 %3452
        %v3454 = vadd.f32 %v2444, %v3289
        %3455 = vadd.xlane.f32.xlu0 %v3454
        %v3456 = vpop.xlane.xlu0 %3455
        %v3457 = vadd.f32 %v2447, %v3292
        %3458 = vadd.xlane.f32.xlu0 %v3457
        %v3459 = vpop.xlane.xlu0 %3458
        %v3460 = vadd.f32 %v2449, %v3294
        %3461 = vadd.xlane.f32.xlu0 %v3460
        %v3462 = vpop.xlane.xlu0 %3461
        %v3463 = vadd.f32 %v2452, %v3297
        %3464 = vadd.xlane.f32.xlu0 %v3463
        %v3465 = vpop.xlane.xlu0 %3464
        %v3466 = vadd.f32 %v2454, %v3299
        %3467 = vadd.xlane.f32.xlu0 %v3466
        %v3468 = vpop.xlane.xlu0 %3467
        %v3469 = vadd.f32 %v2457, %v3302
        %3470 = vadd.xlane.f32.xlu0 %v3469
        %v3471 = vpop.xlane.xlu0 %3470
        %v3472 = vadd.f32 %v2459, %v3304
        %3473 = vadd.xlane.f32.xlu0 %v3472
        %v3474 = vpop.xlane.xlu0 %3473
        %v3475 = vadd.f32 %v2462, %v3307
        %3476 = vadd.xlane.f32.xlu0 %v3475
        %v3477 = vpop.xlane.xlu0 %3476
        %v3478 = vadd.f32 %v2464, %v3309
        %3479 = vadd.xlane.f32.xlu0 %v3478
        %v3480 = vpop.xlane.xlu0 %3479
        %v3481 = vadd.f32 %v2467, %v3312
        %3482 = vadd.xlane.f32.xlu0 %v3481
        %v3483 = vpop.xlane.xlu0 %3482
        %v3484 = vadd.f32 %v2469, %v3314
        %3485 = vadd.xlane.f32.xlu0 %v3484
        %v3486 = vpop.xlane.xlu0 %3485
        %v3487 = vadd.f32 %v2472, %v3317
        %3488 = vadd.xlane.f32.xlu0 %v3487
        %v3489 = vpop.xlane.xlu0 %3488
        %v3490 = vadd.f32 %v2474, %v3319
        %3491 = vadd.xlane.f32.xlu0 %v3490
        %v3492 = vpop.xlane.xlu0 %3491
        %v3493 = vadd.f32 %v2477, %v3322
        %3494 = vadd.xlane.f32.xlu0 %v3493
        %v3495 = vpop.xlane.xlu0 %3494
        %v3496 = vadd.f32 %v2479, %v3324
        %3497 = vadd.xlane.f32.xlu0 %v3496
        %v3498 = vpop.xlane.xlu0 %3497
        %v3499 = vadd.f32 %v2482, %v3327
        %3500 = vadd.xlane.f32.xlu0 %v3499
        %v3501 = vpop.xlane.xlu0 %3500
        %v3502 = vadd.f32 %v2484, %v3329
        %3503 = vadd.xlane.f32.xlu0 %v3502
        %v3504 = vpop.xlane.xlu0 %3503
        %v3505 = vadd.f32 %v2487, %v3332
        %3506 = vadd.xlane.f32.xlu0 %v3505
        %v3507 = vpop.xlane.xlu0 %3506
        %v3508 = vadd.f32 %v2489, %v3334
        %3509 = vadd.xlane.f32.xlu0 %v3508
        %v3510 = vpop.xlane.xlu0 %3509
        %v3511 = vadd.f32 %v2492, %v3337
        %3512 = vadd.xlane.f32.xlu0 %v3511
        %v3513 = vpop.xlane.xlu0 %3512
        %v3514 = vadd.f32 %v2494, %v3339
        %3515 = vadd.xlane.f32.xlu0 %v3514
        %v3516 = vpop.xlane.xlu0 %3515
        %v3517 = vadd.f32 %v2497, %v3342
        %3518 = vadd.xlane.f32.xlu0 %v3517
        %v3519 = vpop.xlane.xlu0 %3518
        %v3520 = vadd.f32 %v2499, %v3344
        %3521 = vadd.xlane.f32.xlu0 %v3520
        %v3522 = vpop.xlane.xlu0 %3521
        %v3523 = vadd.f32 %v2502, %v3347
        %3524 = vadd.xlane.f32.xlu0 %v3523
        %v3525 = vpop.xlane.xlu0 %3524
        %v3526 = vadd.f32 %v2504, %v3349
        %3527 = vadd.xlane.f32.xlu0 %v3526
        %v3528 = vpop.xlane.xlu0 %3527
        %v3529 = vadd.f32 %v2507, %v3352
        %3530 = vadd.xlane.f32.xlu0 %v3529
        %v3531 = vpop.xlane.xlu0 %3530
        %v3532 = vadd.f32 %v2509, %v3354
        %3533 = vadd.xlane.f32.xlu0 %v3532
        %v3534 = vpop.xlane.xlu0 %3533
        %v3535 = vadd.f32 %v2512, %v3357
        %3536 = vadd.xlane.f32.xlu0 %v3535
        %v3537 = vpop.xlane.xlu0 %3536
        %v3538 = vadd.f32 %v2514, %v3359
        %3539 = vadd.xlane.f32.xlu0 %v3538
        %v3540 = vpop.xlane.xlu0 %3539
        %v3541 = vadd.f32 %v2517, %v3362
        %3542 = vadd.xlane.f32.xlu0 %v3541
        %v3543 = vpop.xlane.xlu0 %3542
        %v3544 = vadd.f32 %v2519, %v3364
        %3545 = vadd.xlane.f32.xlu0 %v3544
        %v3546 = vpop.xlane.xlu0 %3545
        %v3547 = vadd.f32 %v2522, %v3367
        %3548 = vadd.xlane.f32.xlu0 %v3547
        %v3549 = vpop.xlane.xlu0 %3548
        %v3550 = vadd.f32 %v2524, %v3369
        %3551 = vadd.xlane.f32.xlu0 %v3550
        %v3552 = vpop.xlane.xlu0 %3551
        %v3553 = vadd.f32 %v2527, %v3372
        %3554 = vadd.xlane.f32.xlu0 %v3553
        %v3555 = vpop.xlane.xlu0 %3554
        %v3556 = vadd.f32 %v2529, %v3374
        %3557 = vadd.xlane.f32.xlu0 %v3556
        %v3558 = vpop.xlane.xlu0 %3557
        %v3559 = vadd.f32 %v2532, %v3377
        %3560 = vadd.xlane.f32.xlu0 %v3559
        %v3561 = vpop.xlane.xlu0 %3560
        %v3562 = vadd.f32 %v2534, %v3379
        %3563 = vadd.xlane.f32.xlu0 %v3562
        %v3564 = vpop.xlane.xlu0 %3563
        %v3565 = vadd.f32 %v2537, %v3382
        %3566 = vadd.xlane.f32.xlu0 %v3565
        %v3567 = vpop.xlane.xlu0 %3566
        %v3568 = vadd.f32 %v2539, %v3384
        %3569 = vadd.xlane.f32.xlu0 %v3568
        %v3570 = vpop.xlane.xlu0 %3569
        %v3571 = vadd.f32 %v2542, %v3387
        %3572 = vadd.xlane.f32.xlu0 %v3571
        %v3573 = vpop.xlane.xlu0 %3572
        %v3574 = vadd.f32 %v2544, %v3389
        %3575 = vadd.xlane.f32.xlu0 %v3574
        %v3576 = vpop.xlane.xlu0 %3575
        %v3577 = vadd.f32 %v2547, %v3392
        %3578 = vadd.xlane.f32.xlu0 %v3577
        %v3579 = vpop.xlane.xlu0 %3578
        %v3580 = vadd.f32 %v2549, %v3394
        %3581 = vadd.xlane.f32.xlu0 %v3580
        %v3582 = vpop.xlane.xlu0 %3581
        %v3583 = vadd.f32 %v2552, %v3397
        %3584 = vadd.xlane.f32.xlu0 %v3583
        %v3585 = vpop.xlane.xlu0 %3584
        %v3586 = vadd.f32 %v2554, %v3399
        %3587 = vadd.xlane.f32.xlu0 %v3586
        %v3588 = vpop.xlane.xlu0 %3587
        %v3589 = vadd.f32 %v2557, %v3402
        %3590 = vadd.xlane.f32.xlu0 %v3589
        %v3591 = vpop.xlane.xlu0 %3590
        %v3592 = vadd.f32 %v2559, %v3404
        %3593 = vadd.xlane.f32.xlu0 %v3592
        %v3594 = vpop.xlane.xlu0 %3593
        %v3595 = vadd.f32 %v2562, %v3407
        %3596 = vadd.xlane.f32.xlu0 %v3595
        %v3597 = vpop.xlane.xlu0 %3596
        %v3598 = vadd.f32 %v2564, %v3409
        %3599 = vadd.xlane.f32.xlu0 %v3598
        %v3600 = vpop.xlane.xlu0 %3599
        %v3601 = vadd.f32 %v2567, %v3412
        %3602 = vadd.xlane.f32.xlu0 %v3601
        %v3603 = vpop.xlane.xlu0 %3602
        %v3604 = vadd.f32 %v2569, %v3414
        %3605 = vadd.xlane.f32.xlu0 %v3604
        %v3606 = vpop.xlane.xlu0 %3605
        %v3607 = vadd.f32 %v2572, %v3417
        %3608 = vadd.xlane.f32.xlu0 %v3607
        %v3609 = vpop.xlane.xlu0 %3608
        %v3610 = vadd.f32 %v2574, %v3419
        %3611 = vadd.xlane.f32.xlu0 %v3610
        %v3612 = vpop.xlane.xlu0 %3611
        %v3677 = vperm.slane %v3423, 0
        %v3678 = vperm.slane %v3423, 1
        %v3679 = vperm.slane %v3423, 2
        %v3680 = vperm.slane %v3423, 3
        %v3681 = vperm.slane %v3423, 4
        %v3682 = vperm.slane %v3423, 5
        %v3683 = vperm.slane %v3423, 6
        %v3684 = vperm.slane %v3423, 7
        %v3685 = vperm.slane %v3426, 0
        %v3686 = vperm.slane %v3426, 1
        %v3687 = vperm.slane %v3426, 2
        %v3688 = vperm.slane %v3426, 3
        %v3689 = vperm.slane %v3426, 4
        %v3690 = vperm.slane %v3426, 5
        %v3691 = vperm.slane %v3426, 6
        %v3692 = vperm.slane %v3426, 7
        %v3693 = vperm.slane %v3429, 0
        %v3694 = vperm.slane %v3429, 1
        %v3695 = vperm.slane %v3429, 2
        %v3696 = vperm.slane %v3429, 3
        %v3697 = vperm.slane %v3429, 4
        %v3698 = vperm.slane %v3429, 5
        %v3699 = vperm.slane %v3429, 6
        %v3700 = vperm.slane %v3429, 7
        %v3701 = vperm.slane %v3432, 0
        %v3702 = vperm.slane %v3432, 1
        %v3703 = vperm.slane %v3432, 2
        %v3704 = vperm.slane %v3432, 3
        %v3705 = vperm.slane %v3432, 4
        %v3706 = vperm.slane %v3432, 5
        %v3707 = vperm.slane %v3432, 6
        %v3708 = vperm.slane %v3432, 7
        %v3709 = vperm.slane %v3435, 0
        %v3710 = vperm.slane %v3435, 1
        %v3711 = vperm.slane %v3435, 2
        %v3712 = vperm.slane %v3435, 3
        %v3713 = vperm.slane %v3435, 4
        %v3714 = vperm.slane %v3435, 5
        %v3715 = vperm.slane %v3435, 6
        %v3716 = vperm.slane %v3435, 7
        %v3717 = vperm.slane %v3438, 0
        %v3718 = vperm.slane %v3438, 1
        %v3719 = vperm.slane %v3438, 2
        %v3720 = vperm.slane %v3438, 3
        %v3721 = vperm.slane %v3438, 4
        %v3722 = vperm.slane %v3438, 5
        %v3723 = vperm.slane %v3438, 6
        %v3724 = vperm.slane %v3438, 7
        %v3725 = vperm.slane %v3441, 0
        %v3726 = vperm.slane %v3441, 1
        %v3727 = vperm.slane %v3441, 2
        %v3728 = vperm.slane %v3441, 3
        %v3729 = vperm.slane %v3441, 4
        %v3730 = vperm.slane %v3441, 5
        %v3731 = vperm.slane %v3441, 6
        %v3732 = vperm.slane %v3441, 7
        %v3733 = vperm.slane %v3444, 0
        %v3734 = vperm.slane %v3444, 1
        %v3735 = vperm.slane %v3444, 2
        %v3736 = vperm.slane %v3444, 3
        %v3737 = vperm.slane %v3444, 4
        %v3738 = vperm.slane %v3444, 5
        %v3739 = vperm.slane %v3444, 6
        %v3740 = vperm.slane %v3444, 7
        %v3741 = vperm.slane %v3447, 0
        %v3742 = vperm.slane %v3447, 1
        %v3743 = vperm.slane %v3447, 2
        %v3744 = vperm.slane %v3447, 3
        %v3745 = vperm.slane %v3447, 4
        %v3746 = vperm.slane %v3447, 5
        %v3747 = vperm.slane %v3447, 6
        %v3748 = vperm.slane %v3447, 7
        %v3749 = vperm.slane %v3450, 0
        %v3750 = vperm.slane %v3450, 1
        %v3751 = vperm.slane %v3450, 2
        %v3752 = vperm.slane %v3450, 3
        %v3753 = vperm.slane %v3450, 4
        %v3754 = vperm.slane %v3450, 5
        %v3755 = vperm.slane %v3450, 6
        %v3756 = vperm.slane %v3450, 7
        %v3757 = vperm.slane %v3453, 0
        %v3758 = vperm.slane %v3453, 1
        %v3759 = vperm.slane %v3453, 2
        %v3760 = vperm.slane %v3453, 3
        %v3761 = vperm.slane %v3453, 4
        %v3762 = vperm.slane %v3453, 5
        %v3763 = vperm.slane %v3453, 6
        %v3764 = vperm.slane %v3453, 7
        %v3765 = vperm.slane %v3456, 0
        %v3766 = vperm.slane %v3456, 1
        %v3767 = vperm.slane %v3456, 2
        %v3768 = vperm.slane %v3456, 3
        %v3769 = vperm.slane %v3456, 4
        %v3770 = vperm.slane %v3456, 5
        %v3771 = vperm.slane %v3456, 6
        %v3772 = vperm.slane %v3456, 7
        %v3773 = vperm.slane %v3459, 0
        %v3774 = vperm.slane %v3459, 1
        %v3775 = vperm.slane %v3459, 2
        %v3776 = vperm.slane %v3459, 3
        %v3777 = vperm.slane %v3459, 4
        %v3778 = vperm.slane %v3459, 5
        %v3779 = vperm.slane %v3459, 6
        %v3780 = vperm.slane %v3459, 7
        %v3781 = vperm.slane %v3462, 0
        %v3782 = vperm.slane %v3462, 1
        %v3783 = vperm.slane %v3462, 2
        %v3784 = vperm.slane %v3462, 3
        %v3785 = vperm.slane %v3462, 4
        %v3786 = vperm.slane %v3462, 5
        %v3787 = vperm.slane %v3462, 6
        %v3788 = vperm.slane %v3462, 7
        %v3789 = vperm.slane %v3465, 0
        %v3790 = vperm.slane %v3465, 1
        %v3791 = vperm.slane %v3465, 2
        %v3792 = vperm.slane %v3465, 3
        %v3793 = vperm.slane %v3465, 4
        %v3794 = vperm.slane %v3465, 5
        %v3795 = vperm.slane %v3465, 6
        %v3796 = vperm.slane %v3465, 7
        %v3797 = vperm.slane %v3468, 0
        %v3798 = vperm.slane %v3468, 1
        %v3799 = vperm.slane %v3468, 2
        %v3800 = vperm.slane %v3468, 3
        %v3801 = vperm.slane %v3468, 4
        %v3802 = vperm.slane %v3468, 5
        %v3803 = vperm.slane %v3468, 6
        %v3804 = vperm.slane %v3468, 7
        %v3805 = vperm.slane %v3471, 0
        %v3806 = vperm.slane %v3471, 1
        %v3807 = vperm.slane %v3471, 2
        %v3808 = vperm.slane %v3471, 3
        %v3809 = vperm.slane %v3471, 4
        %v3810 = vperm.slane %v3471, 5
        %v3811 = vperm.slane %v3471, 6
        %v3812 = vperm.slane %v3471, 7
        %v3813 = vperm.slane %v3474, 0
        %v3814 = vperm.slane %v3474, 1
        %v3815 = vperm.slane %v3474, 2
        %v3816 = vperm.slane %v3474, 3
        %v3817 = vperm.slane %v3474, 4
        %v3818 = vperm.slane %v3474, 5
        %v3819 = vperm.slane %v3474, 6
        %v3820 = vperm.slane %v3474, 7
        %v3821 = vperm.slane %v3477, 0
        %v3822 = vperm.slane %v3477, 1
        %v3823 = vperm.slane %v3477, 2
        %v3824 = vperm.slane %v3477, 3
        %v3825 = vperm.slane %v3477, 4
        %v3826 = vperm.slane %v3477, 5
        %v3827 = vperm.slane %v3477, 6
        %v3828 = vperm.slane %v3477, 7
        %v3829 = vperm.slane %v3480, 0
        %v3830 = vperm.slane %v3480, 1
        %v3831 = vperm.slane %v3480, 2
        %v3832 = vperm.slane %v3480, 3
        %v3833 = vperm.slane %v3480, 4
        %v3834 = vperm.slane %v3480, 5
        %v3835 = vperm.slane %v3480, 6
        %v3836 = vperm.slane %v3480, 7
        %v3837 = vperm.slane %v3483, 0
        %v3838 = vperm.slane %v3483, 1
        %v3839 = vperm.slane %v3483, 2
        %v3840 = vperm.slane %v3483, 3
        %v3841 = vperm.slane %v3483, 4
        %v3842 = vperm.slane %v3483, 5
        %v3843 = vperm.slane %v3483, 6
        %v3844 = vperm.slane %v3483, 7
        %v3845 = vperm.slane %v3486, 0
        %v3846 = vperm.slane %v3486, 1
        %v3847 = vperm.slane %v3486, 2
        %v3848 = vperm.slane %v3486, 3
        %v3849 = vperm.slane %v3486, 4
        %v3850 = vperm.slane %v3486, 5
        %v3851 = vperm.slane %v3486, 6
        %v3852 = vperm.slane %v3486, 7
        %v3853 = vperm.slane %v3489, 0
        %v3854 = vperm.slane %v3489, 1
        %v3855 = vperm.slane %v3489, 2
        %v3856 = vperm.slane %v3489, 3
        %v3857 = vperm.slane %v3489, 4
        %v3858 = vperm.slane %v3489, 5
        %v3859 = vperm.slane %v3489, 6
        %v3860 = vperm.slane %v3489, 7
        %v3861 = vperm.slane %v3492, 0
        %v3862 = vperm.slane %v3492, 1
        %v3863 = vperm.slane %v3492, 2
        %v3864 = vperm.slane %v3492, 3
        %v3865 = vperm.slane %v3492, 4
        %v3866 = vperm.slane %v3492, 5
        %v3867 = vperm.slane %v3492, 6
        %v3868 = vperm.slane %v3492, 7
        %v3869 = vperm.slane %v3495, 0
        %v3870 = vperm.slane %v3495, 1
        %v3871 = vperm.slane %v3495, 2
        %v3872 = vperm.slane %v3495, 3
        %v3873 = vperm.slane %v3495, 4
        %v3874 = vperm.slane %v3495, 5
        %v3875 = vperm.slane %v3495, 6
        %v3876 = vperm.slane %v3495, 7
        %v3877 = vperm.slane %v3498, 0
        %v3878 = vperm.slane %v3498, 1
        %v3879 = vperm.slane %v3498, 2
        %v3880 = vperm.slane %v3498, 3
        %v3881 = vperm.slane %v3498, 4
        %v3882 = vperm.slane %v3498, 5
        %v3883 = vperm.slane %v3498, 6
        %v3884 = vperm.slane %v3498, 7
        %v3885 = vperm.slane %v3501, 0
        %v3886 = vperm.slane %v3501, 1
        %v3887 = vperm.slane %v3501, 2
        %v3888 = vperm.slane %v3501, 3
        %v3889 = vperm.slane %v3501, 4
        %v3890 = vperm.slane %v3501, 5
        %v3891 = vperm.slane %v3501, 6
        %v3892 = vperm.slane %v3501, 7
        %v3893 = vperm.slane %v3504, 0
        %v3894 = vperm.slane %v3504, 1
        %v3895 = vperm.slane %v3504, 2
        %v3896 = vperm.slane %v3504, 3
        %v3897 = vperm.slane %v3504, 4
        %v3898 = vperm.slane %v3504, 5
        %v3899 = vperm.slane %v3504, 6
        %v3900 = vperm.slane %v3504, 7
        %v3901 = vperm.slane %v3507, 0
        %v3902 = vperm.slane %v3507, 1
        %v3903 = vperm.slane %v3507, 2
        %v3904 = vperm.slane %v3507, 3
        %v3905 = vperm.slane %v3507, 4
        %v3906 = vperm.slane %v3507, 5
        %v3907 = vperm.slane %v3507, 6
        %v3908 = vperm.slane %v3507, 7
        %v3909 = vperm.slane %v3510, 0
        %v3910 = vperm.slane %v3510, 1
        %v3911 = vperm.slane %v3510, 2
        %v3912 = vperm.slane %v3510, 3
        %v3913 = vperm.slane %v3510, 4
        %v3914 = vperm.slane %v3510, 5
        %v3915 = vperm.slane %v3510, 6
        %v3916 = vperm.slane %v3510, 7
        %v3917 = vperm.slane %v3513, 0
        %v3918 = vperm.slane %v3513, 1
        %v3919 = vperm.slane %v3513, 2
        %v3920 = vperm.slane %v3513, 3
        %v3921 = vperm.slane %v3513, 4
        %v3922 = vperm.slane %v3513, 5
        %v3923 = vperm.slane %v3513, 6
        %v3924 = vperm.slane %v3513, 7
        %v3925 = vperm.slane %v3516, 0
        %v3926 = vperm.slane %v3516, 1
        %v3927 = vperm.slane %v3516, 2
        %v3928 = vperm.slane %v3516, 3
        %v3929 = vperm.slane %v3516, 4
        %v3930 = vperm.slane %v3516, 5
        %v3931 = vperm.slane %v3516, 6
        %v3932 = vperm.slane %v3516, 7
        %v3933 = vperm.slane %v3519, 0
        %v3934 = vperm.slane %v3519, 1
        %v3935 = vperm.slane %v3519, 2
        %v3936 = vperm.slane %v3519, 3
        %v3937 = vperm.slane %v3519, 4
        %v3938 = vperm.slane %v3519, 5
        %v3939 = vperm.slane %v3519, 6
        %v3940 = vperm.slane %v3519, 7
        %v3941 = vperm.slane %v3522, 0
        %v3942 = vperm.slane %v3522, 1
        %v3943 = vperm.slane %v3522, 2
        %v3944 = vperm.slane %v3522, 3
        %v3945 = vperm.slane %v3522, 4
        %v3946 = vperm.slane %v3522, 5
        %v3947 = vperm.slane %v3522, 6
        %v3948 = vperm.slane %v3522, 7
        %v3949 = vperm.slane %v3525, 0
        %v3950 = vperm.slane %v3525, 1
        %v3951 = vperm.slane %v3525, 2
        %v3952 = vperm.slane %v3525, 3
        %v3953 = vperm.slane %v3525, 4
        %v3954 = vperm.slane %v3525, 5
        %v3955 = vperm.slane %v3525, 6
        %v3956 = vperm.slane %v3525, 7
        %v3957 = vperm.slane %v3528, 0
        %v3958 = vperm.slane %v3528, 1
        %v3959 = vperm.slane %v3528, 2
        %v3960 = vperm.slane %v3528, 3
        %v3961 = vperm.slane %v3528, 4
        %v3962 = vperm.slane %v3528, 5
        %v3963 = vperm.slane %v3528, 6
        %v3964 = vperm.slane %v3528, 7
        %v3965 = vperm.slane %v3531, 0
        %v3966 = vperm.slane %v3531, 1
        %v3967 = vperm.slane %v3531, 2
        %v3968 = vperm.slane %v3531, 3
        %v3969 = vperm.slane %v3531, 4
        %v3970 = vperm.slane %v3531, 5
        %v3971 = vperm.slane %v3531, 6
        %v3972 = vperm.slane %v3531, 7
        %v3973 = vperm.slane %v3534, 0
        %v3974 = vperm.slane %v3534, 1
        %v3975 = vperm.slane %v3534, 2
        %v3976 = vperm.slane %v3534, 3
        %v3977 = vperm.slane %v3534, 4
        %v3978 = vperm.slane %v3534, 5
        %v3979 = vperm.slane %v3534, 6
        %v3980 = vperm.slane %v3534, 7
        %v3981 = vperm.slane %v3537, 0
        %v3982 = vperm.slane %v3537, 1
        %v3983 = vperm.slane %v3537, 2
        %v3984 = vperm.slane %v3537, 3
        %v3985 = vperm.slane %v3537, 4
        %v3986 = vperm.slane %v3537, 5
        %v3987 = vperm.slane %v3537, 6
        %v3988 = vperm.slane %v3537, 7
        %v3989 = vperm.slane %v3540, 0
        %v3990 = vperm.slane %v3540, 1
        %v3991 = vperm.slane %v3540, 2
        %v3992 = vperm.slane %v3540, 3
        %v3993 = vperm.slane %v3540, 4
        %v3994 = vperm.slane %v3540, 5
        %v3995 = vperm.slane %v3540, 6
        %v3996 = vperm.slane %v3540, 7
        %v3997 = vperm.slane %v3543, 0
        %v3998 = vperm.slane %v3543, 1
        %v3999 = vperm.slane %v3543, 2
        %v4000 = vperm.slane %v3543, 3
        %v4001 = vperm.slane %v3543, 4
        %v4002 = vperm.slane %v3543, 5
        %v4003 = vperm.slane %v3543, 6
        %v4004 = vperm.slane %v3543, 7
        %v4005 = vperm.slane %v3546, 0
        %v4006 = vperm.slane %v3546, 1
        %v4007 = vperm.slane %v3546, 2
        %v4008 = vperm.slane %v3546, 3
        %v4009 = vperm.slane %v3546, 4
        %v4010 = vperm.slane %v3546, 5
        %v4011 = vperm.slane %v3546, 6
        %v4012 = vperm.slane %v3546, 7
        %v4013 = vperm.slane %v3549, 0
        %v4014 = vperm.slane %v3549, 1
        %v4015 = vperm.slane %v3549, 2
        %v4016 = vperm.slane %v3549, 3
        %v4017 = vperm.slane %v3549, 4
        %v4018 = vperm.slane %v3549, 5
        %v4019 = vperm.slane %v3549, 6
        %v4020 = vperm.slane %v3549, 7
        %v4021 = vperm.slane %v3552, 0
        %v4022 = vperm.slane %v3552, 1
        %v4023 = vperm.slane %v3552, 2
        %v4024 = vperm.slane %v3552, 3
        %v4025 = vperm.slane %v3552, 4
        %v4026 = vperm.slane %v3552, 5
        %v4027 = vperm.slane %v3552, 6
        %v4028 = vperm.slane %v3552, 7
        %v4029 = vperm.slane %v3555, 0
        %v4030 = vperm.slane %v3555, 1
        %v4031 = vperm.slane %v3555, 2
        %v4032 = vperm.slane %v3555, 3
        %v4033 = vperm.slane %v3555, 4
        %v4034 = vperm.slane %v3555, 5
        %v4035 = vperm.slane %v3555, 6
        %v4036 = vperm.slane %v3555, 7
        %v4037 = vperm.slane %v3558, 0
        %v4038 = vperm.slane %v3558, 1
        %v4039 = vperm.slane %v3558, 2
        %v4040 = vperm.slane %v3558, 3
        %v4041 = vperm.slane %v3558, 4
        %v4042 = vperm.slane %v3558, 5
        %v4043 = vperm.slane %v3558, 6
        %v4044 = vperm.slane %v3558, 7
        %v4045 = vperm.slane %v3561, 0
        %v4046 = vperm.slane %v3561, 1
        %v4047 = vperm.slane %v3561, 2
        %v4048 = vperm.slane %v3561, 3
        %v4049 = vperm.slane %v3561, 4
        %v4050 = vperm.slane %v3561, 5
        %v4051 = vperm.slane %v3561, 6
        %v4052 = vperm.slane %v3561, 7
        %v4053 = vperm.slane %v3564, 0
        %v4054 = vperm.slane %v3564, 1
        %v4055 = vperm.slane %v3564, 2
        %v4056 = vperm.slane %v3564, 3
        %v4057 = vperm.slane %v3564, 4
        %v4058 = vperm.slane %v3564, 5
        %v4059 = vperm.slane %v3564, 6
        %v4060 = vperm.slane %v3564, 7
        %v4061 = vperm.slane %v3567, 0
        %v4062 = vperm.slane %v3567, 1
        %v4063 = vperm.slane %v3567, 2
        %v4064 = vperm.slane %v3567, 3
        %v4065 = vperm.slane %v3567, 4
        %v4066 = vperm.slane %v3567, 5
        %v4067 = vperm.slane %v3567, 6
        %v4068 = vperm.slane %v3567, 7
        %v4069 = vperm.slane %v3570, 0
        %v4070 = vperm.slane %v3570, 1
        %v4071 = vperm.slane %v3570, 2
        %v4072 = vperm.slane %v3570, 3
        %v4073 = vperm.slane %v3570, 4
        %v4074 = vperm.slane %v3570, 5
        %v4075 = vperm.slane %v3570, 6
        %v4076 = vperm.slane %v3570, 7
        %v4077 = vperm.slane %v3573, 0
        %v4078 = vperm.slane %v3573, 1
        %v4079 = vperm.slane %v3573, 2
        %v4080 = vperm.slane %v3573, 3
        %v4081 = vperm.slane %v3573, 4
        %v4082 = vperm.slane %v3573, 5
        %v4083 = vperm.slane %v3573, 6
        %v4084 = vperm.slane %v3573, 7
        %v4085 = vperm.slane %v3576, 0
        %v4086 = vperm.slane %v3576, 1
        %v4087 = vperm.slane %v3576, 2
        %v4088 = vperm.slane %v3576, 3
        %v4089 = vperm.slane %v3576, 4
        %v4090 = vperm.slane %v3576, 5
        %v4091 = vperm.slane %v3576, 6
        %v4092 = vperm.slane %v3576, 7
        %v4093 = vperm.slane %v3579, 0
        %v4094 = vperm.slane %v3579, 1
        %v4095 = vperm.slane %v3579, 2
        %v4096 = vperm.slane %v3579, 3
        %v4097 = vperm.slane %v3579, 4
        %v4098 = vperm.slane %v3579, 5
        %v4099 = vperm.slane %v3579, 6
        %v4100 = vperm.slane %v3579, 7
        %v4101 = vperm.slane %v3582, 0
        %v4102 = vperm.slane %v3582, 1
        %v4103 = vperm.slane %v3582, 2
        %v4104 = vperm.slane %v3582, 3
        %v4105 = vperm.slane %v3582, 4
        %v4106 = vperm.slane %v3582, 5
        %v4107 = vperm.slane %v3582, 6
        %v4108 = vperm.slane %v3582, 7
        %v4109 = vperm.slane %v3585, 0
        %v4110 = vperm.slane %v3585, 1
        %v4111 = vperm.slane %v3585, 2
        %v4112 = vperm.slane %v3585, 3
        %v4113 = vperm.slane %v3585, 4
        %v4114 = vperm.slane %v3585, 5
        %v4115 = vperm.slane %v3585, 6
        %v4116 = vperm.slane %v3585, 7
        %v4117 = vperm.slane %v3588, 0
        %v4118 = vperm.slane %v3588, 1
        %v4119 = vperm.slane %v3588, 2
        %v4120 = vperm.slane %v3588, 3
        %v4121 = vperm.slane %v3588, 4
        %v4122 = vperm.slane %v3588, 5
        %v4123 = vperm.slane %v3588, 6
        %v4124 = vperm.slane %v3588, 7
        %v4125 = vperm.slane %v3591, 0
        %v4126 = vperm.slane %v3591, 1
        %v4127 = vperm.slane %v3591, 2
        %v4128 = vperm.slane %v3591, 3
        %v4129 = vperm.slane %v3591, 4
        %v4130 = vperm.slane %v3591, 5
        %v4131 = vperm.slane %v3591, 6
        %v4132 = vperm.slane %v3591, 7
        %v4133 = vperm.slane %v3594, 0
        %v4134 = vperm.slane %v3594, 1
        %v4135 = vperm.slane %v3594, 2
        %v4136 = vperm.slane %v3594, 3
        %v4137 = vperm.slane %v3594, 4
        %v4138 = vperm.slane %v3594, 5
        %v4139 = vperm.slane %v3594, 6
        %v4140 = vperm.slane %v3594, 7
        %v4141 = vperm.slane %v3597, 0
        %v4142 = vperm.slane %v3597, 1
        %v4143 = vperm.slane %v3597, 2
        %v4144 = vperm.slane %v3597, 3
        %v4145 = vperm.slane %v3597, 4
        %v4146 = vperm.slane %v3597, 5
        %v4147 = vperm.slane %v3597, 6
        %v4148 = vperm.slane %v3597, 7
        %v4149 = vperm.slane %v3600, 0
        %v4150 = vperm.slane %v3600, 1
        %v4151 = vperm.slane %v3600, 2
        %v4152 = vperm.slane %v3600, 3
        %v4153 = vperm.slane %v3600, 4
        %v4154 = vperm.slane %v3600, 5
        %v4155 = vperm.slane %v3600, 6
        %v4156 = vperm.slane %v3600, 7
        %v4157 = vperm.slane %v3603, 0
        %v4158 = vperm.slane %v3603, 1
        %v4159 = vperm.slane %v3603, 2
        %v4160 = vperm.slane %v3603, 3
        %v4161 = vperm.slane %v3603, 4
        %v4162 = vperm.slane %v3603, 5
        %v4163 = vperm.slane %v3603, 6
        %v4164 = vperm.slane %v3603, 7
        %v4165 = vperm.slane %v3606, 0
        %v4166 = vperm.slane %v3606, 1
        %v4167 = vperm.slane %v3606, 2
        %v4168 = vperm.slane %v3606, 3
        %v4169 = vperm.slane %v3606, 4
        %v4170 = vperm.slane %v3606, 5
        %v4171 = vperm.slane %v3606, 6
        %v4172 = vperm.slane %v3606, 7
        %v4173 = vperm.slane %v3609, 0
        %v4174 = vperm.slane %v3609, 1
        %v4175 = vperm.slane %v3609, 2
        %v4176 = vperm.slane %v3609, 3
        %v4177 = vperm.slane %v3609, 4
        %v4178 = vperm.slane %v3609, 5
        %v4179 = vperm.slane %v3609, 6
        %v4180 = vperm.slane %v3609, 7
        %v4181 = vperm.slane %v3612, 0
        %v4182 = vperm.slane %v3612, 1
        %v4183 = vperm.slane %v3612, 2
        %v4184 = vperm.slane %v3612, 3
        %v4185 = vperm.slane %v3612, 4
        %v4186 = vperm.slane %v3612, 5
        %v4187 = vperm.slane %v3612, 6
        %v4188 = vperm.slane %v3612, 7
        %4189 = vst [vmem:[#allocation1] ss:$9 sm:$0xff] %v3677
        %s4190 = scalar_lea.vmem [#allocation1], 1
        %4191 = vst [vmem:[%s4190] ss:$9 sm:$0xff] %v3678
        %s4192 = scalar_lea.vmem [#allocation1], 2
        %4193 = vst [vmem:[%s4192] ss:$9 sm:$0xff] %v3679
        %s4194 = scalar_lea.vmem [#allocation1], 3
        %4195 = vst [vmem:[%s4194] ss:$9 sm:$0xff] %v3680
        %s4196 = scalar_lea.vmem [#allocation1], 4
        %4197 = vst [vmem:[%s4196] ss:$9 sm:$0xff] %v3681
        %s4198 = scalar_lea.vmem [#allocation1], 5
        %4199 = vst [vmem:[%s4198] ss:$9 sm:$0xff] %v3682
        %s4200 = scalar_lea.vmem [#allocation1], 6
        %4201 = vst [vmem:[%s4200] ss:$9 sm:$0xff] %v3683
        %s4202 = scalar_lea.vmem [#allocation1], 7
        %4203 = vst [vmem:[%s4202] ss:$9 sm:$0xff] %v3684
        %v4204 = vld [vmem:[#allocation1] sm:$0xff]
        %4205 = vst [vmem:[#allocation1] ss:$9 sm:$0xff] %v3685
        %4206 = vst [vmem:[%s4190] ss:$9 sm:$0xff] %v3686
        %4207 = vst [vmem:[%s4192] ss:$9 sm:$0xff] %v3687
        %4208 = vst [vmem:[%s4194] ss:$9 sm:$0xff] %v3688
        %4209 = vst [vmem:[%s4196] ss:$9 sm:$0xff] %v3689
        %4210 = vst [vmem:[%s4198] ss:$9 sm:$0xff] %v3690
        %4211 = vst [vmem:[%s4200] ss:$9 sm:$0xff] %v3691
        %4212 = vst [vmem:[%s4202] ss:$9 sm:$0xff] %v3692
        %v4213 = vld [vmem:[#allocation1] sm:$0xff]
        %4214 = vst [vmem:[#allocation1] ss:$9 sm:$0xff] %v3693
        %4215 = vst [vmem:[%s4190] ss:$9 sm:$0xff] %v3694
        %4216 = vst [vmem:[%s4192] ss:$9 sm:$0xff] %v3695
        %4217 = vst [vmem:[%s4194] ss:$9 sm:$0xff] %v3696
        %4218 = vst [vmem:[%s4196] ss:$9 sm:$0xff] %v3697
        %4219 = vst [vmem:[%s4198] ss:$9 sm:$0xff] %v3698
        %4220 = vst [vmem:[%s4200] ss:$9 sm:$0xff] %v3699
        %4221 = vst [vmem:[%s4202] ss:$9 sm:$0xff] %v3700
        %v4222 = vld [vmem:[#allocation1] sm:$0xff]
        %4223 = vst [vmem:[#allocation1] ss:$9 sm:$0xff] %v3701
        %4224 = vst [vmem:[%s4190] ss:$9 sm:$0xff] %v3702
        %4225 = vst [vmem:[%s4192] ss:$9 sm:$0xff] %v3703
        %4226 = vst [vmem:[%s4194] ss:$9 sm:$0xff] %v3704
        %4227 = vst [vmem:[%s4196] ss:$9 sm:$0xff] %v3705
        %4228 = vst [vmem:[%s4198] ss:$9 sm:$0xff] %v3706
        %4229 = vst [vmem:[%s4200] ss:$9 sm:$0xff] %v3707
        %4230 = vst [vmem:[%s4202] ss:$9 sm:$0xff] %v3708
        %v4231 = vld [vmem:[#allocation1] sm:$0xff]
        %4232 = vst [vmem:[#allocation1] ss:$9 sm:$0xff] %v3709
        %4233 = vst [vmem:[%s4190] ss:$9 sm:$0xff] %v3710
        %4234 = vst [vmem:[%s4192] ss:$9 sm:$0xff] %v3711
        %4235 = vst [vmem:[%s4194] ss:$9 sm:$0xff] %v3712
        %4236 = vst [vmem:[%s4196] ss:$9 sm:$0xff] %v3713
        %4237 = vst [vmem:[%s4198] ss:$9 sm:$0xff] %v3714
        %4238 = vst [vmem:[%s4200] ss:$9 sm:$0xff] %v3715
        %4239 = vst [vmem:[%s4202] ss:$9 sm:$0xff] %v3716
        %v4240 = vld [vmem:[#allocation1] sm:$0xff]
        %4241 = vst [vmem:[#allocation1] ss:$9 sm:$0xff] %v3717
        %4242 = vst [vmem:[%s4190] ss:$9 sm:$0xff] %v3718
        %4243 = vst [vmem:[%s4192] ss:$9 sm:$0xff] %v3719
        %4244 = vst [vmem:[%s4194] ss:$9 sm:$0xff] %v3720
        %4245 = vst [vmem:[%s4196] ss:$9 sm:$0xff] %v3721
        %4246 = vst [vmem:[%s4198] ss:$9 sm:$0xff] %v3722
        %4247 = vst [vmem:[%s4200] ss:$9 sm:$0xff] %v3723
        %4248 = vst [vmem:[%s4202] ss:$9 sm:$0xff] %v3724
        %v4249 = vld [vmem:[#allocation1] sm:$0xff]
        %4250 = vst [vmem:[#allocation1] ss:$9 sm:$0xff] %v3725
        %4251 = vst [vmem:[%s4190] ss:$9 sm:$0xff] %v3726
        %4252 = vst [vmem:[%s4192] ss:$9 sm:$0xff] %v3727
        %4253 = vst [vmem:[%s4194] ss:$9 sm:$0xff] %v3728
        %4254 = vst [vmem:[%s4196] ss:$9 sm:$0xff] %v3729
        %4255 = vst [vmem:[%s4198] ss:$9 sm:$0xff] %v3730
        %4256 = vst [vmem:[%s4200] ss:$9 sm:$0xff] %v3731
        %4257 = vst [vmem:[%s4202] ss:$9 sm:$0xff] %v3732
        %v4258 = vld [vmem:[#allocation1] sm:$0xff]
        %4259 = vst [vmem:[#allocation1] ss:$9 sm:$0xff] %v3733
        %4260 = vst [vmem:[%s4190] ss:$9 sm:$0xff] %v3734
        %4261 = vst [vmem:[%s4192] ss:$9 sm:$0xff] %v3735
        %4262 = vst [vmem:[%s4194] ss:$9 sm:$0xff] %v3736
        %4263 = vst [vmem:[%s4196] ss:$9 sm:$0xff] %v3737
        %4264 = vst [vmem:[%s4198] ss:$9 sm:$0xff] %v3738
        %4265 = vst [vmem:[%s4200] ss:$9 sm:$0xff] %v3739
        %4266 = vst [vmem:[%s4202] ss:$9 sm:$0xff] %v3740
        %v4267 = vld [vmem:[#allocation1] sm:$0xff]
        %4268 = vst [vmem:[#allocation1] ss:$9 sm:$0xff] %v3741
        %4269 = vst [vmem:[%s4190] ss:$9 sm:$0xff] %v3742
        %4270 = vst [vmem:[%s4192] ss:$9 sm:$0xff] %v3743
        %4271 = vst [vmem:[%s4194] ss:$9 sm:$0xff] %v3744
        %4272 = vst [vmem:[%s4196] ss:$9 sm:$0xff] %v3745
        %4273 = vst [vmem:[%s4198] ss:$9 sm:$0xff] %v3746
        %4274 = vst [vmem:[%s4200] ss:$9 sm:$0xff] %v3747
        %4275 = vst [vmem:[%s4202] ss:$9 sm:$0xff] %v3748
        %v4276 = vld [vmem:[#allocation1] sm:$0xff]
        %4277 = vst [vmem:[#allocation1] ss:$9 sm:$0xff] %v3749
        %4278 = vst [vmem:[%s4190] ss:$9 sm:$0xff] %v3750
        %4279 = vst [vmem:[%s4192] ss:$9 sm:$0xff] %v3751
        %4280 = vst [vmem:[%s4194] ss:$9 sm:$0xff] %v3752
        %4281 = vst [vmem:[%s4196] ss:$9 sm:$0xff] %v3753
        %4282 = vst [vmem:[%s4198] ss:$9 sm:$0xff] %v3754
        %4283 = vst [vmem:[%s4200] ss:$9 sm:$0xff] %v3755
        %4284 = vst [vmem:[%s4202] ss:$9 sm:$0xff] %v3756
        %v4285 = vld [vmem:[#allocation1] sm:$0xff]
        %4286 = vst [vmem:[#allocation1] ss:$9 sm:$0xff] %v3757
        %4287 = vst [vmem:[%s4190] ss:$9 sm:$0xff] %v3758
        %4288 = vst [vmem:[%s4192] ss:$9 sm:$0xff] %v3759
        %4289 = vst [vmem:[%s4194] ss:$9 sm:$0xff] %v3760
        %4290 = vst [vmem:[%s4196] ss:$9 sm:$0xff] %v3761
        %4291 = vst [vmem:[%s4198] ss:$9 sm:$0xff] %v3762
        %4292 = vst [vmem:[%s4200] ss:$9 sm:$0xff] %v3763
        %4293 = vst [vmem:[%s4202] ss:$9 sm:$0xff] %v3764
        %v4294 = vld [vmem:[#allocation1] sm:$0xff]
        %4295 = vst [vmem:[#allocation1] ss:$9 sm:$0xff] %v3765
        %4296 = vst [vmem:[%s4190] ss:$9 sm:$0xff] %v3766
        %4297 = vst [vmem:[%s4192] ss:$9 sm:$0xff] %v3767
        %4298 = vst [vmem:[%s4194] ss:$9 sm:$0xff] %v3768
        %4299 = vst [vmem:[%s4196] ss:$9 sm:$0xff] %v3769
        %4300 = vst [vmem:[%s4198] ss:$9 sm:$0xff] %v3770
        %4301 = vst [vmem:[%s4200] ss:$9 sm:$0xff] %v3771
        %4302 = vst [vmem:[%s4202] ss:$9 sm:$0xff] %v3772
        %v4303 = vld [vmem:[#allocation1] sm:$0xff]
        %4304 = vst [vmem:[#allocation1] ss:$9 sm:$0xff] %v3773
        %4305 = vst [vmem:[%s4190] ss:$9 sm:$0xff] %v3774
        %4306 = vst [vmem:[%s4192] ss:$9 sm:$0xff] %v3775
        %4307 = vst [vmem:[%s4194] ss:$9 sm:$0xff] %v3776
        %4308 = vst [vmem:[%s4196] ss:$9 sm:$0xff] %v3777
        %4309 = vst [vmem:[%s4198] ss:$9 sm:$0xff] %v3778
        %4310 = vst [vmem:[%s4200] ss:$9 sm:$0xff] %v3779
        %4311 = vst [vmem:[%s4202] ss:$9 sm:$0xff] %v3780
        %v4312 = vld [vmem:[#allocation1] sm:$0xff]
        %4313 = vst [vmem:[#allocation1] ss:$9 sm:$0xff] %v3781
        %4314 = vst [vmem:[%s4190] ss:$9 sm:$0xff] %v3782
        %4315 = vst [vmem:[%s4192] ss:$9 sm:$0xff] %v3783
        %4316 = vst [vmem:[%s4194] ss:$9 sm:$0xff] %v3784
        %4317 = vst [vmem:[%s4196] ss:$9 sm:$0xff] %v3785
        %4318 = vst [vmem:[%s4198] ss:$9 sm:$0xff] %v3786
        %4319 = vst [vmem:[%s4200] ss:$9 sm:$0xff] %v3787
        %4320 = vst [vmem:[%s4202] ss:$9 sm:$0xff] %v3788
        %v4321 = vld [vmem:[#allocation1] sm:$0xff]
        %4322 = vst [vmem:[#allocation1] ss:$9 sm:$0xff] %v3789
        %4323 = vst [vmem:[%s4190] ss:$9 sm:$0xff] %v3790
        %4324 = vst [vmem:[%s4192] ss:$9 sm:$0xff] %v3791
        %4325 = vst [vmem:[%s4194] ss:$9 sm:$0xff] %v3792
        %4326 = vst [vmem:[%s4196] ss:$9 sm:$0xff] %v3793
        %4327 = vst [vmem:[%s4198] ss:$9 sm:$0xff] %v3794
        %4328 = vst [vmem:[%s4200] ss:$9 sm:$0xff] %v3795
        %4329 = vst [vmem:[%s4202] ss:$9 sm:$0xff] %v3796
        %v4330 = vld [vmem:[#allocation1] sm:$0xff]
        %4331 = vst [vmem:[#allocation1] ss:$9 sm:$0xff] %v3797
        %4332 = vst [vmem:[%s4190] ss:$9 sm:$0xff] %v3798
        %4333 = vst [vmem:[%s4192] ss:$9 sm:$0xff] %v3799
        %4334 = vst [vmem:[%s4194] ss:$9 sm:$0xff] %v3800
        %4335 = vst [vmem:[%s4196] ss:$9 sm:$0xff] %v3801
        %4336 = vst [vmem:[%s4198] ss:$9 sm:$0xff] %v3802
        %4337 = vst [vmem:[%s4200] ss:$9 sm:$0xff] %v3803
        %4338 = vst [vmem:[%s4202] ss:$9 sm:$0xff] %v3804
        %v4339 = vld [vmem:[#allocation1] sm:$0xff]
        %4340 = vst [vmem:[#allocation1] ss:$9 sm:$0xff] %v3805
        %4341 = vst [vmem:[%s4190] ss:$9 sm:$0xff] %v3806
        %4342 = vst [vmem:[%s4192] ss:$9 sm:$0xff] %v3807
        %4343 = vst [vmem:[%s4194] ss:$9 sm:$0xff] %v3808
        %4344 = vst [vmem:[%s4196] ss:$9 sm:$0xff] %v3809
        %4345 = vst [vmem:[%s4198] ss:$9 sm:$0xff] %v3810
        %4346 = vst [vmem:[%s4200] ss:$9 sm:$0xff] %v3811
        %4347 = vst [vmem:[%s4202] ss:$9 sm:$0xff] %v3812
        %v4348 = vld [vmem:[#allocation1] sm:$0xff]
        %4349 = vst [vmem:[#allocation1] ss:$9 sm:$0xff] %v3813
        %4350 = vst [vmem:[%s4190] ss:$9 sm:$0xff] %v3814
        %4351 = vst [vmem:[%s4192] ss:$9 sm:$0xff] %v3815
        %4352 = vst [vmem:[%s4194] ss:$9 sm:$0xff] %v3816
        %4353 = vst [vmem:[%s4196] ss:$9 sm:$0xff] %v3817
        %4354 = vst [vmem:[%s4198] ss:$9 sm:$0xff] %v3818
        %4355 = vst [vmem:[%s4200] ss:$9 sm:$0xff] %v3819
        %4356 = vst [vmem:[%s4202] ss:$9 sm:$0xff] %v3820
        %v4357 = vld [vmem:[#allocation1] sm:$0xff]
        %4358 = vst [vmem:[#allocation1] ss:$9 sm:$0xff] %v3821
        %4359 = vst [vmem:[%s4190] ss:$9 sm:$0xff] %v3822
        %4360 = vst [vmem:[%s4192] ss:$9 sm:$0xff] %v3823
        %4361 = vst [vmem:[%s4194] ss:$9 sm:$0xff] %v3824
        %4362 = vst [vmem:[%s4196] ss:$9 sm:$0xff] %v3825
        %4363 = vst [vmem:[%s4198] ss:$9 sm:$0xff] %v3826
        %4364 = vst [vmem:[%s4200] ss:$9 sm:$0xff] %v3827
        %4365 = vst [vmem:[%s4202] ss:$9 sm:$0xff] %v3828
        %v4366 = vld [vmem:[#allocation1] sm:$0xff]
        %4367 = vst [vmem:[#allocation1] ss:$9 sm:$0xff] %v3829
        %4368 = vst [vmem:[%s4190] ss:$9 sm:$0xff] %v3830
        %4369 = vst [vmem:[%s4192] ss:$9 sm:$0xff] %v3831
        %4370 = vst [vmem:[%s4194] ss:$9 sm:$0xff] %v3832
        %4371 = vst [vmem:[%s4196] ss:$9 sm:$0xff] %v3833
        %4372 = vst [vmem:[%s4198] ss:$9 sm:$0xff] %v3834
        %4373 = vst [vmem:[%s4200] ss:$9 sm:$0xff] %v3835
        %4374 = vst [vmem:[%s4202] ss:$9 sm:$0xff] %v3836
        %v4375 = vld [vmem:[#allocation1] sm:$0xff]
        %4376 = vst [vmem:[#allocation1] ss:$9 sm:$0xff] %v3837
        %4377 = vst [vmem:[%s4190] ss:$9 sm:$0xff] %v3838
        %4378 = vst [vmem:[%s4192] ss:$9 sm:$0xff] %v3839
        %4379 = vst [vmem:[%s4194] ss:$9 sm:$0xff] %v3840
        %4380 = vst [vmem:[%s4196] ss:$9 sm:$0xff] %v3841
        %4381 = vst [vmem:[%s4198] ss:$9 sm:$0xff] %v3842
        %4382 = vst [vmem:[%s4200] ss:$9 sm:$0xff] %v3843
        %4383 = vst [vmem:[%s4202] ss:$9 sm:$0xff] %v3844
        %v4384 = vld [vmem:[#allocation1] sm:$0xff]
        %4385 = vst [vmem:[#allocation1] ss:$9 sm:$0xff] %v3845
        %4386 = vst [vmem:[%s4190] ss:$9 sm:$0xff] %v3846
        %4387 = vst [vmem:[%s4192] ss:$9 sm:$0xff] %v3847
        %4388 = vst [vmem:[%s4194] ss:$9 sm:$0xff] %v3848
        %4389 = vst [vmem:[%s4196] ss:$9 sm:$0xff] %v3849
        %4390 = vst [vmem:[%s4198] ss:$9 sm:$0xff] %v3850
        %4391 = vst [vmem:[%s4200] ss:$9 sm:$0xff] %v3851
        %4392 = vst [vmem:[%s4202] ss:$9 sm:$0xff] %v3852
        %v4393 = vld [vmem:[#allocation1] sm:$0xff]
        %4394 = vst [vmem:[#allocation1] ss:$9 sm:$0xff] %v3853
        %4395 = vst [vmem:[%s4190] ss:$9 sm:$0xff] %v3854
        %4396 = vst [vmem:[%s4192] ss:$9 sm:$0xff] %v3855
        %4397 = vst [vmem:[%s4194] ss:$9 sm:$0xff] %v3856
        %4398 = vst [vmem:[%s4196] ss:$9 sm:$0xff] %v3857
        %4399 = vst [vmem:[%s4198] ss:$9 sm:$0xff] %v3858
        %4400 = vst [vmem:[%s4200] ss:$9 sm:$0xff] %v3859
        %4401 = vst [vmem:[%s4202] ss:$9 sm:$0xff] %v3860
        %v4402 = vld [vmem:[#allocation1] sm:$0xff]
        %4403 = vst [vmem:[#allocation1] ss:$9 sm:$0xff] %v3861
        %4404 = vst [vmem:[%s4190] ss:$9 sm:$0xff] %v3862
        %4405 = vst [vmem:[%s4192] ss:$9 sm:$0xff] %v3863
        %4406 = vst [vmem:[%s4194] ss:$9 sm:$0xff] %v3864
        %4407 = vst [vmem:[%s4196] ss:$9 sm:$0xff] %v3865
        %4408 = vst [vmem:[%s4198] ss:$9 sm:$0xff] %v3866
        %4409 = vst [vmem:[%s4200] ss:$9 sm:$0xff] %v3867
        %4410 = vst [vmem:[%s4202] ss:$9 sm:$0xff] %v3868
        %v4411 = vld [vmem:[#allocation1] sm:$0xff]
        %4412 = vst [vmem:[#allocation1] ss:$9 sm:$0xff] %v3869
        %4413 = vst [vmem:[%s4190] ss:$9 sm:$0xff] %v3870
        %4414 = vst [vmem:[%s4192] ss:$9 sm:$0xff] %v3871
        %4415 = vst [vmem:[%s4194] ss:$9 sm:$0xff] %v3872
        %4416 = vst [vmem:[%s4196] ss:$9 sm:$0xff] %v3873
        %4417 = vst [vmem:[%s4198] ss:$9 sm:$0xff] %v3874
        %4418 = vst [vmem:[%s4200] ss:$9 sm:$0xff] %v3875
        %4419 = vst [vmem:[%s4202] ss:$9 sm:$0xff] %v3876
        %v4420 = vld [vmem:[#allocation1] sm:$0xff]
        %4421 = vst [vmem:[#allocation1] ss:$9 sm:$0xff] %v3877
        %4422 = vst [vmem:[%s4190] ss:$9 sm:$0xff] %v3878
        %4423 = vst [vmem:[%s4192] ss:$9 sm:$0xff] %v3879
        %4424 = vst [vmem:[%s4194] ss:$9 sm:$0xff] %v3880
        %4425 = vst [vmem:[%s4196] ss:$9 sm:$0xff] %v3881
        %4426 = vst [vmem:[%s4198] ss:$9 sm:$0xff] %v3882
        %4427 = vst [vmem:[%s4200] ss:$9 sm:$0xff] %v3883
        %4428 = vst [vmem:[%s4202] ss:$9 sm:$0xff] %v3884
        %v4429 = vld [vmem:[#allocation1] sm:$0xff]
        %4430 = vst [vmem:[#allocation1] ss:$9 sm:$0xff] %v3885
        %4431 = vst [vmem:[%s4190] ss:$9 sm:$0xff] %v3886
        %4432 = vst [vmem:[%s4192] ss:$9 sm:$0xff] %v3887
        %4433 = vst [vmem:[%s4194] ss:$9 sm:$0xff] %v3888
        %4434 = vst [vmem:[%s4196] ss:$9 sm:$0xff] %v3889
        %4435 = vst [vmem:[%s4198] ss:$9 sm:$0xff] %v3890
        %4436 = vst [vmem:[%s4200] ss:$9 sm:$0xff] %v3891
        %4437 = vst [vmem:[%s4202] ss:$9 sm:$0xff] %v3892
        %v4438 = vld [vmem:[#allocation1] sm:$0xff]
        %4439 = vst [vmem:[#allocation1] ss:$9 sm:$0xff] %v3893
        %4440 = vst [vmem:[%s4190] ss:$9 sm:$0xff] %v3894
        %4441 = vst [vmem:[%s4192] ss:$9 sm:$0xff] %v3895
        %4442 = vst [vmem:[%s4194] ss:$9 sm:$0xff] %v3896
        %4443 = vst [vmem:[%s4196] ss:$9 sm:$0xff] %v3897
        %4444 = vst [vmem:[%s4198] ss:$9 sm:$0xff] %v3898
        %4445 = vst [vmem:[%s4200] ss:$9 sm:$0xff] %v3899
        %4446 = vst [vmem:[%s4202] ss:$9 sm:$0xff] %v3900
        %v4447 = vld [vmem:[#allocation1] sm:$0xff]
        %4448 = vst [vmem:[#allocation1] ss:$9 sm:$0xff] %v3901
        %4449 = vst [vmem:[%s4190] ss:$9 sm:$0xff] %v3902
        %4450 = vst [vmem:[%s4192] ss:$9 sm:$0xff] %v3903
        %4451 = vst [vmem:[%s4194] ss:$9 sm:$0xff] %v3904
        %4452 = vst [vmem:[%s4196] ss:$9 sm:$0xff] %v3905
        %4453 = vst [vmem:[%s4198] ss:$9 sm:$0xff] %v3906
        %4454 = vst [vmem:[%s4200] ss:$9 sm:$0xff] %v3907
        %4455 = vst [vmem:[%s4202] ss:$9 sm:$0xff] %v3908
        %v4456 = vld [vmem:[#allocation1] sm:$0xff]
        %4457 = vst [vmem:[#allocation1] ss:$9 sm:$0xff] %v3909
        %4458 = vst [vmem:[%s4190] ss:$9 sm:$0xff] %v3910
        %4459 = vst [vmem:[%s4192] ss:$9 sm:$0xff] %v3911
        %4460 = vst [vmem:[%s4194] ss:$9 sm:$0xff] %v3912
        %4461 = vst [vmem:[%s4196] ss:$9 sm:$0xff] %v3913
        %4462 = vst [vmem:[%s4198] ss:$9 sm:$0xff] %v3914
        %4463 = vst [vmem:[%s4200] ss:$9 sm:$0xff] %v3915
        %4464 = vst [vmem:[%s4202] ss:$9 sm:$0xff] %v3916
        %v4465 = vld [vmem:[#allocation1] sm:$0xff]
        %4466 = vst [vmem:[#allocation1] ss:$9 sm:$0xff] %v3917
        %4467 = vst [vmem:[%s4190] ss:$9 sm:$0xff] %v3918
        %4468 = vst [vmem:[%s4192] ss:$9 sm:$0xff] %v3919
        %4469 = vst [vmem:[%s4194] ss:$9 sm:$0xff] %v3920
        %4470 = vst [vmem:[%s4196] ss:$9 sm:$0xff] %v3921
        %4471 = vst [vmem:[%s4198] ss:$9 sm:$0xff] %v3922
        %4472 = vst [vmem:[%s4200] ss:$9 sm:$0xff] %v3923
        %4473 = vst [vmem:[%s4202] ss:$9 sm:$0xff] %v3924
        %v4474 = vld [vmem:[#allocation1] sm:$0xff]
        %4475 = vst [vmem:[#allocation1] ss:$9 sm:$0xff] %v3925
        %4476 = vst [vmem:[%s4190] ss:$9 sm:$0xff] %v3926
        %4477 = vst [vmem:[%s4192] ss:$9 sm:$0xff] %v3927
        %4478 = vst [vmem:[%s4194] ss:$9 sm:$0xff] %v3928
        %4479 = vst [vmem:[%s4196] ss:$9 sm:$0xff] %v3929
        %4480 = vst [vmem:[%s4198] ss:$9 sm:$0xff] %v3930
        %4481 = vst [vmem:[%s4200] ss:$9 sm:$0xff] %v3931
        %4482 = vst [vmem:[%s4202] ss:$9 sm:$0xff] %v3932
        %v4483 = vld [vmem:[#allocation1] sm:$0xff]
        %4484 = vst [vmem:[#allocation1] ss:$9 sm:$0xff] %v3933
        %4485 = vst [vmem:[%s4190] ss:$9 sm:$0xff] %v3934
        %4486 = vst [vmem:[%s4192] ss:$9 sm:$0xff] %v3935
        %4487 = vst [vmem:[%s4194] ss:$9 sm:$0xff] %v3936
        %4488 = vst [vmem:[%s4196] ss:$9 sm:$0xff] %v3937
        %4489 = vst [vmem:[%s4198] ss:$9 sm:$0xff] %v3938
        %4490 = vst [vmem:[%s4200] ss:$9 sm:$0xff] %v3939
        %4491 = vst [vmem:[%s4202] ss:$9 sm:$0xff] %v3940
        %v4492 = vld [vmem:[#allocation1] sm:$0xff]
        %4493 = vst [vmem:[#allocation1] ss:$9 sm:$0xff] %v3941
        %4494 = vst [vmem:[%s4190] ss:$9 sm:$0xff] %v3942
        %4495 = vst [vmem:[%s4192] ss:$9 sm:$0xff] %v3943
        %4496 = vst [vmem:[%s4194] ss:$9 sm:$0xff] %v3944
        %4497 = vst [vmem:[%s4196] ss:$9 sm:$0xff] %v3945
        %4498 = vst [vmem:[%s4198] ss:$9 sm:$0xff] %v3946
        %4499 = vst [vmem:[%s4200] ss:$9 sm:$0xff] %v3947
        %4500 = vst [vmem:[%s4202] ss:$9 sm:$0xff] %v3948
        %v4501 = vld [vmem:[#allocation1] sm:$0xff]
        %4502 = vst [vmem:[#allocation1] ss:$9 sm:$0xff] %v3949
        %4503 = vst [vmem:[%s4190] ss:$9 sm:$0xff] %v3950
        %4504 = vst [vmem:[%s4192] ss:$9 sm:$0xff] %v3951
        %4505 = vst [vmem:[%s4194] ss:$9 sm:$0xff] %v3952
        %4506 = vst [vmem:[%s4196] ss:$9 sm:$0xff] %v3953
        %4507 = vst [vmem:[%s4198] ss:$9 sm:$0xff] %v3954
        %4508 = vst [vmem:[%s4200] ss:$9 sm:$0xff] %v3955
        %4509 = vst [vmem:[%s4202] ss:$9 sm:$0xff] %v3956
        %v4510 = vld [vmem:[#allocation1] sm:$0xff]
        %4511 = vst [vmem:[#allocation1] ss:$9 sm:$0xff] %v3957
        %4512 = vst [vmem:[%s4190] ss:$9 sm:$0xff] %v3958
        %4513 = vst [vmem:[%s4192] ss:$9 sm:$0xff] %v3959
        %4514 = vst [vmem:[%s4194] ss:$9 sm:$0xff] %v3960
        %4515 = vst [vmem:[%s4196] ss:$9 sm:$0xff] %v3961
        %4516 = vst [vmem:[%s4198] ss:$9 sm:$0xff] %v3962
        %4517 = vst [vmem:[%s4200] ss:$9 sm:$0xff] %v3963
        %4518 = vst [vmem:[%s4202] ss:$9 sm:$0xff] %v3964
        %v4519 = vld [vmem:[#allocation1] sm:$0xff]
        %4520 = vst [vmem:[#allocation1] ss:$9 sm:$0xff] %v3965
        %4521 = vst [vmem:[%s4190] ss:$9 sm:$0xff] %v3966
        %4522 = vst [vmem:[%s4192] ss:$9 sm:$0xff] %v3967
        %4523 = vst [vmem:[%s4194] ss:$9 sm:$0xff] %v3968
        %4524 = vst [vmem:[%s4196] ss:$9 sm:$0xff] %v3969
        %4525 = vst [vmem:[%s4198] ss:$9 sm:$0xff] %v3970
        %4526 = vst [vmem:[%s4200] ss:$9 sm:$0xff] %v3971
        %4527 = vst [vmem:[%s4202] ss:$9 sm:$0xff] %v3972
        %v4528 = vld [vmem:[#allocation1] sm:$0xff]
        %4529 = vst [vmem:[#allocation1] ss:$9 sm:$0xff] %v3973
        %4530 = vst [vmem:[%s4190] ss:$9 sm:$0xff] %v3974
        %4531 = vst [vmem:[%s4192] ss:$9 sm:$0xff] %v3975
        %4532 = vst [vmem:[%s4194] ss:$9 sm:$0xff] %v3976
        %4533 = vst [vmem:[%s4196] ss:$9 sm:$0xff] %v3977
        %4534 = vst [vmem:[%s4198] ss:$9 sm:$0xff] %v3978
        %4535 = vst [vmem:[%s4200] ss:$9 sm:$0xff] %v3979
        %4536 = vst [vmem:[%s4202] ss:$9 sm:$0xff] %v3980
        %v4537 = vld [vmem:[#allocation1] sm:$0xff]
        %4538 = vst [vmem:[#allocation1] ss:$9 sm:$0xff] %v3981
        %4539 = vst [vmem:[%s4190] ss:$9 sm:$0xff] %v3982
        %4540 = vst [vmem:[%s4192] ss:$9 sm:$0xff] %v3983
        %4541 = vst [vmem:[%s4194] ss:$9 sm:$0xff] %v3984
        %4542 = vst [vmem:[%s4196] ss:$9 sm:$0xff] %v3985
        %4543 = vst [vmem:[%s4198] ss:$9 sm:$0xff] %v3986
        %4544 = vst [vmem:[%s4200] ss:$9 sm:$0xff] %v3987
        %4545 = vst [vmem:[%s4202] ss:$9 sm:$0xff] %v3988
        %v4546 = vld [vmem:[#allocation1] sm:$0xff]
        %4547 = vst [vmem:[#allocation1] ss:$9 sm:$0xff] %v3989
        %4548 = vst [vmem:[%s4190] ss:$9 sm:$0xff] %v3990
        %4549 = vst [vmem:[%s4192] ss:$9 sm:$0xff] %v3991
        %4550 = vst [vmem:[%s4194] ss:$9 sm:$0xff] %v3992
        %4551 = vst [vmem:[%s4196] ss:$9 sm:$0xff] %v3993
        %4552 = vst [vmem:[%s4198] ss:$9 sm:$0xff] %v3994
        %4553 = vst [vmem:[%s4200] ss:$9 sm:$0xff] %v3995
        %4554 = vst [vmem:[%s4202] ss:$9 sm:$0xff] %v3996
        %v4555 = vld [vmem:[#allocation1] sm:$0xff]
        %4556 = vst [vmem:[#allocation1] ss:$9 sm:$0xff] %v3997
        %4557 = vst [vmem:[%s4190] ss:$9 sm:$0xff] %v3998
        %4558 = vst [vmem:[%s4192] ss:$9 sm:$0xff] %v3999
        %4559 = vst [vmem:[%s4194] ss:$9 sm:$0xff] %v4000
        %4560 = vst [vmem:[%s4196] ss:$9 sm:$0xff] %v4001
        %4561 = vst [vmem:[%s4198] ss:$9 sm:$0xff] %v4002
        %4562 = vst [vmem:[%s4200] ss:$9 sm:$0xff] %v4003
        %4563 = vst [vmem:[%s4202] ss:$9 sm:$0xff] %v4004
        %v4564 = vld [vmem:[#allocation1] sm:$0xff]
        %4565 = vst [vmem:[#allocation1] ss:$9 sm:$0xff] %v4005
        %4566 = vst [vmem:[%s4190] ss:$9 sm:$0xff] %v4006
        %4567 = vst [vmem:[%s4192] ss:$9 sm:$0xff] %v4007
        %4568 = vst [vmem:[%s4194] ss:$9 sm:$0xff] %v4008
        %4569 = vst [vmem:[%s4196] ss:$9 sm:$0xff] %v4009
        %4570 = vst [vmem:[%s4198] ss:$9 sm:$0xff] %v4010
        %4571 = vst [vmem:[%s4200] ss:$9 sm:$0xff] %v4011
        %4572 = vst [vmem:[%s4202] ss:$9 sm:$0xff] %v4012
        %v4573 = vld [vmem:[#allocation1] sm:$0xff]
        %4574 = vst [vmem:[#allocation1] ss:$9 sm:$0xff] %v4013
        %4575 = vst [vmem:[%s4190] ss:$9 sm:$0xff] %v4014
        %4576 = vst [vmem:[%s4192] ss:$9 sm:$0xff] %v4015
        %4577 = vst [vmem:[%s4194] ss:$9 sm:$0xff] %v4016
        %4578 = vst [vmem:[%s4196] ss:$9 sm:$0xff] %v4017
        %4579 = vst [vmem:[%s4198] ss:$9 sm:$0xff] %v4018
        %4580 = vst [vmem:[%s4200] ss:$9 sm:$0xff] %v4019
        %4581 = vst [vmem:[%s4202] ss:$9 sm:$0xff] %v4020
        %v4582 = vld [vmem:[#allocation1] sm:$0xff]
        %4583 = vst [vmem:[#allocation1] ss:$9 sm:$0xff] %v4021
        %4584 = vst [vmem:[%s4190] ss:$9 sm:$0xff] %v4022
        %4585 = vst [vmem:[%s4192] ss:$9 sm:$0xff] %v4023
        %4586 = vst [vmem:[%s4194] ss:$9 sm:$0xff] %v4024
        %4587 = vst [vmem:[%s4196] ss:$9 sm:$0xff] %v4025
        %4588 = vst [vmem:[%s4198] ss:$9 sm:$0xff] %v4026
        %4589 = vst [vmem:[%s4200] ss:$9 sm:$0xff] %v4027
        %4590 = vst [vmem:[%s4202] ss:$9 sm:$0xff] %v4028
        %v4591 = vld [vmem:[#allocation1] sm:$0xff]
        %4592 = vst [vmem:[#allocation1] ss:$9 sm:$0xff] %v4029
        %4593 = vst [vmem:[%s4190] ss:$9 sm:$0xff] %v4030
        %4594 = vst [vmem:[%s4192] ss:$9 sm:$0xff] %v4031
        %4595 = vst [vmem:[%s4194] ss:$9 sm:$0xff] %v4032
        %4596 = vst [vmem:[%s4196] ss:$9 sm:$0xff] %v4033
        %4597 = vst [vmem:[%s4198] ss:$9 sm:$0xff] %v4034
        %4598 = vst [vmem:[%s4200] ss:$9 sm:$0xff] %v4035
        %4599 = vst [vmem:[%s4202] ss:$9 sm:$0xff] %v4036
        %v4600 = vld [vmem:[#allocation1] sm:$0xff]
        %4601 = vst [vmem:[#allocation1] ss:$9 sm:$0xff] %v4037
        %4602 = vst [vmem:[%s4190] ss:$9 sm:$0xff] %v4038
        %4603 = vst [vmem:[%s4192] ss:$9 sm:$0xff] %v4039
        %4604 = vst [vmem:[%s4194] ss:$9 sm:$0xff] %v4040
        %4605 = vst [vmem:[%s4196] ss:$9 sm:$0xff] %v4041
        %4606 = vst [vmem:[%s4198] ss:$9 sm:$0xff] %v4042
        %4607 = vst [vmem:[%s4200] ss:$9 sm:$0xff] %v4043
        %4608 = vst [vmem:[%s4202] ss:$9 sm:$0xff] %v4044
        %v4609 = vld [vmem:[#allocation1] sm:$0xff]
        %4610 = vst [vmem:[#allocation1] ss:$9 sm:$0xff] %v4045
        %4611 = vst [vmem:[%s4190] ss:$9 sm:$0xff] %v4046
        %4612 = vst [vmem:[%s4192] ss:$9 sm:$0xff] %v4047
        %4613 = vst [vmem:[%s4194] ss:$9 sm:$0xff] %v4048
        %4614 = vst [vmem:[%s4196] ss:$9 sm:$0xff] %v4049
        %4615 = vst [vmem:[%s4198] ss:$9 sm:$0xff] %v4050
        %4616 = vst [vmem:[%s4200] ss:$9 sm:$0xff] %v4051
        %4617 = vst [vmem:[%s4202] ss:$9 sm:$0xff] %v4052
        %v4618 = vld [vmem:[#allocation1] sm:$0xff]
        %4619 = vst [vmem:[#allocation1] ss:$9 sm:$0xff] %v4053
        %4620 = vst [vmem:[%s4190] ss:$9 sm:$0xff] %v4054
        %4621 = vst [vmem:[%s4192] ss:$9 sm:$0xff] %v4055
        %4622 = vst [vmem:[%s4194] ss:$9 sm:$0xff] %v4056
        %4623 = vst [vmem:[%s4196] ss:$9 sm:$0xff] %v4057
        %4624 = vst [vmem:[%s4198] ss:$9 sm:$0xff] %v4058
        %4625 = vst [vmem:[%s4200] ss:$9 sm:$0xff] %v4059
        %4626 = vst [vmem:[%s4202] ss:$9 sm:$0xff] %v4060
        %v4627 = vld [vmem:[#allocation1] sm:$0xff]
        %4628 = vst [vmem:[#allocation1] ss:$9 sm:$0xff] %v4061
        %4629 = vst [vmem:[%s4190] ss:$9 sm:$0xff] %v4062
        %4630 = vst [vmem:[%s4192] ss:$9 sm:$0xff] %v4063
        %4631 = vst [vmem:[%s4194] ss:$9 sm:$0xff] %v4064
        %4632 = vst [vmem:[%s4196] ss:$9 sm:$0xff] %v4065
        %4633 = vst [vmem:[%s4198] ss:$9 sm:$0xff] %v4066
        %4634 = vst [vmem:[%s4200] ss:$9 sm:$0xff] %v4067
        %4635 = vst [vmem:[%s4202] ss:$9 sm:$0xff] %v4068
        %v4636 = vld [vmem:[#allocation1] sm:$0xff]
        %4637 = vst [vmem:[#allocation1] ss:$9 sm:$0xff] %v4069
        %4638 = vst [vmem:[%s4190] ss:$9 sm:$0xff] %v4070
        %4639 = vst [vmem:[%s4192] ss:$9 sm:$0xff] %v4071
        %4640 = vst [vmem:[%s4194] ss:$9 sm:$0xff] %v4072
        %4641 = vst [vmem:[%s4196] ss:$9 sm:$0xff] %v4073
        %4642 = vst [vmem:[%s4198] ss:$9 sm:$0xff] %v4074
        %4643 = vst [vmem:[%s4200] ss:$9 sm:$0xff] %v4075
        %4644 = vst [vmem:[%s4202] ss:$9 sm:$0xff] %v4076
        %v4645 = vld [vmem:[#allocation1] sm:$0xff]
        %4646 = vst [vmem:[#allocation1] ss:$9 sm:$0xff] %v4077
        %4647 = vst [vmem:[%s4190] ss:$9 sm:$0xff] %v4078
        %4648 = vst [vmem:[%s4192] ss:$9 sm:$0xff] %v4079
        %4649 = vst [vmem:[%s4194] ss:$9 sm:$0xff] %v4080
        %4650 = vst [vmem:[%s4196] ss:$9 sm:$0xff] %v4081
        %4651 = vst [vmem:[%s4198] ss:$9 sm:$0xff] %v4082
        %4652 = vst [vmem:[%s4200] ss:$9 sm:$0xff] %v4083
        %4653 = vst [vmem:[%s4202] ss:$9 sm:$0xff] %v4084
        %v4654 = vld [vmem:[#allocation1] sm:$0xff]
        %4655 = vst [vmem:[#allocation1] ss:$9 sm:$0xff] %v4085
        %4656 = vst [vmem:[%s4190] ss:$9 sm:$0xff] %v4086
        %4657 = vst [vmem:[%s4192] ss:$9 sm:$0xff] %v4087
        %4658 = vst [vmem:[%s4194] ss:$9 sm:$0xff] %v4088
        %4659 = vst [vmem:[%s4196] ss:$9 sm:$0xff] %v4089
        %4660 = vst [vmem:[%s4198] ss:$9 sm:$0xff] %v4090
        %4661 = vst [vmem:[%s4200] ss:$9 sm:$0xff] %v4091
        %4662 = vst [vmem:[%s4202] ss:$9 sm:$0xff] %v4092
        %v4663 = vld [vmem:[#allocation1] sm:$0xff]
        %4664 = vst [vmem:[#allocation1] ss:$9 sm:$0xff] %v4093
        %4665 = vst [vmem:[%s4190] ss:$9 sm:$0xff] %v4094
        %4666 = vst [vmem:[%s4192] ss:$9 sm:$0xff] %v4095
        %4667 = vst [vmem:[%s4194] ss:$9 sm:$0xff] %v4096
        %4668 = vst [vmem:[%s4196] ss:$9 sm:$0xff] %v4097
        %4669 = vst [vmem:[%s4198] ss:$9 sm:$0xff] %v4098
        %4670 = vst [vmem:[%s4200] ss:$9 sm:$0xff] %v4099
        %4671 = vst [vmem:[%s4202] ss:$9 sm:$0xff] %v4100
        %v4672 = vld [vmem:[#allocation1] sm:$0xff]
        %4673 = vst [vmem:[#allocation1] ss:$9 sm:$0xff] %v4101
        %4674 = vst [vmem:[%s4190] ss:$9 sm:$0xff] %v4102
        %4675 = vst [vmem:[%s4192] ss:$9 sm:$0xff] %v4103
        %4676 = vst [vmem:[%s4194] ss:$9 sm:$0xff] %v4104
        %4677 = vst [vmem:[%s4196] ss:$9 sm:$0xff] %v4105
        %4678 = vst [vmem:[%s4198] ss:$9 sm:$0xff] %v4106
        %4679 = vst [vmem:[%s4200] ss:$9 sm:$0xff] %v4107
        %4680 = vst [vmem:[%s4202] ss:$9 sm:$0xff] %v4108
        %v4681 = vld [vmem:[#allocation1] sm:$0xff]
        %4682 = vst [vmem:[#allocation1] ss:$9 sm:$0xff] %v4109
        %4683 = vst [vmem:[%s4190] ss:$9 sm:$0xff] %v4110
        %4684 = vst [vmem:[%s4192] ss:$9 sm:$0xff] %v4111
        %4685 = vst [vmem:[%s4194] ss:$9 sm:$0xff] %v4112
        %4686 = vst [vmem:[%s4196] ss:$9 sm:$0xff] %v4113
        %4687 = vst [vmem:[%s4198] ss:$9 sm:$0xff] %v4114
        %4688 = vst [vmem:[%s4200] ss:$9 sm:$0xff] %v4115
        %4689 = vst [vmem:[%s4202] ss:$9 sm:$0xff] %v4116
        %v4690 = vld [vmem:[#allocation1] sm:$0xff]
        %4691 = vst [vmem:[#allocation1] ss:$9 sm:$0xff] %v4117
        %4692 = vst [vmem:[%s4190] ss:$9 sm:$0xff] %v4118
        %4693 = vst [vmem:[%s4192] ss:$9 sm:$0xff] %v4119
        %4694 = vst [vmem:[%s4194] ss:$9 sm:$0xff] %v4120
        %4695 = vst [vmem:[%s4196] ss:$9 sm:$0xff] %v4121
        %4696 = vst [vmem:[%s4198] ss:$9 sm:$0xff] %v4122
        %4697 = vst [vmem:[%s4200] ss:$9 sm:$0xff] %v4123
        %4698 = vst [vmem:[%s4202] ss:$9 sm:$0xff] %v4124
        %v4699 = vld [vmem:[#allocation1] sm:$0xff]
        %4700 = vst [vmem:[#allocation1] ss:$9 sm:$0xff] %v4125
        %4701 = vst [vmem:[%s4190] ss:$9 sm:$0xff] %v4126
        %4702 = vst [vmem:[%s4192] ss:$9 sm:$0xff] %v4127
        %4703 = vst [vmem:[%s4194] ss:$9 sm:$0xff] %v4128
        %4704 = vst [vmem:[%s4196] ss:$9 sm:$0xff] %v4129
        %4705 = vst [vmem:[%s4198] ss:$9 sm:$0xff] %v4130
        %4706 = vst [vmem:[%s4200] ss:$9 sm:$0xff] %v4131
        %4707 = vst [vmem:[%s4202] ss:$9 sm:$0xff] %v4132
        %v4708 = vld [vmem:[#allocation1] sm:$0xff]
        %4709 = vst [vmem:[#allocation1] ss:$9 sm:$0xff] %v4133
        %4710 = vst [vmem:[%s4190] ss:$9 sm:$0xff] %v4134
        %4711 = vst [vmem:[%s4192] ss:$9 sm:$0xff] %v4135
        %4712 = vst [vmem:[%s4194] ss:$9 sm:$0xff] %v4136
        %4713 = vst [vmem:[%s4196] ss:$9 sm:$0xff] %v4137
        %4714 = vst [vmem:[%s4198] ss:$9 sm:$0xff] %v4138
        %4715 = vst [vmem:[%s4200] ss:$9 sm:$0xff] %v4139
        %4716 = vst [vmem:[%s4202] ss:$9 sm:$0xff] %v4140
        %v4717 = vld [vmem:[#allocation1] sm:$0xff]
        %4718 = vst [vmem:[#allocation1] ss:$9 sm:$0xff] %v4141
        %4719 = vst [vmem:[%s4190] ss:$9 sm:$0xff] %v4142
        %4720 = vst [vmem:[%s4192] ss:$9 sm:$0xff] %v4143
        %4721 = vst [vmem:[%s4194] ss:$9 sm:$0xff] %v4144
        %4722 = vst [vmem:[%s4196] ss:$9 sm:$0xff] %v4145
        %4723 = vst [vmem:[%s4198] ss:$9 sm:$0xff] %v4146
        %4724 = vst [vmem:[%s4200] ss:$9 sm:$0xff] %v4147
        %4725 = vst [vmem:[%s4202] ss:$9 sm:$0xff] %v4148
        %v4726 = vld [vmem:[#allocation1] sm:$0xff]
        %4727 = vst [vmem:[#allocation1] ss:$9 sm:$0xff] %v4149
        %4728 = vst [vmem:[%s4190] ss:$9 sm:$0xff] %v4150
        %4729 = vst [vmem:[%s4192] ss:$9 sm:$0xff] %v4151
        %4730 = vst [vmem:[%s4194] ss:$9 sm:$0xff] %v4152
        %4731 = vst [vmem:[%s4196] ss:$9 sm:$0xff] %v4153
        %4732 = vst [vmem:[%s4198] ss:$9 sm:$0xff] %v4154
        %4733 = vst [vmem:[%s4200] ss:$9 sm:$0xff] %v4155
        %4734 = vst [vmem:[%s4202] ss:$9 sm:$0xff] %v4156
        %v4735 = vld [vmem:[#allocation1] sm:$0xff]
        %4736 = vst [vmem:[#allocation1] ss:$9 sm:$0xff] %v4157
        %4737 = vst [vmem:[%s4190] ss:$9 sm:$0xff] %v4158
        %4738 = vst [vmem:[%s4192] ss:$9 sm:$0xff] %v4159
        %4739 = vst [vmem:[%s4194] ss:$9 sm:$0xff] %v4160
        %4740 = vst [vmem:[%s4196] ss:$9 sm:$0xff] %v4161
        %4741 = vst [vmem:[%s4198] ss:$9 sm:$0xff] %v4162
        %4742 = vst [vmem:[%s4200] ss:$9 sm:$0xff] %v4163
        %4743 = vst [vmem:[%s4202] ss:$9 sm:$0xff] %v4164
        %v4744 = vld [vmem:[#allocation1] sm:$0xff]
        %4745 = vst [vmem:[#allocation1] ss:$9 sm:$0xff] %v4165
        %4746 = vst [vmem:[%s4190] ss:$9 sm:$0xff] %v4166
        %4747 = vst [vmem:[%s4192] ss:$9 sm:$0xff] %v4167
        %4748 = vst [vmem:[%s4194] ss:$9 sm:$0xff] %v4168
        %4749 = vst [vmem:[%s4196] ss:$9 sm:$0xff] %v4169
        %4750 = vst [vmem:[%s4198] ss:$9 sm:$0xff] %v4170
        %4751 = vst [vmem:[%s4200] ss:$9 sm:$0xff] %v4171
        %4752 = vst [vmem:[%s4202] ss:$9 sm:$0xff] %v4172
        %v4753 = vld [vmem:[#allocation1] sm:$0xff]
        %4754 = vst [vmem:[#allocation1] ss:$9 sm:$0xff] %v4173
        %4755 = vst [vmem:[%s4190] ss:$9 sm:$0xff] %v4174
        %4756 = vst [vmem:[%s4192] ss:$9 sm:$0xff] %v4175
        %4757 = vst [vmem:[%s4194] ss:$9 sm:$0xff] %v4176
        %4758 = vst [vmem:[%s4196] ss:$9 sm:$0xff] %v4177
        %4759 = vst [vmem:[%s4198] ss:$9 sm:$0xff] %v4178
        %4760 = vst [vmem:[%s4200] ss:$9 sm:$0xff] %v4179
        %4761 = vst [vmem:[%s4202] ss:$9 sm:$0xff] %v4180
        %v4762 = vld [vmem:[#allocation1] sm:$0xff]
        %4763 = vst [vmem:[#allocation1] ss:$9 sm:$0xff] %v4181
        %4764 = vst [vmem:[%s4190] ss:$9 sm:$0xff] %v4182
        %4765 = vst [vmem:[%s4192] ss:$9 sm:$0xff] %v4183
        %4766 = vst [vmem:[%s4194] ss:$9 sm:$0xff] %v4184
        %4767 = vst [vmem:[%s4196] ss:$9 sm:$0xff] %v4185
        %4768 = vst [vmem:[%s4198] ss:$9 sm:$0xff] %v4186
        %4769 = vst [vmem:[%s4200] ss:$9 sm:$0xff] %v4187
        %4770 = vst [vmem:[%s4202] ss:$9 sm:$0xff] %v4188
        %v4771 = vld [vmem:[#allocation1] sm:$0xff]
        %4772 = vset.pattern.permute.xlu0 0
        %4773 = vperm.xlu0 %4772, %v4204
        %v4774 = vpop.permute.xlu0 %4773
        %4775 = vset.pattern.permute.xlu0 0
        %4776 = vperm.xlu0 %4775, %v4213
        %v4777 = vpop.permute.xlu0 %4776
        %4778 = vset.pattern.permute.xlu0 0
        %4779 = vperm.xlu0 %4778, %v4222
        %v4780 = vpop.permute.xlu0 %4779
        %4781 = vset.pattern.permute.xlu0 0
        %4782 = vperm.xlu0 %4781, %v4231
        %v4783 = vpop.permute.xlu0 %4782
        %4784 = vset.pattern.permute.xlu0 0
        %4785 = vperm.xlu0 %4784, %v4240
        %v4786 = vpop.permute.xlu0 %4785
        %4787 = vset.pattern.permute.xlu0 0
        %4788 = vperm.xlu0 %4787, %v4249
        %v4789 = vpop.permute.xlu0 %4788
        %4790 = vset.pattern.permute.xlu0 0
        %4791 = vperm.xlu0 %4790, %v4258
        %v4792 = vpop.permute.xlu0 %4791
        %4793 = vset.pattern.permute.xlu0 0
        %4794 = vperm.xlu0 %4793, %v4267
        %v4795 = vpop.permute.xlu0 %4794
        %4796 = vset.pattern.permute.xlu0 0
        %4797 = vperm.xlu0 %4796, %v4276
        %v4798 = vpop.permute.xlu0 %4797
        %4799 = vset.pattern.permute.xlu0 0
        %4800 = vperm.xlu0 %4799, %v4285
        %v4801 = vpop.permute.xlu0 %4800
        %4802 = vset.pattern.permute.xlu0 0
        %4803 = vperm.xlu0 %4802, %v4294
        %v4804 = vpop.permute.xlu0 %4803
        %4805 = vset.pattern.permute.xlu0 0
        %4806 = vperm.xlu0 %4805, %v4303
        %v4807 = vpop.permute.xlu0 %4806
        %4808 = vset.pattern.permute.xlu0 0
        %4809 = vperm.xlu0 %4808, %v4312
        %v4810 = vpop.permute.xlu0 %4809
        %4811 = vset.pattern.permute.xlu0 0
        %4812 = vperm.xlu0 %4811, %v4321
        %v4813 = vpop.permute.xlu0 %4812
        %4814 = vset.pattern.permute.xlu0 0
        %4815 = vperm.xlu0 %4814, %v4330
        %v4816 = vpop.permute.xlu0 %4815
        %4817 = vset.pattern.permute.xlu0 0
        %4818 = vperm.xlu0 %4817, %v4339
        %v4819 = vpop.permute.xlu0 %4818
        %4820 = vset.pattern.permute.xlu0 0
        %4821 = vperm.xlu0 %4820, %v4348
        %v4822 = vpop.permute.xlu0 %4821
        %4823 = vset.pattern.permute.xlu0 0
        %4824 = vperm.xlu0 %4823, %v4357
        %v4825 = vpop.permute.xlu0 %4824
        %4826 = vset.pattern.permute.xlu0 0
        %4827 = vperm.xlu0 %4826, %v4366
        %v4828 = vpop.permute.xlu0 %4827
        %4829 = vset.pattern.permute.xlu0 0
        %4830 = vperm.xlu0 %4829, %v4375
        %v4831 = vpop.permute.xlu0 %4830
        %4832 = vset.pattern.permute.xlu0 0
        %4833 = vperm.xlu0 %4832, %v4384
        %v4834 = vpop.permute.xlu0 %4833
        %4835 = vset.pattern.permute.xlu0 0
        %4836 = vperm.xlu0 %4835, %v4393
        %v4837 = vpop.permute.xlu0 %4836
        %4838 = vset.pattern.permute.xlu0 0
        %4839 = vperm.xlu0 %4838, %v4402
        %v4840 = vpop.permute.xlu0 %4839
        %4841 = vset.pattern.permute.xlu0 0
        %4842 = vperm.xlu0 %4841, %v4411
        %v4843 = vpop.permute.xlu0 %4842
        %4844 = vset.pattern.permute.xlu0 0
        %4845 = vperm.xlu0 %4844, %v4420
        %v4846 = vpop.permute.xlu0 %4845
        %4847 = vset.pattern.permute.xlu0 0
        %4848 = vperm.xlu0 %4847, %v4429
        %v4849 = vpop.permute.xlu0 %4848
        %4850 = vset.pattern.permute.xlu0 0
        %4851 = vperm.xlu0 %4850, %v4438
        %v4852 = vpop.permute.xlu0 %4851
        %4853 = vset.pattern.permute.xlu0 0
        %4854 = vperm.xlu0 %4853, %v4447
        %v4855 = vpop.permute.xlu0 %4854
        %4856 = vset.pattern.permute.xlu0 0
        %4857 = vperm.xlu0 %4856, %v4456
        %v4858 = vpop.permute.xlu0 %4857
        %4859 = vset.pattern.permute.xlu0 0
        %4860 = vperm.xlu0 %4859, %v4465
        %v4861 = vpop.permute.xlu0 %4860
        %4862 = vset.pattern.permute.xlu0 0
        %4863 = vperm.xlu0 %4862, %v4474
        %v4864 = vpop.permute.xlu0 %4863
        %4865 = vset.pattern.permute.xlu0 0
        %4866 = vperm.xlu0 %4865, %v4483
        %v4867 = vpop.permute.xlu0 %4866
        %4868 = vset.pattern.permute.xlu0 0
        %4869 = vperm.xlu0 %4868, %v4492
        %v4870 = vpop.permute.xlu0 %4869
        %4871 = vset.pattern.permute.xlu0 0
        %4872 = vperm.xlu0 %4871, %v4501
        %v4873 = vpop.permute.xlu0 %4872
        %4874 = vset.pattern.permute.xlu0 0
        %4875 = vperm.xlu0 %4874, %v4510
        %v4876 = vpop.permute.xlu0 %4875
        %4877 = vset.pattern.permute.xlu0 0
        %4878 = vperm.xlu0 %4877, %v4519
        %v4879 = vpop.permute.xlu0 %4878
        %4880 = vset.pattern.permute.xlu0 0
        %4881 = vperm.xlu0 %4880, %v4528
        %v4882 = vpop.permute.xlu0 %4881
        %4883 = vset.pattern.permute.xlu0 0
        %4884 = vperm.xlu0 %4883, %v4537
        %v4885 = vpop.permute.xlu0 %4884
        %4886 = vset.pattern.permute.xlu0 0
        %4887 = vperm.xlu0 %4886, %v4546
        %v4888 = vpop.permute.xlu0 %4887
        %4889 = vset.pattern.permute.xlu0 0
        %4890 = vperm.xlu0 %4889, %v4555
        %v4891 = vpop.permute.xlu0 %4890
        %4892 = vset.pattern.permute.xlu0 0
        %4893 = vperm.xlu0 %4892, %v4564
        %v4894 = vpop.permute.xlu0 %4893
        %4895 = vset.pattern.permute.xlu0 0
        %4896 = vperm.xlu0 %4895, %v4573
        %v4897 = vpop.permute.xlu0 %4896
        %4898 = vset.pattern.permute.xlu0 0
        %4899 = vperm.xlu0 %4898, %v4582
        %v4900 = vpop.permute.xlu0 %4899
        %4901 = vset.pattern.permute.xlu0 0
        %4902 = vperm.xlu0 %4901, %v4591
        %v4903 = vpop.permute.xlu0 %4902
        %4904 = vset.pattern.permute.xlu0 0
        %4905 = vperm.xlu0 %4904, %v4600
        %v4906 = vpop.permute.xlu0 %4905
        %4907 = vset.pattern.permute.xlu0 0
        %4908 = vperm.xlu0 %4907, %v4609
        %v4909 = vpop.permute.xlu0 %4908
        %4910 = vset.pattern.permute.xlu0 0
        %4911 = vperm.xlu0 %4910, %v4618
        %v4912 = vpop.permute.xlu0 %4911
        %4913 = vset.pattern.permute.xlu0 0
        %4914 = vperm.xlu0 %4913, %v4627
        %v4915 = vpop.permute.xlu0 %4914
        %4916 = vset.pattern.permute.xlu0 0
        %4917 = vperm.xlu0 %4916, %v4636
        %v4918 = vpop.permute.xlu0 %4917
        %4919 = vset.pattern.permute.xlu0 0
        %4920 = vperm.xlu0 %4919, %v4645
        %v4921 = vpop.permute.xlu0 %4920
        %4922 = vset.pattern.permute.xlu0 0
        %4923 = vperm.xlu0 %4922, %v4654
        %v4924 = vpop.permute.xlu0 %4923
        %4925 = vset.pattern.permute.xlu0 0
        %4926 = vperm.xlu0 %4925, %v4663
        %v4927 = vpop.permute.xlu0 %4926
        %4928 = vset.pattern.permute.xlu0 0
        %4929 = vperm.xlu0 %4928, %v4672
        %v4930 = vpop.permute.xlu0 %4929
        %4931 = vset.pattern.permute.xlu0 0
        %4932 = vperm.xlu0 %4931, %v4681
        %v4933 = vpop.permute.xlu0 %4932
        %4934 = vset.pattern.permute.xlu0 0
        %4935 = vperm.xlu0 %4934, %v4690
        %v4936 = vpop.permute.xlu0 %4935
        %4937 = vset.pattern.permute.xlu0 0
        %4938 = vperm.xlu0 %4937, %v4699
        %v4939 = vpop.permute.xlu0 %4938
        %4940 = vset.pattern.permute.xlu0 0
        %4941 = vperm.xlu0 %4940, %v4708
        %v4942 = vpop.permute.xlu0 %4941
        %4943 = vset.pattern.permute.xlu0 0
        %4944 = vperm.xlu0 %4943, %v4717
        %v4945 = vpop.permute.xlu0 %4944
        %4946 = vset.pattern.permute.xlu0 0
        %4947 = vperm.xlu0 %4946, %v4726
        %v4948 = vpop.permute.xlu0 %4947
        %4949 = vset.pattern.permute.xlu0 0
        %4950 = vperm.xlu0 %4949, %v4735
        %v4951 = vpop.permute.xlu0 %4950
        %4952 = vset.pattern.permute.xlu0 0
        %4953 = vperm.xlu0 %4952, %v4744
        %v4954 = vpop.permute.xlu0 %4953
        %4955 = vset.pattern.permute.xlu0 0
        %4956 = vperm.xlu0 %4955, %v4753
        %v4957 = vpop.permute.xlu0 %4956
        %4958 = vset.pattern.permute.xlu0 0
        %4959 = vperm.xlu0 %4958, %v4762
        %v4960 = vpop.permute.xlu0 %4959
        %4961 = vset.pattern.permute.xlu0 0
        %4962 = vperm.xlu0 %4961, %v4771
        %v4963 = vpop.permute.xlu0 %4962
        %v4964 = vlaneseq
        %v4965 = vand.u32 %v4964, 127
        %v4966 = vperm.slane %v4774, %v4965
        %v4967 = vadd.s32 %v4965, 4294967288
        %v4968 = vperm.slane %v4777, %v4967
        %vm4969 = vcmask 130112
        %v4970 = vsel %vm4969, %v4968, %v4966
        %v4971 = vadd.s32 %v4965, 4294967280
        %v4972 = vperm.slane %v4780, %v4971
        %vm4973 = vcmask 195712
        %v4974 = vsel %vm4973, %v4972, %v4970
        %v4975 = vadd.s32 %v4965, 4294967272
        %v4976 = vperm.slane %v4783, %v4975
        %vm4977 = vcmask 261312
        %v4978 = vsel %vm4977, %v4976, %v4974
        %v4979 = vadd.s32 %v4965, 4294967264
        %v4980 = vperm.slane %v4786, %v4979
        %vm4981 = vcmask 326912
        %v4982 = vsel %vm4981, %v4980, %v4978
        %v4983 = vadd.s32 %v4965, 4294967256
        %v4984 = vperm.slane %v4789, %v4983
        %vm4985 = vcmask 392512
        %v4986 = vsel %vm4985, %v4984, %v4982
        %v4987 = vadd.s32 %v4965, 4294967248
        %v4988 = vperm.slane %v4792, %v4987
        %vm4989 = vcmask 458112
        %v4990 = vsel %vm4989, %v4988, %v4986
        %v4991 = vadd.s32 %v4965, 4294967240
        %v4992 = vperm.slane %v4795, %v4991
        %vm4993 = vcmask 523712
        %v4994 = vsel %vm4993, %v4992, %v4990
        %v4995 = vadd.s32 %v4965, 4294967232
        %v4996 = vperm.slane %v4798, %v4995
        %vm4997 = vcmask 589312
        %v4998 = vsel %vm4997, %v4996, %v4994
        %v4999 = vadd.s32 %v4965, 4294967224
        %v5000 = vperm.slane %v4801, %v4999
        %vm5001 = vcmask 654912
        %v5002 = vsel %vm5001, %v5000, %v4998
        %v5003 = vadd.s32 %v4965, 4294967216
        %v5004 = vperm.slane %v4804, %v5003
        %vm5005 = vcmask 720512
        %v5006 = vsel %vm5005, %v5004, %v5002
        %v5007 = vadd.s32 %v4965, 4294967208
        %v5008 = vperm.slane %v4807, %v5007
        %vm5009 = vcmask 786112
        %v5010 = vsel %vm5009, %v5008, %v5006
        %v5011 = vadd.s32 %v4965, 4294967200
        %v5012 = vperm.slane %v4810, %v5011
        %vm5013 = vcmask 851712
        %v5014 = vsel %vm5013, %v5012, %v5010
        %v5015 = vadd.s32 %v4965, 4294967192
        %v5016 = vperm.slane %v4813, %v5015
        %vm5017 = vcmask 917312
        %v5018 = vsel %vm5017, %v5016, %v5014
        %v5019 = vadd.s32 %v4965, 4294967184
        %v5020 = vperm.slane %v4816, %v5019
        %vm5021 = vcmask 982912
        %v5022 = vsel %vm5021, %v5020, %v5018
        %v5023 = vadd.s32 %v4965, 4294967176
        %v5024 = vperm.slane %v4819, %v5023
        %vm5025 = vcmask 1048512
        %v5026 = vsel %vm5025, %v5024, %v5022
        %v5027 = vperm.slane %v4822, %v4965
        %v5028 = vperm.slane %v4825, %v4967
        %v5029 = vsel %vm4969, %v5028, %v5027
        %v5030 = vperm.slane %v4828, %v4971
        %v5031 = vsel %vm4973, %v5030, %v5029
        %v5032 = vperm.slane %v4831, %v4975
        %v5033 = vsel %vm4977, %v5032, %v5031
        %v5034 = vperm.slane %v4834, %v4979
        %v5035 = vsel %vm4981, %v5034, %v5033
        %v5036 = vperm.slane %v4837, %v4983
        %v5037 = vsel %vm4985, %v5036, %v5035
        %v5038 = vperm.slane %v4840, %v4987
        %v5039 = vsel %vm4989, %v5038, %v5037
        %v5040 = vperm.slane %v4843, %v4991
        %v5041 = vsel %vm4993, %v5040, %v5039
        %v5042 = vperm.slane %v4846, %v4995
        %v5043 = vsel %vm4997, %v5042, %v5041
        %v5044 = vperm.slane %v4849, %v4999
        %v5045 = vsel %vm5001, %v5044, %v5043
        %v5046 = vperm.slane %v4852, %v5003
        %v5047 = vsel %vm5005, %v5046, %v5045
        %v5048 = vperm.slane %v4855, %v5007
        %v5049 = vsel %vm5009, %v5048, %v5047
        %v5050 = vperm.slane %v4858, %v5011
        %v5051 = vsel %vm5013, %v5050, %v5049
        %v5052 = vperm.slane %v4861, %v5015
        %v5053 = vsel %vm5017, %v5052, %v5051
        %v5054 = vperm.slane %v4864, %v5019
        %v5055 = vsel %vm5021, %v5054, %v5053
        %v5056 = vperm.slane %v4867, %v5023
        %v5057 = vsel %vm5025, %v5056, %v5055
        %v5058 = vperm.slane %v4870, %v4965
        %v5059 = vperm.slane %v4873, %v4967
        %v5060 = vsel %vm4969, %v5059, %v5058
        %v5061 = vperm.slane %v4876, %v4971
        %v5062 = vsel %vm4973, %v5061, %v5060
        %v5063 = vperm.slane %v4879, %v4975
        %v5064 = vsel %vm4977, %v5063, %v5062
        %v5065 = vperm.slane %v4882, %v4979
        %v5066 = vsel %vm4981, %v5065, %v5064
        %v5067 = vperm.slane %v4885, %v4983
        %v5068 = vsel %vm4985, %v5067, %v5066
        %v5069 = vperm.slane %v4888, %v4987
        %v5070 = vsel %vm4989, %v5069, %v5068
        %v5071 = vperm.slane %v4891, %v4991
        %v5072 = vsel %vm4993, %v5071, %v5070
        %v5073 = vperm.slane %v4894, %v4995
        %v5074 = vsel %vm4997, %v5073, %v5072
        %v5075 = vperm.slane %v4897, %v4999
        %v5076 = vsel %vm5001, %v5075, %v5074
        %v5077 = vperm.slane %v4900, %v5003
        %v5078 = vsel %vm5005, %v5077, %v5076
        %v5079 = vperm.slane %v4903, %v5007
        %v5080 = vsel %vm5009, %v5079, %v5078
        %v5081 = vperm.slane %v4906, %v5011
        %v5082 = vsel %vm5013, %v5081, %v5080
        %v5083 = vperm.slane %v4909, %v5015
        %v5084 = vsel %vm5017, %v5083, %v5082
        %v5085 = vperm.slane %v4912, %v5019
        %v5086 = vsel %vm5021, %v5085, %v5084
        %v5087 = vperm.slane %v4915, %v5023
        %v5088 = vsel %vm5025, %v5087, %v5086
        %v5089 = vperm.slane %v4918, %v4965
        %v5090 = vperm.slane %v4921, %v4967
        %v5091 = vsel %vm4969, %v5090, %v5089
        %v5092 = vperm.slane %v4924, %v4971
        %v5093 = vsel %vm4973, %v5092, %v5091
        %v5094 = vperm.slane %v4927, %v4975
        %v5095 = vsel %vm4977, %v5094, %v5093
        %v5096 = vperm.slane %v4930, %v4979
        %v5097 = vsel %vm4981, %v5096, %v5095
        %v5098 = vperm.slane %v4933, %v4983
        %v5099 = vsel %vm4985, %v5098, %v5097
        %v5100 = vperm.slane %v4936, %v4987
        %v5101 = vsel %vm4989, %v5100, %v5099
        %v5102 = vperm.slane %v4939, %v4991
        %v5103 = vsel %vm4993, %v5102, %v5101
        %v5104 = vperm.slane %v4942, %v4995
        %v5105 = vsel %vm4997, %v5104, %v5103
        %v5106 = vperm.slane %v4945, %v4999
        %v5107 = vsel %vm5001, %v5106, %v5105
        %v5108 = vperm.slane %v4948, %v5003
        %v5109 = vsel %vm5005, %v5108, %v5107
        %v5110 = vperm.slane %v4951, %v5007
        %v5111 = vsel %vm5009, %v5110, %v5109
        %v5112 = vperm.slane %v4954, %v5011
        %v5113 = vsel %vm5013, %v5112, %v5111
        %v5114 = vperm.slane %v4957, %v5015
        %v5115 = vsel %vm5017, %v5114, %v5113
        %v5116 = vperm.slane %v4960, %v5019
        %v5117 = vsel %vm5021, %v5116, %v5115
        %v5118 = vperm.slane %v4963, %v5023
        %v5119 = vsel %vm5025, %v5118, %v5117
        %v5120 = vrot.slane %v5057, 7
        %v5121 = vrot.slane %v5088, 6
        %v5122 = vrot.slane %v5119, 5
        %vm5123 = vcmask 1040384
        %v5124 = vsel %vm5123, %v5026, %v5120
        %vm5125 = vcmask 1042434
        %v5126 = vsel %vm5125, %v5121, %v5122
        %vm5127 = vcmask 1041408
        %v5128 = vsel %vm5127, %v5124, %v5126
        %v5130 = vlaneseq
        %vm5131 = vcmp.ge.s32.totalorder %v5130, 0
        %vm5132 = vcmp.lt.s32.totalorder %v5130, 512
        %vm5133 = vmand %vm5131, %vm5132
        %5134 = vst.msk [vmem:[%s216] sm:$0xf] %vm5133, %v5128
        %v5135 = vpack.c.bf16 %v3262, %v2417
        %v5136 = vpack.c.bf16 %v3264, %v2419
        %v5137 = vpack.c.bf16 %v3267, %v2422
        %v5138 = vpack.c.bf16 %v3269, %v2424
        %v5139 = vpack.c.bf16 %v3272, %v2427
        %v5140 = vpack.c.bf16 %v3274, %v2429
        %v5141 = vpack.c.bf16 %v3277, %v2432
        %v5142 = vpack.c.bf16 %v3279, %v2434
        %v5143 = vpack.c.bf16 %v3282, %v2437
        %v5144 = vpack.c.bf16 %v3284, %v2439
        %v5145 = vpack.c.bf16 %v3287, %v2442
        %v5146 = vpack.c.bf16 %v3289, %v2444
        %v5147 = vpack.c.bf16 %v3292, %v2447
        %v5148 = vpack.c.bf16 %v3294, %v2449
        %v5149 = vpack.c.bf16 %v3297, %v2452
        %v5150 = vpack.c.bf16 %v3299, %v2454
        %v5151 = vpack.c.bf16 %v3302, %v2457
        %v5152 = vpack.c.bf16 %v3304, %v2459
        %v5153 = vpack.c.bf16 %v3307, %v2462
        %v5154 = vpack.c.bf16 %v3309, %v2464
        %v5155 = vpack.c.bf16 %v3312, %v2467
        %v5156 = vpack.c.bf16 %v3314, %v2469
        %v5157 = vpack.c.bf16 %v3317, %v2472
        %v5158 = vpack.c.bf16 %v3319, %v2474
        %v5159 = vpack.c.bf16 %v3322, %v2477
        %v5160 = vpack.c.bf16 %v3324, %v2479
        %v5161 = vpack.c.bf16 %v3327, %v2482
        %v5162 = vpack.c.bf16 %v3329, %v2484
        %v5163 = vpack.c.bf16 %v3332, %v2487
        %v5164 = vpack.c.bf16 %v3334, %v2489
        %v5165 = vpack.c.bf16 %v3337, %v2492
        %v5166 = vpack.c.bf16 %v3339, %v2494
        %v5167 = vpack.c.bf16 %v3342, %v2497
        %v5168 = vpack.c.bf16 %v3344, %v2499
        %v5169 = vpack.c.bf16 %v3347, %v2502
        %v5170 = vpack.c.bf16 %v3349, %v2504
        %v5171 = vpack.c.bf16 %v3352, %v2507
        %v5172 = vpack.c.bf16 %v3354, %v2509
        %v5173 = vpack.c.bf16 %v3357, %v2512
        %v5174 = vpack.c.bf16 %v3359, %v2514
        %v5175 = vpack.c.bf16 %v3362, %v2517
        %v5176 = vpack.c.bf16 %v3364, %v2519
        %v5177 = vpack.c.bf16 %v3367, %v2522
        %v5178 = vpack.c.bf16 %v3369, %v2524
        %v5179 = vpack.c.bf16 %v3372, %v2527
        %v5180 = vpack.c.bf16 %v3374, %v2529
        %v5181 = vpack.c.bf16 %v3377, %v2532
        %v5182 = vpack.c.bf16 %v3379, %v2534
        %v5183 = vpack.c.bf16 %v3382, %v2537
        %v5184 = vpack.c.bf16 %v3384, %v2539
        %v5185 = vpack.c.bf16 %v3387, %v2542
        %v5186 = vpack.c.bf16 %v3389, %v2544
        %v5187 = vpack.c.bf16 %v3392, %v2547
        %v5188 = vpack.c.bf16 %v3394, %v2549
        %v5189 = vpack.c.bf16 %v3397, %v2552
        %v5190 = vpack.c.bf16 %v3399, %v2554
        %v5191 = vpack.c.bf16 %v3402, %v2557
        %v5192 = vpack.c.bf16 %v3404, %v2559
        %v5193 = vpack.c.bf16 %v3407, %v2562
        %v5194 = vpack.c.bf16 %v3409, %v2564
        %v5195 = vpack.c.bf16 %v3412, %v2567
        %v5196 = vpack.c.bf16 %v3414, %v2569
        %v5197 = vpack.c.bf16 %v3417, %v2572
        %v5198 = vpack.c.bf16 %v3419, %v2574
        %5199 = vst [vmem:[%s209] sm:$0xff] %v5135
        %5200 = vst [vmem:[%s209 + $0x8] sm:$0xff] %v5136
        %5201 = vst [vmem:[%s209 + $0x10] sm:$0xff] %v5137
        %5202 = vst [vmem:[%s209 + $0x18] sm:$0xff] %v5138
        %5203 = vst [vmem:[%s209 + $0x20] sm:$0xff] %v5139
        %5204 = vst [vmem:[%s209 + $0x28] sm:$0xff] %v5140
        %5205 = vst [vmem:[%s209 + $0x30] sm:$0xff] %v5141
        %5206 = vst [vmem:[%s209 + $0x38] sm:$0xff] %v5142
        %5207 = vst [vmem:[%s209 + $0x40] sm:$0xff] %v5143
        %5208 = vst [vmem:[%s209 + $0x48] sm:$0xff] %v5144
        %5209 = vst [vmem:[%s209 + $0x50] sm:$0xff] %v5145
        %5210 = vst [vmem:[%s209 + $0x58] sm:$0xff] %v5146
        %5211 = vst [vmem:[%s209 + $0x60] sm:$0xff] %v5147
        %5212 = vst [vmem:[%s209 + $0x68] sm:$0xff] %v5148
        %5213 = vst [vmem:[%s209 + $0x70] sm:$0xff] %v5149
        %5214 = vst [vmem:[%s209 + $0x78] sm:$0xff] %v5150
        %5215 = vst [vmem:[%s209 + $0x80] sm:$0xff] %v5151
        %5216 = vst [vmem:[%s209 + $0x88] sm:$0xff] %v5152
        %5217 = vst [vmem:[%s209 + $0x90] sm:$0xff] %v5153
        %5218 = vst [vmem:[%s209 + $0x98] sm:$0xff] %v5154
        %5219 = vst [vmem:[%s209 + $0xa0] sm:$0xff] %v5155
        %5220 = vst [vmem:[%s209 + $0xa8] sm:$0xff] %v5156
        %5221 = vst [vmem:[%s209 + $0xb0] sm:$0xff] %v5157
        %5222 = vst [vmem:[%s209 + $0xb8] sm:$0xff] %v5158
        %5223 = vst [vmem:[%s209 + $0xc0] sm:$0xff] %v5159
        %5224 = vst [vmem:[%s209 + $0xc8] sm:$0xff] %v5160
        %5225 = vst [vmem:[%s209 + $0xd0] sm:$0xff] %v5161
        %5226 = vst [vmem:[%s209 + $0xd8] sm:$0xff] %v5162
        %5227 = vst [vmem:[%s209 + $0xe0] sm:$0xff] %v5163
        %5228 = vst [vmem:[%s209 + $0xe8] sm:$0xff] %v5164
        %5229 = vst [vmem:[%s209 + $0xf0] sm:$0xff] %v5165
        %5230 = vst [vmem:[%s209 + $0xf8] sm:$0xff] %v5166
        %5231 = vst [vmem:[%s209 + $0x100] sm:$0xff] %v5167
        %5232 = vst [vmem:[%s209 + $0x108] sm:$0xff] %v5168
        %5233 = vst [vmem:[%s209 + $0x110] sm:$0xff] %v5169
        %5234 = vst [vmem:[%s209 + $0x118] sm:$0xff] %v5170
        %5235 = vst [vmem:[%s209 + $0x120] sm:$0xff] %v5171
        %5236 = vst [vmem:[%s209 + $0x128] sm:$0xff] %v5172
        %5237 = vst [vmem:[%s209 + $0x130] sm:$0xff] %v5173
        %5238 = vst [vmem:[%s209 + $0x138] sm:$0xff] %v5174
        %5239 = vst [vmem:[%s209 + $0x140] sm:$0xff] %v5175
        %5240 = vst [vmem:[%s209 + $0x148] sm:$0xff] %v5176
        %5241 = vst [vmem:[%s209 + $0x150] sm:$0xff] %v5177
        %5242 = vst [vmem:[%s209 + $0x158] sm:$0xff] %v5178
        %5243 = vst [vmem:[%s209 + $0x160] sm:$0xff] %v5179
        %5244 = vst [vmem:[%s209 + $0x168] sm:$0xff] %v5180
        %5245 = vst [vmem:[%s209 + $0x170] sm:$0xff] %v5181
        %5246 = vst [vmem:[%s209 + $0x178] sm:$0xff] %v5182
        %5247 = vst [vmem:[%s209 + $0x180] sm:$0xff] %v5183
        %5248 = vst [vmem:[%s209 + $0x188] sm:$0xff] %v5184
        %5249 = vst [vmem:[%s209 + $0x190] sm:$0xff] %v5185
        %5250 = vst [vmem:[%s209 + $0x198] sm:$0xff] %v5186
        %5251 = vst [vmem:[%s209 + $0x1a0] sm:$0xff] %v5187
        %5252 = vst [vmem:[%s209 + $0x1a8] sm:$0xff] %v5188
        %5253 = vst [vmem:[%s209 + $0x1b0] sm:$0xff] %v5189
        %5254 = vst [vmem:[%s209 + $0x1b8] sm:$0xff] %v5190
        %5255 = vst [vmem:[%s209 + $0x1c0] sm:$0xff] %v5191
        %5256 = vst [vmem:[%s209 + $0x1c8] sm:$0xff] %v5192
        %5257 = vst [vmem:[%s209 + $0x1d0] sm:$0xff] %v5193
        %5258 = vst [vmem:[%s209 + $0x1d8] sm:$0xff] %v5194
        %5259 = vst [vmem:[%s209 + $0x1e0] sm:$0xff] %v5195
        %5260 = vst [vmem:[%s209 + $0x1e8] sm:$0xff] %v5196
        %5261 = vst [vmem:[%s209 + $0x1f0] sm:$0xff] %v5197
        %5262 = vst [vmem:[%s209 + $0x1f8] sm:$0xff] %v5198
        %s5263 = sand.u32 %s97, 1
        %s5264 = scalar_lea.sflag [#allocation3], %s5263
        %s5265 = sand.u32 %s97, 1
        %s5266 = smul.addr %s5265, 512
        %s5267 = scalar_lea.vmem [#allocation2], %s5266
        %s5268 = sand.u32 %s125, 1
        %s5269 = scalar_lea.sflag [#allocation5], %s5268
        %s5270 = sand.u32 %s125, 1
        %s5271 = smul.addr %s5270, 4
        %s5272 = scalar_lea.vmem [#allocation4], %s5271
        // Predicated region
        $region29: #{tpu_custom_call.1} parent=27 // pred_check
          %p5273 = pneg %p107
        $region30: #{tpu_custom_call.1} parent=27 // pred_check_branch
          %5275 = sbr.rel (%p5273) target = $region32
        $region31: #{tpu_custom_call.1} parent=27 // pred_region
          %s5276 = smul.u32 2, %s26
          %5278 = vsyncadd %s5264, 0
          %s5279 = smul.addr %s25, 128
          %s5280 = sadd.s32 %s5276, %s5279
          %s5281 = smul.addr %s5280, 4
          %s5282 = scalar_lea.hbm %s2, %s5281
          %s5283 = sshll.u32 %s5267, 4
          %s5284 = int_to_ptr.vmem [resolvable:$true] %s5283
          %s5285 = sshll.u32 %s5282, 4
          %s5286 = int_to_ptr.hbm [resolvable:$true] %s5285
          %5291 = dma.vmem_to_hbm [thread:$0]  %s5284, 8192, %s5286, %s5264, 128, 128, 8
        $region32: #{tpu_custom_call.1} parent=27 // pred_fallthru
          _
        // Predicated region
        $region33: #{tpu_custom_call.1} parent=27 // pred_check
          %p5292 = pneg %p135
        $region34: #{tpu_custom_call.1} parent=27 // pred_check_branch
          %5294 = sbr.rel (%p5292) target = $region36
        $region35: #{tpu_custom_call.1} parent=27 // pred_region
          %5296 = vsyncadd %s5269, 0
          %s5297 = smul.addr %s26, 4
          %s5298 = smul.addr %s25, 4
          %s5299 = sadd.s32 %s5297, %s5298
          %s5300 = scalar_lea.hbm %s3, %s5299
          %s5302 = sshll.u32 %s5272, 4
          %s5303 = int_to_ptr.vmem [resolvable:$true] %s5302
          %s5304 = sshll.u32 %s5300, 4
          %s5305 = int_to_ptr.hbm [resolvable:$true] %s5304
          %5307 = dma.vmem_to_hbm [thread:$0]  %s5303, 64, %s5305, %s5269
        $region36: #{tpu_custom_call.1} parent=27 // pred_fallthru
          _
      $region28: #{tpu_custom_call.1} parent=5 // pred_fallthru
        _
      %p5308 = scmp.le.s32.totalorder 2, %s16
      // Predicated region
      $region37: #{tpu_custom_call.1} parent=5 // pred_check
        %p5309 = pneg %p5308
      $region38: #{tpu_custom_call.1} parent=5 // pred_check_branch
        %5311 = sbr.rel (%p5309) target = $region40
      $region39: #{tpu_custom_call.1} parent=5 // pred_region
        %s5312 = ssub.s32 %s16, 2
        // Predicated region
        $region41: #{tpu_custom_call.1} parent=39 // pred_check
          %p5313 = pneg %p113
        $region42: #{tpu_custom_call.1} parent=39 // pred_check_branch
          %5315 = sbr.rel (%p5313) target = $region44
        $region43: #{tpu_custom_call.1} parent=39 // pred_region
          %s5316 = sand.u32 %s98, 1
          %s5317 = scalar_lea.sflag [#allocation3], %s5316
          %s5318 = sand.u32 %s98, 1
          %s5319 = smul.addr %s5318, 512
          %s5320 = scalar_lea.vmem [#allocation2], %s5319
          %5322 = dma.done %s5317, 8192
        $region44: #{tpu_custom_call.1} parent=39 // pred_fallthru
          _
        // Predicated region
        $region45: #{tpu_custom_call.1} parent=39 // pred_check
          %p5323 = pneg %p141
        $region46: #{tpu_custom_call.1} parent=39 // pred_check_branch
          %5325 = sbr.rel (%p5323) target = $region48
        $region47: #{tpu_custom_call.1} parent=39 // pred_region
          %s5326 = sand.u32 %s126, 1
          %s5327 = scalar_lea.sflag [#allocation5], %s5326
          %s5328 = sand.u32 %s126, 1
          %s5329 = smul.addr %s5328, 4
          %s5330 = scalar_lea.vmem [#allocation4], %s5329
          %5332 = dma.done %s5327, 64
        $region48: #{tpu_custom_call.1} parent=39 // pred_fallthru
          _
      $region40: #{tpu_custom_call.1} parent=5 // pred_fallthru
        _
    $region6: #{tpu_custom_call.1} parent=1 // loop_footer
      %s20 = sadd.s32 1, %s16
    $region7: #{tpu_custom_call.1} parent=1 // loop_footer_branch
      %15 = sbr.rel target = $region3
    $region8: #{tpu_custom_call.1} parent=1 // loop_exit
      _
    %5333 = vsyncpa [#allocation3], 1
    %s5334 = scalar_lea.sflag [#allocation3], 1
    %5335 = vsyncpa %s5334, 1
    %5336 = vsyncpa [#allocation5], 1
    %s5337 = scalar_lea.sflag [#allocation5], 1
    %5338 = vsyncpa %s5337, 1

</llo_original>
